<compile_context>
chip_gen: v7x
topology: tpu7x:2x2x1
jax: 0.10.0
libtpu: 0.0.40
codegen_flags: <defaults>
</compile_context>

<pallas_src>
import functools

import jax
import jax.numpy as jnp
from jax import lax
from jax.experimental import pallas as pl
from jax.experimental.pallas import tpu as pltpu

TM_MAX = 8192  # max spatial rows per tile (~16 MiB double-buffered working set)


# ---------------------------------------------------------------------------
# Pallas kernel: fused 1x1 conv over all anchors + bias + sigmoid + YOLO decode
# ---------------------------------------------------------------------------
def _detect_kernel(x_ref, w_ref, b_ref, awh_ref, raw_ref, dec_ref, log_ref, *,
                   stride, nx, na, no):
    tm = x_ref.shape[2]
    nano = na * no

    # Fused 1x1 conv: contract over channels for ALL anchors at once.
    # x block is (ch, tm) (native NCHW orientation); result is (tm, na*no).
    t = lax.dot_general(
        x_ref[0], w_ref[...],
        dimension_numbers=(((0,), (0,)), ((), ())),
        preferred_element_type=jnp.float32,
        precision=lax.Precision.HIGHEST,
    )
    t = t + b_ref[...]                                   # (1, na*no) broadcast

    y = jax.nn.sigmoid(t)                                # EUP

    # Per-column role (x / y / w / h / other), built in-kernel from iota.
    col = lax.broadcasted_iota(jnp.int32, (1, nano), 1)
    cj = col
    for a in range(1, na):                               # cj = col % no, no vector div
        cj = jnp.where(col >= a * no, col - a * no, cj)
    is_x = cj == 0
    is_y = cj == 1
    m_xy = cj < 2
    m_wh = jnp.logical_and(cj >= 2, cj < 4)

    # Per-row spatial grid offsets (gx, gy), computed once per row tile.
    s0 = pl.program_id(1) * tm
    srow = (s0 + lax.broadcasted_iota(jnp.int32, (tm, 1), 0)).astype(jnp.float32)
    gy = jnp.floor(srow / float(nx))
    gx = srow - gy * float(nx)
    g = jnp.where(is_x, gx, 0.0) + jnp.where(is_y, gy, 0.0)   # (tm, na*no)

    y2 = y * 2.0
    xyv = (y2 - 0.5 + g) * stride
    whv = y2 * y2 * awh_ref[...]                         # anchor*stride on w/h cols
    dec = jnp.where(m_xy, xyv, jnp.where(m_wh, whv, y))

    # Store per-anchor slabs directly in the final (bs, na, S, *) layout.
    for a in range(na):
        lo = a * no
        raw_ref[0, a] = t[:, lo:lo + no]
        dec_ref[0, a] = dec[:, lo:lo + no]
        log_ref[0, a] = t[:, lo + 5:lo + no]


def detect_level(xf, w, b, awh, *, stride, nx, tm, na, no, nc):
    """xf: (bs, ch, S) f32; w: (ch, na*no) f32; b/awh: (1, na*no) f32."""
    bs, ch, S = xf.shape
    nano = na * no
    grid = (bs, pl.cdiv(S, tm))
    kernel = functools.partial(_detect_kernel, stride=float(stride), nx=int(nx),
                               na=int(na), no=int(no))
    raw, dec, log = pl.pallas_call(
        kernel,
        out_shape=(jax.ShapeDtypeStruct((bs, na, S, no), jnp.float32),
                   jax.ShapeDtypeStruct((bs, na, S, no), jnp.float32),
                   jax.ShapeDtypeStruct((bs, na, S, nc), jnp.float32)),
        grid_spec=pltpu.PrefetchScalarGridSpec(
            num_scalar_prefetch=0,
            grid=grid,
            in_specs=[
                pl.BlockSpec((1, ch, tm), lambda bi, r: (bi, 0, r)),   # activations
                pl.BlockSpec((ch, nano), lambda bi, r: (0, 0)),        # fused weights
                pl.BlockSpec((1, nano), lambda bi, r: (0, 0)),         # fused bias
                pl.BlockSpec((1, nano), lambda bi, r: (0, 0)),         # anchor*stride
            ],
            out_specs=[
                pl.BlockSpec((1, na, tm, no), lambda bi, r: (bi, 0, r, 0)),
                pl.BlockSpec((1, na, tm, no), lambda bi, r: (bi, 0, r, 0)),
                pl.BlockSpec((1, na, tm, nc), lambda bi, r: (bi, 0, r, 0)),
            ],
        ),
        compiler_params=pltpu.CompilerParams(
            dimension_semantics=("parallel", "parallel"),
            vmem_limit_bytes=48 * 1024 * 1024),
    )(xf, w, b, awh)
    return raw, dec, log


# ---------------------------------------------------------------------------
# Detect module (inference-mode forward), parameters built in-script
# ---------------------------------------------------------------------------
class DetectPallas:
    def __init__(self, nc, anchors, ch, stride):
        self.nc = nc
        self.no = nc + 5
        self.nl = len(anchors)
        self.na = len(anchors[0]) // 2
        self.anchors = jnp.asarray(anchors, jnp.float32).reshape(self.nl, -1, 2)
        self.stride = tuple(float(s) for s in stride)

        # Deterministic synthetic conv params for nn.Conv2d(c, no*na, 1).
        # Column o = a*no + j of the (c, na*no) weight matrix is anchor a, field j.
        key = jax.random.PRNGKey(42)
        self.weights, self.biases, self.awh = [], [], []
        nano = self.na * self.no
        col = jnp.arange(nano)
        a_idx = col // self.no
        j = col % self.no
        for i, c in enumerate(ch):
            key, kw, kb = jax.random.split(key, 3)
            w = jax.random.normal(kw, (c, nano), jnp.float32) * 0.05
            b = jax.random.normal(kb, (nano,), jnp.float32) * 0.05
            self.weights.append(w)
            self.biases.append(b.reshape(1, nano))
            asz = self.anchors[i] * self.stride[i]               # (na, 2)
            awh = jnp.where(j == 2, asz[a_idx, 0],
                            jnp.where(j == 3, asz[a_idx, 1], 0.0))
            self.awh.append(awh.reshape(1, nano).astype(jnp.float32))

    def __call__(self, xs):
        """xs: list of NCHW float32 arrays (PyTorch conv layout)."""
        z, logits_, x_out = [], [], []
        for i, x in enumerate(xs):
            bs, c, ny, nx = x.shape
            S = ny * nx
            xf = x.reshape(bs, c, S)           # free reshape of NCHW, no cast/transpose
            tm = S if S <= TM_MAX else TM_MAX
            raw, dec, log = detect_level(
                xf, self.weights[i], self.biases[i], self.awh[i],
                stride=self.stride[i], nx=nx, tm=tm,
                na=self.na, no=self.no, nc=self.nc)
            # Kernel already wrote (bs, na, S, *): only pure reshapes below.
            x_out.append(raw.reshape(bs, self.na, ny, nx, self.no))
            z.append(dec.reshape(bs, self.na * S, self.no))
            logits_.append(log.reshape(bs, self.na * S, self.nc))
        return jnp.concatenate(z, 1), jnp.concatenate(logits_, 1), x_out


# ---------------------------------------------------------------------------
# Pure-JAX reference (mirrors the PyTorch forward) for a correctness check
# ---------------------------------------------------------------------------
def reference_forward(det, xs):
    z, logits_, x_out = [], [], []
    for i, x in enumerate(xs):
        bs, c, ny, nx = x.shape
        w = det.weights[i]                                  # (c, na*no)
        b = det.biases[i].reshape(-1)
        t = jnp.einsum("bchw,co->bohw", x, w, precision=lax.Precision.HIGHEST)
        t = t + b.reshape(1, -1, 1, 1)
        t = t.reshape(bs, det.na, det.no, ny, nx).transpose(0, 1, 3, 4, 2)
        x_out.append(t)
        y = jax.nn.sigmoid(t)
        gy, gx = jnp.meshgrid(jnp.arange(ny, dtype=jnp.float32),
                              jnp.arange(nx, dtype=jnp.float32), indexing="ij")
        grid = jnp.stack((gx, gy), 2)[None, None]           # (1,1,ny,nx,2)
        anchor_grid = (det.anchors[i] * det.stride[i]).reshape(1, det.na, 1, 1, 2)
        xy = (y[..., 0:2] * 2.0 - 0.5 + grid) * det.stride[i]
        wh = (y[..., 2:4] * 2.0) ** 2 * anchor_grid
        yv = jnp.concatenate((xy, wh, y[..., 4:]), -1)
        z.append(yv.reshape(bs, -1, det.no))
        logits_.append(t[..., 5:].reshape(bs, -1, det.nc))
    return jnp.concatenate(z, 1), jnp.concatenate(logits_, 1), x_out


if __name__ == "__main__":
    nc = 15
    anchors = ((10, 13, 16, 30, 33, 23),
               (30, 61, 62, 45, 59, 119),
               (116, 90, 156, 198, 373, 326))
    ch = (16, 32, 64)
    stride = (8.0, 16.0, 32.0)
    det = DetectPallas(nc, anchors, ch, stride)

    key = jax.random.PRNGKey(0)
    shapes = [(2, 16, 16, 16), (2, 32, 8, 8), (2, 64, 4, 4)]   # NCHW per level
    xs = []
    for s in shapes:
        key, k = jax.random.split(key)
        xs.append(jax.random.normal(k, s, jnp.float32))

    z, logits, x_raw = det(xs)
    jax.block_until_ready(z)
    jax.block_until_ready(logits)
    for t in x_raw:
        jax.block_until_ready(t)

    z_ref, logits_ref, x_raw_ref = reference_forward(det, xs)
    assert z.shape == z_ref.shape and logits.shape == logits_ref.shape
    assert jnp.allclose(z, z_ref, atol=2e-3, rtol=2e-3)
    assert jnp.allclose(logits, logits_ref, atol=2e-3, rtol=2e-3)
    for a, b in zip(x_raw, x_raw_ref):
        assert a.shape == b.shape
        assert jnp.allclose(a, b, atol=2e-3, rtol=2e-3)

    # Extra check: non-divisible spatial size (S=144 with tm=128) exercises the
    # partial-last-tile boundary masking of all three outputs.
    ny2 = nx2 = 12
    key, k = jax.random.split(key)
    x2 = jax.random.normal(k, (1, ch[0], ny2, nx2), jnp.float32)
    raw2, dec2, log2 = detect_level(
        x2.reshape(1, ch[0], ny2 * nx2), det.weights[0], det.biases[0],
        det.awh[0], stride=det.stride[0], nx=nx2, tm=128,
        na=det.na, no=det.no, nc=det.nc)
    jax.block_until_ready(dec2)
    z2_ref, log2_ref, x2_ref = reference_forward(det, [x2])
    assert jnp.allclose(dec2.reshape(1, -1, det.no), z2_ref, atol=2e-3, rtol=2e-3)
    assert jnp.allclose(log2.reshape(1, -1, det.nc), log2_ref, atol=2e-3, rtol=2e-3)
    assert jnp.allclose(raw2.reshape(1, det.na, ny2, nx2, det.no), x2_ref[0],
                        atol=2e-3, rtol=2e-3)

    print("KERNEL_OK")
</pallas_src>

<mosaic_0001>
module attributes {stable_mosaic.version = 11 : i64} {
  func.func @_detect_kernel(%arg0: i32, %arg1: i32, %arg2: memref<1x16x256xf32, #tpu.memory_space<vmem>>, %arg3: memref<16x60xf32, #tpu.memory_space<vmem>>, %arg4: memref<1x60xf32, #tpu.memory_space<vmem>>, %arg5: memref<1x60xf32, #tpu.memory_space<vmem>>, %arg6: memref<1x3x256x20xf32, #tpu.memory_space<vmem>>, %arg7: memref<1x3x256x20xf32, #tpu.memory_space<vmem>>, %arg8: memref<1x3x256x15xf32, #tpu.memory_space<vmem>>) attributes {dimension_semantics = [#tpu.dimension_semantics<parallel>, #tpu.dimension_semantics<parallel>], iteration_bounds = array<i64: 2, 1>, scalar_prefetch = 0 : i64, scratch_operands = 0 : i64, tpu.core_type = #tpu.core_type<tc>, window_params = [{transform_indices = @transform_0, window_bounds = array<i64: 1, 16, 256>}, {pipeline_mode = #tpu.pipeline_mode<synchronous>, transform_indices = @transform_1, window_bounds = array<i64: 16, 60>}, {pipeline_mode = #tpu.pipeline_mode<synchronous>, transform_indices = @transform_2, window_bounds = array<i64: 1, 60>}, {pipeline_mode = #tpu.pipeline_mode<synchronous>, transform_indices = @transform_3, window_bounds = array<i64: 1, 60>}, {transform_indices = @transform_4, window_bounds = array<i64: 1, 3, 256, 20>}, {transform_indices = @transform_5, window_bounds = array<i64: 1, 3, 256, 20>}, {transform_indices = @transform_6, window_bounds = array<i64: 1, 3, 256, 15>}]} {
    %c0 = arith.constant 0 : index
    %c0_0 = arith.constant 0 : index
    %c0_1 = arith.constant 0 : index
    %0 = vector.load %arg2[%c0, %c0_0, %c0_1] : memref<1x16x256xf32, #tpu.memory_space<vmem>>, vector<1x16x256xf32>
    %1 = vector.shape_cast %0 : vector<1x16x256xf32> to vector<16x256xf32>
    %c0_2 = arith.constant 0 : index
    %c0_3 = arith.constant 0 : index
    %2 = vector.load %arg3[%c0_2, %c0_3] : memref<16x60xf32, #tpu.memory_space<vmem>>, vector<16x60xf32>
    %cst = arith.constant dense<0.000000e+00> : vector<256x60xf32>
    %3 = tpu.matmul %1, %2, %cst {dimension_numbers = #tpu.dot_dimension_numbers<[0], [0], [1], [1], [0, 1, 1, 1], [], []>, precision = #tpu.contract_precision<fp32>} : vector<16x256xf32>, vector<16x60xf32>, vector<256x60xf32> -> vector<256x60xf32>
    %c0_4 = arith.constant 0 : index
    %c0_5 = arith.constant 0 : index
    %4 = vector.load %arg4[%c0_4, %c0_5] : memref<1x60xf32, #tpu.memory_space<vmem>>, vector<1x60xf32>
    %5 = vector.broadcast %4 : vector<1x60xf32> to vector<256x60xf32>
    %6 = arith.addf %3, %5 : vector<256x60xf32>
    %7 = arith.negf %6 : vector<256x60xf32>
    %8 = math.exp %7 : vector<256x60xf32>
    %cst_6 = arith.constant 1.000000e+00 : f32
    %9 = vector.broadcast %cst_6 : f32 to vector<256x60xf32>
    %10 = arith.addf %9, %8 : vector<256x60xf32>
    %11 = arith.divf %9, %10 : vector<256x60xf32>
    %12 = tpu.iota {dimensions = array<i32: 1>} : vector<1x60xi32>
    %c20_i32 = arith.constant 20 : i32
    %13 = vector.broadcast %c20_i32 : i32 to vector<1x60xi32>
    %14 = arith.cmpi sge, %12, %13 : vector<1x60xi32>
    %c20_i32_7 = arith.constant 20 : i32
    %15 = vector.broadcast %c20_i32_7 : i32 to vector<1x60xi32>
    %16 = arith.subi %12, %15 : vector<1x60xi32>
    %17 = arith.select %14, %16, %12 : vector<1x60xi1>, vector<1x60xi32>
    %c40_i32 = arith.constant 40 : i32
    %18 = vector.broadcast %c40_i32 : i32 to vector<1x60xi32>
    %19 = arith.cmpi sge, %12, %18 : vector<1x60xi32>
    %c40_i32_8 = arith.constant 40 : i32
    %20 = vector.broadcast %c40_i32_8 : i32 to vector<1x60xi32>
    %21 = arith.subi %12, %20 : vector<1x60xi32>
    %22 = arith.select %19, %21, %17 : vector<1x60xi1>, vector<1x60xi32>
    %c0_i32 = arith.constant 0 : i32
    %23 = vector.broadcast %c0_i32 : i32 to vector<1x60xi32>
    %24 = arith.cmpi eq, %22, %23 : vector<1x60xi32>
    %c1_i32 = arith.constant 1 : i32
    %25 = vector.broadcast %c1_i32 : i32 to vector<1x60xi32>
    %26 = arith.cmpi eq, %22, %25 : vector<1x60xi32>
    %c2_i32 = arith.constant 2 : i32
    %27 = vector.broadcast %c2_i32 : i32 to vector<1x60xi32>
    %28 = arith.cmpi slt, %22, %27 : vector<1x60xi32>
    %c2_i32_9 = arith.constant 2 : i32
    %29 = vector.broadcast %c2_i32_9 : i32 to vector<1x60xi32>
    %30 = arith.cmpi sge, %22, %29 : vector<1x60xi32>
    %c4_i32 = arith.constant 4 : i32
    %31 = vector.broadcast %c4_i32 : i32 to vector<1x60xi32>
    %32 = arith.cmpi slt, %22, %31 : vector<1x60xi32>
    %33 = arith.andi %30, %32 : vector<1x60xi1>
    %c256_i32 = arith.constant 256 : i32
    %34 = arith.muli %arg1, %c256_i32 : i32
    %35 = tpu.iota {dimensions = array<i32: 0>} : vector<256x1xi32>
    %36 = vector.broadcast %34 : i32 to vector<256x1xi32>
    %37 = arith.addi %36, %35 : vector<256x1xi32>
    %38 = arith.sitofp %37 : vector<256x1xi32> to vector<256x1xf32>
    %cst_10 = arith.constant 1.600000e+01 : f32
    %39 = vector.broadcast %cst_10 : f32 to vector<256x1xf32>
    %40 = arith.divf %38, %39 : vector<256x1xf32>
    %41 = math.floor %40 : vector<256x1xf32>
    %cst_11 = arith.constant 1.600000e+01 : f32
    %42 = vector.broadcast %cst_11 : f32 to vector<256x1xf32>
    %43 = arith.mulf %41, %42 : vector<256x1xf32>
    %44 = arith.subf %38, %43 : vector<256x1xf32>
    %cst_12 = arith.constant 0.000000e+00 : f32
    %45 = vector.shape_cast %24 : vector<1x60xi1> to vector<1x60xi1>
    %46 = vector.broadcast %45 : vector<1x60xi1> to vector<256x60xi1>
    %47 = vector.shape_cast %44 : vector<256x1xf32> to vector<256x1xf32>
    %48 = vector.broadcast %47 : vector<256x1xf32> to vector<256x60xf32>
    %49 = vector.broadcast %cst_12 : f32 to vector<256x60xf32>
    %50 = arith.select %46, %48, %49 : vector<256x60xi1>, vector<256x60xf32>
    %cst_13 = arith.constant 0.000000e+00 : f32
    %51 = vector.shape_cast %26 : vector<1x60xi1> to vector<1x60xi1>
    %52 = vector.broadcast %51 : vector<1x60xi1> to vector<256x60xi1>
    %53 = vector.shape_cast %41 : vector<256x1xf32> to vector<256x1xf32>
    %54 = vector.broadcast %53 : vector<256x1xf32> to vector<256x60xf32>
    %55 = vector.broadcast %cst_13 : f32 to vector<256x60xf32>
    %56 = arith.select %52, %54, %55 : vector<256x60xi1>, vector<256x60xf32>
    %57 = arith.addf %50, %56 : vector<256x60xf32>
    %cst_14 = arith.constant 2.000000e+00 : f32
    %58 = vector.broadcast %cst_14 : f32 to vector<256x60xf32>
    %59 = arith.mulf %11, %58 : vector<256x60xf32>
    %cst_15 = arith.constant 5.000000e-01 : f32
    %60 = vector.broadcast %cst_15 : f32 to vector<256x60xf32>
    %61 = arith.subf %59, %60 : vector<256x60xf32>
    %62 = arith.addf %61, %57 : vector<256x60xf32>
    %cst_16 = arith.constant 8.000000e+00 : f32
    %63 = vector.broadcast %cst_16 : f32 to vector<256x60xf32>
    %64 = arith.mulf %62, %63 : vector<256x60xf32>
    %65 = arith.mulf %59, %59 : vector<256x60xf32>
    %c0_17 = arith.constant 0 : index
    %c0_18 = arith.constant 0 : index
    %66 = vector.load %arg5[%c0_17, %c0_18] : memref<1x60xf32, #tpu.memory_space<vmem>>, vector<1x60xf32>
    %67 = vector.broadcast %66 : vector<1x60xf32> to vector<256x60xf32>
    %68 = arith.mulf %65, %67 : vector<256x60xf32>
    %69 = vector.shape_cast %33 : vector<1x60xi1> to vector<1x60xi1>
    %70 = vector.broadcast %69 : vector<1x60xi1> to vector<256x60xi1>
    %71 = arith.select %70, %68, %11 : vector<256x60xi1>, vector<256x60xf32>
    %72 = vector.shape_cast %28 : vector<1x60xi1> to vector<1x60xi1>
    %73 = vector.broadcast %72 : vector<1x60xi1> to vector<256x60xi1>
    %74 = arith.select %73, %64, %71 : vector<256x60xi1>, vector<256x60xf32>
    %75 = vector.extract_strided_slice %6 {offsets = [0, 0], sizes = [256, 20], strides = [1, 1]} : vector<256x60xf32> to vector<256x20xf32>
    %c0_19 = arith.constant 0 : index
    %c0_20 = arith.constant 0 : index
    %c0_21 = arith.constant 0 : index
    %c0_22 = arith.constant 0 : index
    %76 = vector.load %arg6[%c0_19, %c0_20, %c0_21, %c0_22] : memref<1x3x256x20xf32, #tpu.memory_space<vmem>>, vector<1x1x256x20xf32>
    %77 = vector.shape_cast %76 : vector<1x1x256x20xf32> to vector<256x20xf32>
    %78 = vector.shape_cast %75 : vector<256x20xf32> to vector<1x1x256x20xf32>
    tpu.vector_store %arg6[%c0_19, %c0_20, %c0_21, %c0_22], %78 {strides = array<i32>} : memref<1x3x256x20xf32, #tpu.memory_space<vmem>>, vector<1x1x256x20xf32>,
    %79 = vector.extract_strided_slice %74 {offsets = [0, 0], sizes = [256, 20], strides = [1, 1]} : vector<256x60xf32> to vector<256x20xf32>
    %c0_23 = arith.constant 0 : index
    %c0_24 = arith.constant 0 : index
    %c0_25 = arith.constant 0 : index
    %c0_26 = arith.constant 0 : index
    %80 = vector.load %arg7[%c0_23, %c0_24, %c0_25, %c0_26] : memref<1x3x256x20xf32, #tpu.memory_space<vmem>>, vector<1x1x256x20xf32>
    %81 = vector.shape_cast %80 : vector<1x1x256x20xf32> to vector<256x20xf32>
    %82 = vector.shape_cast %79 : vector<256x20xf32> to vector<1x1x256x20xf32>
    tpu.vector_store %arg7[%c0_23, %c0_24, %c0_25, %c0_26], %82 {strides = array<i32>} : memref<1x3x256x20xf32, #tpu.memory_space<vmem>>, vector<1x1x256x20xf32>,
    %83 = vector.extract_strided_slice %6 {offsets = [0, 5], sizes = [256, 15], strides = [1, 1]} : vector<256x60xf32> to vector<256x15xf32>
    %c0_27 = arith.constant 0 : index
    %c0_28 = arith.constant 0 : index
    %c0_29 = arith.constant 0 : index
    %c0_30 = arith.constant 0 : index
    %84 = vector.load %arg8[%c0_27, %c0_28, %c0_29, %c0_30] : memref<1x3x256x15xf32, #tpu.memory_space<vmem>>, vector<1x1x256x15xf32>
    %85 = vector.shape_cast %84 : vector<1x1x256x15xf32> to vector<256x15xf32>
    %86 = vector.shape_cast %83 : vector<256x15xf32> to vector<1x1x256x15xf32>
    tpu.vector_store %arg8[%c0_27, %c0_28, %c0_29, %c0_30], %86 {strides = array<i32>} : memref<1x3x256x15xf32, #tpu.memory_space<vmem>>, vector<1x1x256x15xf32>,
    %87 = vector.extract_strided_slice %6 {offsets = [0, 20], sizes = [256, 20], strides = [1, 1]} : vector<256x60xf32> to vector<256x20xf32>
    %c0_31 = arith.constant 0 : index
    %c1 = arith.constant 1 : index
    %c0_32 = arith.constant 0 : index
    %c0_33 = arith.constant 0 : index
    %88 = vector.load %arg6[%c0_31, %c1, %c0_32, %c0_33] : memref<1x3x256x20xf32, #tpu.memory_space<vmem>>, vector<1x1x256x20xf32>
    %89 = vector.shape_cast %88 : vector<1x1x256x20xf32> to vector<256x20xf32>
    %90 = vector.shape_cast %87 : vector<256x20xf32> to vector<1x1x256x20xf32>
    tpu.vector_store %arg6[%c0_31, %c1, %c0_32, %c0_33], %90 {strides = array<i32>} : memref<1x3x256x20xf32, #tpu.memory_space<vmem>>, vector<1x1x256x20xf32>,
    %91 = vector.extract_strided_slice %74 {offsets = [0, 20], sizes = [256, 20], strides = [1, 1]} : vector<256x60xf32> to vector<256x20xf32>
    %c0_34 = arith.constant 0 : index
    %c1_35 = arith.constant 1 : index
    %c0_36 = arith.constant 0 : index
    %c0_37 = arith.constant 0 : index
    %92 = vector.load %arg7[%c0_34, %c1_35, %c0_36, %c0_37] : memref<1x3x256x20xf32, #tpu.memory_space<vmem>>, vector<1x1x256x20xf32>
    %93 = vector.shape_cast %92 : vector<1x1x256x20xf32> to vector<256x20xf32>
    %94 = vector.shape_cast %91 : vector<256x20xf32> to vector<1x1x256x20xf32>
    tpu.vector_store %arg7[%c0_34, %c1_35, %c0_36, %c0_37], %94 {strides = array<i32>} : memref<1x3x256x20xf32, #tpu.memory_space<vmem>>, vector<1x1x256x20xf32>,
    %95 = vector.extract_strided_slice %6 {offsets = [0, 25], sizes = [256, 15], strides = [1, 1]} : vector<256x60xf32> to vector<256x15xf32>
    %c0_38 = arith.constant 0 : index
    %c1_39 = arith.constant 1 : index
    %c0_40 = arith.constant 0 : index
    %c0_41 = arith.constant 0 : index
    %96 = vector.load %arg8[%c0_38, %c1_39, %c0_40, %c0_41] : memref<1x3x256x15xf32, #tpu.memory_space<vmem>>, vector<1x1x256x15xf32>
    %97 = vector.shape_cast %96 : vector<1x1x256x15xf32> to vector<256x15xf32>
    %98 = vector.shape_cast %95 : vector<256x15xf32> to vector<1x1x256x15xf32>
    tpu.vector_store %arg8[%c0_38, %c1_39, %c0_40, %c0_41], %98 {strides = array<i32>} : memref<1x3x256x15xf32, #tpu.memory_space<vmem>>, vector<1x1x256x15xf32>,
    %99 = vector.extract_strided_slice %6 {offsets = [0, 40], sizes = [256, 20], strides = [1, 1]} : vector<256x60xf32> to vector<256x20xf32>
    %c0_42 = arith.constant 0 : index
    %c2 = arith.constant 2 : index
    %c0_43 = arith.constant 0 : index
    %c0_44 = arith.constant 0 : index
    %100 = vector.load %arg6[%c0_42, %c2, %c0_43, %c0_44] : memref<1x3x256x20xf32, #tpu.memory_space<vmem>>, vector<1x1x256x20xf32>
    %101 = vector.shape_cast %100 : vector<1x1x256x20xf32> to vector<256x20xf32>
    %102 = vector.shape_cast %99 : vector<256x20xf32> to vector<1x1x256x20xf32>
    tpu.vector_store %arg6[%c0_42, %c2, %c0_43, %c0_44], %102 {strides = array<i32>} : memref<1x3x256x20xf32, #tpu.memory_space<vmem>>, vector<1x1x256x20xf32>,
    %103 = vector.extract_strided_slice %74 {offsets = [0, 40], sizes = [256, 20], strides = [1, 1]} : vector<256x60xf32> to vector<256x20xf32>
    %c0_45 = arith.constant 0 : index
    %c2_46 = arith.constant 2 : index
    %c0_47 = arith.constant 0 : index
    %c0_48 = arith.constant 0 : index
    %104 = vector.load %arg7[%c0_45, %c2_46, %c0_47, %c0_48] : memref<1x3x256x20xf32, #tpu.memory_space<vmem>>, vector<1x1x256x20xf32>
    %105 = vector.shape_cast %104 : vector<1x1x256x20xf32> to vector<256x20xf32>
    %106 = vector.shape_cast %103 : vector<256x20xf32> to vector<1x1x256x20xf32>
    tpu.vector_store %arg7[%c0_45, %c2_46, %c0_47, %c0_48], %106 {strides = array<i32>} : memref<1x3x256x20xf32, #tpu.memory_space<vmem>>, vector<1x1x256x20xf32>,
    %107 = vector.extract_strided_slice %6 {offsets = [0, 45], sizes = [256, 15], strides = [1, 1]} : vector<256x60xf32> to vector<256x15xf32>
    %c0_49 = arith.constant 0 : index
    %c2_50 = arith.constant 2 : index
    %c0_51 = arith.constant 0 : index
    %c0_52 = arith.constant 0 : index
    %108 = vector.load %arg8[%c0_49, %c2_50, %c0_51, %c0_52] : memref<1x3x256x15xf32, #tpu.memory_space<vmem>>, vector<1x1x256x15xf32>
    %109 = vector.shape_cast %108 : vector<1x1x256x15xf32> to vector<256x15xf32>
    %110 = vector.shape_cast %107 : vector<256x15xf32> to vector<1x1x256x15xf32>
    tpu.vector_store %arg8[%c0_49, %c2_50, %c0_51, %c0_52], %110 {strides = array<i32>} : memref<1x3x256x15xf32, #tpu.memory_space<vmem>>, vector<1x1x256x15xf32>,
    return
  }
  func.func @transform_0(%arg0: i32, %arg1: i32) -> (i32, i32, i32) {
    %c0_i32 = arith.constant 0 : i32
    %c0_i32_0 = arith.constant 0 : i32
    return %arg0, %c0_i32, %arg1 : i32, i32, i32
  }
  func.func @transform_1(%arg0: i32, %arg1: i32) -> (i32, i32) {
    %c0_i32 = arith.constant 0 : i32
    %c0_i32_0 = arith.constant 0 : i32
    %c0_i32_1 = arith.constant 0 : i32
    return %c0_i32, %c0_i32_0 : i32, i32
  }
  func.func @transform_2(%arg0: i32, %arg1: i32) -> (i32, i32) {
    %c0_i32 = arith.constant 0 : i32
    %c0_i32_0 = arith.constant 0 : i32
    %c0_i32_1 = arith.constant 0 : i32
    return %c0_i32, %c0_i32_0 : i32, i32
  }
  func.func @transform_3(%arg0: i32, %arg1: i32) -> (i32, i32) {
    %c0_i32 = arith.constant 0 : i32
    %c0_i32_0 = arith.constant 0 : i32
    %c0_i32_1 = arith.constant 0 : i32
    return %c0_i32, %c0_i32_0 : i32, i32
  }
  func.func @transform_4(%arg0: i32, %arg1: i32) -> (i32, i32, i32, i32) {
    %c0_i32 = arith.constant 0 : i32
    %c0_i32_0 = arith.constant 0 : i32
    %c0_i32_1 = arith.constant 0 : i32
    return %arg0, %c0_i32, %arg1, %c0_i32_0 : i32, i32, i32, i32
  }
  func.func @transform_5(%arg0: i32, %arg1: i32) -> (i32, i32, i32, i32) {
    %c0_i32 = arith.constant 0 : i32
    %c0_i32_0 = arith.constant 0 : i32
    %c0_i32_1 = arith.constant 0 : i32
    return %arg0, %c0_i32, %arg1, %c0_i32_0 : i32, i32, i32, i32
  }
  func.func @transform_6(%arg0: i32, %arg1: i32) -> (i32, i32, i32, i32) {
    %c0_i32 = arith.constant 0 : i32
    %c0_i32_0 = arith.constant 0 : i32
    %c0_i32_1 = arith.constant 0 : i32
    return %arg0, %c0_i32, %arg1, %c0_i32_0 : i32, i32, i32, i32
  }
}

</mosaic_0001>

<llo_original>
// kernel: tpu_custom_call.1
$region0: #{tpu_custom_call.1}
  #allocation0 [shape = 'u32[]', space=smem, size = 0x4, offset = 0x4, fixed_abs, tag = 'smem constant byte address 0x4 - core index']
  #allocation1 [shape = 'u32[144,128]{1,0:T(1,128)}', space=vmem, size = 0x12000, scoped, tag = 'internal scratch']
  %s0 = inlined_call_operand.hbm [shape: f32[2,16,256], index: 0, kind: input, shape index: {}]
  %s1 = inlined_call_operand.hbm [shape: f32[16,60], index: 1, kind: input, shape index: {}]
  %s2 = inlined_call_operand.vmem [shape: f32[1,60], index: 2, kind: input, shape index: {}]
  %s3 = inlined_call_operand.vmem [shape: f32[1,60], index: 3, kind: input, shape index: {}]
  %s4 = inlined_call_operand.vmem [shape: f32[2,3,256,20], index: 4, kind: output, shape index: {0}]
  %s5 = inlined_call_operand.vmem [shape: f32[2,3,256,20], index: 5, kind: output, shape index: {1}]
  %s6 = inlined_call_operand.vmem [shape: f32[2,3,256,15], index: 6, kind: output, shape index: {2}]
  %7 = xla_tuple %s4, %s5, %s6
  %s8 = sld [smem:[#allocation0]]
  $region73: #{tpu_custom_call.1} parent=0
    _
  %s10 = ssub.s32 1, %s8
  %s11 = scalar_select 0, %s10, %s8
  $region1: #{tpu_custom_call.1} parent=0
    #allocation2 [shape = 'u8[32768]{0}', space=vmem, size = 0x8000, scoped, tag = 'input window, operand 0']
    #allocation3 [shape = 's32[2]{0}', space=sflag, size = 0x8, scoped, tag = 'scoped memory for tpu_custom_call.1']
    #allocation4 [shape = 'u8[8192]{0}', space=vmem, size = 0x2000, scoped, tag = 'input window, operand 1, single buffered']
    #allocation5 [shape = 's32[1]{0}', space=sflag, size = 0x4, scoped, tag = 'scoped memory for tpu_custom_call.1']
    %12 = vsyncpa [#allocation3], 0
    %s13 = scalar_lea.sflag [#allocation3], 1
    %14 = vsyncpa %s13, 0
    %15 = vsyncpa [#allocation5], 0
    loop: start=0, step=1, limit=4
    $region2: #{tpu_custom_call.1} parent=1 // loop_pre_header
      _
    $region3: #{tpu_custom_call.1} parent=1 // loop_header
      %s17 = sphi 0, %s21
      %p18 = scmp.ge.s32.totalorder %s17, 4
      %s24 = sphi 0, %s36
      %s25 = sphi 0, %s32
      %s26 = sphi 0, %s24
      %s27 = sphi 0, %s25
      %s28 = sphi 0, %s26
      %s29 = sphi 0, %s27
      %s41 = sphi 0, %s43
      %s44 = sphi 0, %s41
      %s45 = sphi 0, %s44
      %s61 = sphi 0, %s45
      %s65 = sphi 0, %s65
      %s67 = sphi 0, %s65
      %s68 = sphi 0, %s67
      %s82 = sphi 0, %s68
      %s86 = sphi 0, %s86
      %s88 = sphi 0, %s86
      %s89 = sphi 0, %s88
      %s103 = sphi 0, %s89
      %s107 = sphi 0, %s107
      %s109 = sphi 0, %s107
      %s110 = sphi 0, %s109
      %s124 = sphi 0, %s110
      %s132 = sphi 0, %s134
      %s135 = sphi 0, %s132
      %s136 = sphi 0, %s135
      %s152 = sphi 0, %s136
      %s160 = sphi 0, %s162
      %s163 = sphi 0, %s160
      %s164 = sphi 0, %s163
      %s180 = sphi 0, %s164
      %s188 = sphi 0, %s190
      %s191 = sphi 0, %s188
      %s192 = sphi 0, %s191
      %s208 = sphi 0, %s192
    $region4: #{tpu_custom_call.1} parent=1 // loop_header_branch
      %20 = sbr.rel (%p18) target = $region8
    $region5: #{tpu_custom_call.1} parent=1 // loop_body
      %s22 = ssub.s32 %s17, 1
      %s23 = ssub.s32 %s17, 2
      %s30 = sadd.s32 1, %s25
      %p31 = scmp.ge.s32.totalorder %s30, 1
      %s32 = scalar_select %p31, 0, %s30
      %s33 = sadd.s32 1, %s24
      %s34 = scalar_select %p31, %s33, %s24
      %p35 = scmp.ge.s32.totalorder %s34, 2
      %s36 = scalar_select %p35, 0, %s34
      %s37 = ssub.s32 %s24, %s36
      %s38 = ssub.s32 %s25, %s32
      %s39 = sor.u32 %s37, %s38
      %p40 = scmp.eq.s32.totalorder %s39, 0
      %s42 = sadd.s32 %s41, 1
      %s43 = scalar_select %p40, %s41, %s42
      %p46 = pneg %p40
      %p47 = scmp.eq.s32.totalorder %s17, 1
      %p48 = por %p46, %p47
      %p49 = scmp.ne.s32.totalorder %s41, %s44
      %p50 = scmp.eq.s32.totalorder %s17, 0
      %p51 = por %p49, %p50
      %p52 = scmp.ne.s32.totalorder %s41, %s44
      %p53 = scmp.eq.s32.totalorder %s22, 1
      %p54 = por %p52, %p53
      %p55 = scmp.ne.s32.totalorder %s44, %s45
      %p56 = scmp.eq.s32.totalorder %s22, 0
      %p57 = por %p55, %p56
      %p58 = scmp.ne.s32.totalorder %s44, %s45
      %p59 = scmp.eq.s32.totalorder %s23, 1
      %p60 = por %p58, %p59
      %p62 = scmp.ne.s32.totalorder %s45, %s61
      %p63 = scmp.eq.s32.totalorder %s23, 0
      %p64 = por %p62, %p63
      %s66 = sadd.s32 %s65, 1
      %p69 = scmp.eq.s32.totalorder %s17, 1
      %p70 = scmp.ne.s32.totalorder %s65, %s67
      %p71 = scmp.eq.s32.totalorder %s17, 0
      %p72 = por %p70, %p71
      %p73 = scmp.ne.s32.totalorder %s65, %s67
      %p74 = scmp.eq.s32.totalorder %s22, 1
      %p75 = por %p73, %p74
      %p76 = scmp.ne.s32.totalorder %s67, %s68
      %p77 = scmp.eq.s32.totalorder %s22, 0
      %p78 = por %p76, %p77
      %p79 = scmp.ne.s32.totalorder %s67, %s68
      %p80 = scmp.eq.s32.totalorder %s23, 1
      %p81 = por %p79, %p80
      %p83 = scmp.ne.s32.totalorder %s68, %s82
      %p84 = scmp.eq.s32.totalorder %s23, 0
      %p85 = por %p83, %p84
      %s87 = sadd.s32 %s86, 1
      %p90 = scmp.eq.s32.totalorder %s17, 1
      %p91 = scmp.ne.s32.totalorder %s86, %s88
      %p92 = scmp.eq.s32.totalorder %s17, 0
      %p93 = por %p91, %p92
      %p94 = scmp.ne.s32.totalorder %s86, %s88
      %p95 = scmp.eq.s32.totalorder %s22, 1
      %p96 = por %p94, %p95
      %p97 = scmp.ne.s32.totalorder %s88, %s89
      %p98 = scmp.eq.s32.totalorder %s22, 0
      %p99 = por %p97, %p98
      %p100 = scmp.ne.s32.totalorder %s88, %s89
      %p101 = scmp.eq.s32.totalorder %s23, 1
      %p102 = por %p100, %p101
      %p104 = scmp.ne.s32.totalorder %s89, %s103
      %p105 = scmp.eq.s32.totalorder %s23, 0
      %p106 = por %p104, %p105
      %s108 = sadd.s32 %s107, 1
      %p111 = scmp.eq.s32.totalorder %s17, 1
      %p112 = scmp.ne.s32.totalorder %s107, %s109
      %p113 = scmp.eq.s32.totalorder %s17, 0
      %p114 = por %p112, %p113
      %p115 = scmp.ne.s32.totalorder %s107, %s109
      %p116 = scmp.eq.s32.totalorder %s22, 1
      %p117 = por %p115, %p116
      %p118 = scmp.ne.s32.totalorder %s109, %s110
      %p119 = scmp.eq.s32.totalorder %s22, 0
      %p120 = por %p118, %p119
      %p121 = scmp.ne.s32.totalorder %s109, %s110
      %p122 = scmp.eq.s32.totalorder %s23, 1
      %p123 = por %p121, %p122
      %p125 = scmp.ne.s32.totalorder %s110, %s124
      %p126 = scmp.eq.s32.totalorder %s23, 0
      %p127 = por %p125, %p126
      %s128 = ssub.s32 %s24, %s36
      %s129 = ssub.s32 %s25, %s32
      %s130 = sor.u32 %s128, %s129
      %p131 = scmp.eq.s32.totalorder %s130, 0
      %s133 = sadd.s32 %s132, 1
      %s134 = scalar_select %p131, %s132, %s133
      %p137 = pneg %p131
      %p138 = scmp.eq.s32.totalorder %s17, 1
      %p139 = por %p137, %p138
      %p140 = scmp.ne.s32.totalorder %s132, %s135
      %p141 = scmp.eq.s32.totalorder %s17, 0
      %p142 = por %p140, %p141
      %p143 = scmp.ne.s32.totalorder %s132, %s135
      %p144 = scmp.eq.s32.totalorder %s22, 1
      %p145 = por %p143, %p144
      %p146 = scmp.ne.s32.totalorder %s135, %s136
      %p147 = scmp.eq.s32.totalorder %s22, 0
      %p148 = por %p146, %p147
      %p149 = scmp.ne.s32.totalorder %s135, %s136
      %p150 = scmp.eq.s32.totalorder %s23, 1
      %p151 = por %p149, %p150
      %p153 = scmp.ne.s32.totalorder %s136, %s152
      %p154 = scmp.eq.s32.totalorder %s23, 0
      %p155 = por %p153, %p154
      %s156 = ssub.s32 %s24, %s36
      %s157 = ssub.s32 %s25, %s32
      %s158 = sor.u32 %s156, %s157
      %p159 = scmp.eq.s32.totalorder %s158, 0
      %s161 = sadd.s32 %s160, 1
      %s162 = scalar_select %p159, %s160, %s161
      %p165 = pneg %p159
      %p166 = scmp.eq.s32.totalorder %s17, 1
      %p167 = por %p165, %p166
      %p168 = scmp.ne.s32.totalorder %s160, %s163
      %p169 = scmp.eq.s32.totalorder %s17, 0
      %p170 = por %p168, %p169
      %p171 = scmp.ne.s32.totalorder %s160, %s163
      %p172 = scmp.eq.s32.totalorder %s22, 1
      %p173 = por %p171, %p172
      %p174 = scmp.ne.s32.totalorder %s163, %s164
      %p175 = scmp.eq.s32.totalorder %s22, 0
      %p176 = por %p174, %p175
      %p177 = scmp.ne.s32.totalorder %s163, %s164
      %p178 = scmp.eq.s32.totalorder %s23, 1
      %p179 = por %p177, %p178
      %p181 = scmp.ne.s32.totalorder %s164, %s180
      %p182 = scmp.eq.s32.totalorder %s23, 0
      %p183 = por %p181, %p182
      %s184 = ssub.s32 %s24, %s36
      %s185 = ssub.s32 %s25, %s32
      %s186 = sor.u32 %s184, %s185
      %p187 = scmp.eq.s32.totalorder %s186, 0
      %s189 = sadd.s32 %s188, 1
      %s190 = scalar_select %p187, %s188, %s189
      %p193 = pneg %p187
      %p194 = scmp.eq.s32.totalorder %s17, 1
      %p195 = por %p193, %p194
      %p196 = scmp.ne.s32.totalorder %s188, %s191
      %p197 = scmp.eq.s32.totalorder %s17, 0
      %p198 = por %p196, %p197
      %p199 = scmp.ne.s32.totalorder %s188, %s191
      %p200 = scmp.eq.s32.totalorder %s22, 1
      %p201 = por %p199, %p200
      %p202 = scmp.ne.s32.totalorder %s191, %s192
      %p203 = scmp.eq.s32.totalorder %s22, 0
      %p204 = por %p202, %p203
      %p205 = scmp.ne.s32.totalorder %s191, %s192
      %p206 = scmp.eq.s32.totalorder %s23, 1
      %p207 = por %p205, %p206
      %p209 = scmp.ne.s32.totalorder %s192, %s208
      %p210 = scmp.eq.s32.totalorder %s23, 0
      %p211 = por %p209, %p210
      %p212 = scmp.le.s32.totalorder 1, %s17
      %p213 = scmp.lt.s32.totalorder %s17, 3
      %p214 = pnand %p212, %p213
      %p215 = pneg %p214
      // Predicated region
      $region9: #{tpu_custom_call.1} parent=5 // pred_check
        _
      $region10: #{tpu_custom_call.1} parent=5 // pred_check_branch
        %217 = sbr.rel (%p214) target = $region12
      $region11: #{tpu_custom_call.1} parent=5 // pred_region
        %s218 = ssub.s32 %s17, 1
        // Predicated region
        $region13: #{tpu_custom_call.1} parent=11 // pred_check
          %p219 = pneg %p78
        $region14: #{tpu_custom_call.1} parent=11 // pred_check_branch
          %221 = sbr.rel (%p219) target = $region16
        $region15: #{tpu_custom_call.1} parent=11 // pred_region
          %s223 = ssub.s32 256, 256
          %224 = vsyncadd [#allocation5], %s223
          %s225 = sshll.u32 [#allocation4], 4
          %s226 = int_to_ptr.vmem [resolvable:$true] %s225
          %231 = dma.hbm_to_vmem [thread:$0]  %s1, 256, %s226, [#allocation5], 128, 128, 8
        $region16: #{tpu_custom_call.1} parent=11 // pred_fallthru
          _
        // Predicated region
        $region17: #{tpu_custom_call.1} parent=11 // pred_check
          %p232 = pneg %p99
        $region18: #{tpu_custom_call.1} parent=11 // pred_check_branch
          %234 = sbr.rel (%p232) target = $region20
        $region19: #{tpu_custom_call.1} parent=11 // pred_region
          _
        $region20: #{tpu_custom_call.1} parent=11 // pred_fallthru
          _
        // Predicated region
        $region21: #{tpu_custom_call.1} parent=11 // pred_check
          %p235 = pneg %p120
        $region22: #{tpu_custom_call.1} parent=11 // pred_check_branch
          %237 = sbr.rel (%p235) target = $region24
        $region23: #{tpu_custom_call.1} parent=11 // pred_region
          _
        $region24: #{tpu_custom_call.1} parent=11 // pred_fallthru
          _
      $region12: #{tpu_custom_call.1} parent=5 // pred_fallthru
        _
      %p238 = scmp.lt.s32.totalorder %s17, 2
      // Predicated region
      $region25: #{tpu_custom_call.1} parent=5 // pred_check
        %p239 = pneg %p238
      $region26: #{tpu_custom_call.1} parent=5 // pred_check_branch
        %241 = sbr.rel (%p239) target = $region28
      $region27: #{tpu_custom_call.1} parent=5 // pred_region
        // Predicated region
        $region29: #{tpu_custom_call.1} parent=27 // pred_check
          %p242 = pneg %p51
        $region30: #{tpu_custom_call.1} parent=27 // pred_check_branch
          %244 = sbr.rel (%p242) target = $region32
        $region31: #{tpu_custom_call.1} parent=27 // pred_region
          %s245 = sand.u32 %s41, 1
          %s246 = scalar_lea.sflag [#allocation3], %s245
          %s247 = sand.u32 %s41, 1
          %s248 = smul.addr %s247, 32
          %s249 = scalar_lea.vmem [#allocation2], %s248
          %s250 = smul.u32 2, %s25
          %s252 = ssub.s32 512, 512
          %253 = vsyncadd %s246, %s252
          %s254 = smul.addr %s24, 4
          %s255 = sadd.s32 %s250, %s254
          %s256 = smul.addr %s255, 128
          %s257 = scalar_lea.hbm %s0, %s256
          %s258 = sshll.u32 %s249, 4
          %s259 = int_to_ptr.vmem [resolvable:$true] %s258
          %264 = dma.hbm_to_vmem [thread:$0]  %s257, 512, %s259, %s246, 256, 256, 16
        $region32: #{tpu_custom_call.1} parent=27 // pred_fallthru
          _
      $region28: #{tpu_custom_call.1} parent=5 // pred_fallthru
        _
      %p265 = scmp.le.s32.totalorder 1, %s17
      %p266 = scmp.lt.s32.totalorder %s17, 3
      %p267 = pnand %p265, %p266
      %p268 = pneg %p267
      // Predicated region
      $region33: #{tpu_custom_call.1} parent=5 // pred_check
        _
      $region34: #{tpu_custom_call.1} parent=5 // pred_check_branch
        %270 = sbr.rel (%p267) target = $region36
      $region35: #{tpu_custom_call.1} parent=5 // pred_region
        %s271 = ssub.s32 %s17, 1
        %s272 = sand.u32 %s44, 1
        %s273 = scalar_lea.sflag [#allocation3], %s272
        %s274 = sand.u32 %s44, 1
        %s275 = smul.addr %s274, 32
        %s276 = scalar_lea.vmem [#allocation2], %s275
        // Predicated region
        $region37: #{tpu_custom_call.1} parent=35 // pred_check
          %p277 = pneg %p57
        $region38: #{tpu_custom_call.1} parent=35 // pred_check_branch
          %279 = sbr.rel (%p277) target = $region40
        $region39: #{tpu_custom_call.1} parent=35 // pred_region
          %280 = dma.done %s273, 512
        $region40: #{tpu_custom_call.1} parent=35 // pred_fallthru
          _
        // Predicated region
        $region41: #{tpu_custom_call.1} parent=35 // pred_check
          %p281 = pneg %p78
        $region42: #{tpu_custom_call.1} parent=35 // pred_check_branch
          %283 = sbr.rel (%p281) target = $region44
        $region43: #{tpu_custom_call.1} parent=35 // pred_region
          %284 = dma.done [#allocation5], 256
        $region44: #{tpu_custom_call.1} parent=35 // pred_fallthru
          _
        %s285 = sand.u32 %s44, 1
        %s286 = scalar_lea.sflag [#allocation3], %s285
        %s287 = sand.u32 %s44, 1
        %s288 = smul.addr %s287, 32
        %s289 = scalar_lea.vmem [#allocation2], %s288
        %p290 = pneg %p57
        %p291 = pneg %p54
        %p292 = pneg %p78
        %p293 = pneg %p75
        %p294 = pneg %p99
        %p295 = pneg %p96
        %p296 = pneg %p120
        %p297 = pneg %p117
        %p298 = pneg %p148
        %p299 = pneg %p145
        %s300 = smul.u32 32, %s27
        %p301 = scmp.lt.s32.totalorder %s26, 1
        %s302 = scalar_select %p301, %s26, 1
        %p303 = scmp.lt.s32.totalorder %s300, 31
        %s304 = scalar_select %p303, %s300, 31
        %s305 = smul.addr %s302, 96
        %s306 = sadd.s32 %s304, %s305
        %s307 = smul.addr %s306, 8
        %s308 = scalar_lea.vmem %s4, %s307
        %p309 = pneg %p176
        %p310 = pneg %p173
        %s311 = smul.u32 32, %s27
        %p312 = scmp.lt.s32.totalorder %s26, 1
        %s313 = scalar_select %p312, %s26, 1
        %p314 = scmp.lt.s32.totalorder %s311, 31
        %s315 = scalar_select %p314, %s311, 31
        %s316 = smul.addr %s313, 96
        %s317 = sadd.s32 %s315, %s316
        %s318 = smul.addr %s317, 8
        %s319 = scalar_lea.vmem %s5, %s318
        %p320 = pneg %p204
        %p321 = pneg %p201
        %s322 = smul.u32 32, %s27
        %p323 = scmp.lt.s32.totalorder %s26, 1
        %s324 = scalar_select %p323, %s26, 1
        %p325 = scmp.lt.s32.totalorder %s322, 31
        %s326 = scalar_select %p325, %s322, 31
        %s327 = smul.addr %s324, 96
        %s328 = sadd.s32 %s326, %s327
        %s329 = smul.addr %s328, 8
        %s330 = scalar_lea.vmem %s6, %s329
        %s331 = smul.u32 2, %s27
        %s332 = smul.u32 32, %s27
        %p333 = scmp.lt.s32.totalorder %s26, 1
        %s334 = scalar_select %p333, %s26, 1
        %p335 = scmp.lt.s32.totalorder %s332, 31
        %s336 = scalar_select %p335, %s332, 31
        %s337 = smul.addr %s334, 96
        %s338 = sadd.s32 %s336, %s337
        %s339 = smul.addr %s338, 8
        %s340 = scalar_lea.vmem %s4, %s339
        %s341 = smul.u32 32, %s27
        %s342 = smul.u32 32, %s27
        %p343 = scmp.lt.s32.totalorder %s26, 1
        %s344 = scalar_select %p343, %s26, 1
        %p345 = scmp.lt.s32.totalorder %s342, 31
        %s346 = scalar_select %p345, %s342, 31
        %s347 = smul.addr %s344, 96
        %s348 = sadd.s32 %s346, %s347
        %s349 = smul.addr %s348, 8
        %s350 = scalar_lea.vmem %s5, %s349
        %s351 = smul.u32 32, %s27
        %s352 = smul.u32 32, %s27
        %p353 = scmp.lt.s32.totalorder %s26, 1
        %s354 = scalar_select %p353, %s26, 1
        %p355 = scmp.lt.s32.totalorder %s352, 31
        %s356 = scalar_select %p355, %s352, 31
        %s357 = smul.addr %s354, 96
        %s358 = sadd.s32 %s356, %s357
        %s359 = smul.addr %s358, 8
        %s360 = scalar_lea.vmem %s6, %s359
        %s361 = smul.u32 32, %s27
        %v362 = vld [vmem:[%s276] sm:$0xff]
        %v363 = vld [vmem:[%s276 + $0x8] sm:$0xff]
        %v364 = vld [vmem:[%s276 + $0x10] sm:$0xff]
        %v365 = vld [vmem:[%s276 + $0x18] sm:$0xff]
        %v366 = vld [vmem:[#allocation4] sm:$0xff]
        %v367 = vld [vmem:[#allocation4 + $0x8] sm:$0xff]
        %v368 = vld [vmem:[%s2] sm:$0x1]
        %v370 = vlaneseq
        %v371 = vshrl.u32 %v370, 7
        %v372 = vsub.s32 0, %v371
        %v373 = vrot.slane %v368, %v372
        %375 = vxpose.xlu0.b32.start [1/16] %v362, 128
        %376 = vxpose.xlu0.b32.cont [2/16] %v364, 128
        %377 = vxpose.xlu0.b32.cont [3/16] 0.0, 128
        %378 = vxpose.xlu0.b32.cont [4/16] 0.0, 128
        %379 = vxpose.xlu0.b32.cont [5/16] 0.0, 128
        %380 = vxpose.xlu0.b32.cont [6/16] 0.0, 128
        %381 = vxpose.xlu0.b32.cont [7/16] 0.0, 128
        %382 = vxpose.xlu0.b32.cont [8/16] 0.0, 128
        %383 = vxpose.xlu0.b32.cont [9/16] 0.0, 128
        %384 = vxpose.xlu0.b32.cont [10/16] 0.0, 128
        %385 = vxpose.xlu0.b32.cont [11/16] 0.0, 128
        %386 = vxpose.xlu0.b32.cont [12/16] 0.0, 128
        %387 = vxpose.xlu0.b32.cont [13/16] 0.0, 128
        %388 = vxpose.xlu0.b32.cont [14/16] 0.0, 128
        %389 = vxpose.xlu0.b32.cont [15/16] 0.0, 128
        %390 = vxpose.xlu0.b32.end [16/16] 0.0, 128
        %v391 = vpop.trf.xlu0
        %v392 = vpop.trf.xlu0
        %v393 = vpop.trf.xlu0
        %v394 = vpop.trf.xlu0
        %v395 = vpop.trf.xlu0
        %v396 = vpop.trf.xlu0
        %v397 = vpop.trf.xlu0
        %v398 = vpop.trf.xlu0
        %v399 = vpop.trf.xlu0
        %v400 = vpop.trf.xlu0
        %v401 = vpop.trf.xlu0
        %v402 = vpop.trf.xlu0
        %v403 = vpop.trf.xlu0
        %v404 = vpop.trf.xlu0
        %v405 = vpop.trf.xlu0
        %v406 = vpop.trf.xlu0
        %407 = vxpose.xlu0.b32.start [1/16] %v363, 128
        %408 = vxpose.xlu0.b32.cont [2/16] %v365, 128
        %409 = vxpose.xlu0.b32.cont [3/16] 0.0, 128
        %410 = vxpose.xlu0.b32.cont [4/16] 0.0, 128
        %411 = vxpose.xlu0.b32.cont [5/16] 0.0, 128
        %412 = vxpose.xlu0.b32.cont [6/16] 0.0, 128
        %413 = vxpose.xlu0.b32.cont [7/16] 0.0, 128
        %414 = vxpose.xlu0.b32.cont [8/16] 0.0, 128
        %415 = vxpose.xlu0.b32.cont [9/16] 0.0, 128
        %416 = vxpose.xlu0.b32.cont [10/16] 0.0, 128
        %417 = vxpose.xlu0.b32.cont [11/16] 0.0, 128
        %418 = vxpose.xlu0.b32.cont [12/16] 0.0, 128
        %419 = vxpose.xlu0.b32.cont [13/16] 0.0, 128
        %420 = vxpose.xlu0.b32.cont [14/16] 0.0, 128
        %421 = vxpose.xlu0.b32.cont [15/16] 0.0, 128
        %422 = vxpose.xlu0.b32.end [16/16] 0.0, 128
        %v423 = vpop.trf.xlu0
        %v424 = vpop.trf.xlu0
        %v425 = vpop.trf.xlu0
        %v426 = vpop.trf.xlu0
        %v427 = vpop.trf.xlu0
        %v428 = vpop.trf.xlu0
        %v429 = vpop.trf.xlu0
        %v430 = vpop.trf.xlu0
        %v431 = vpop.trf.xlu0
        %v432 = vpop.trf.xlu0
        %v433 = vpop.trf.xlu0
        %v434 = vpop.trf.xlu0
        %v435 = vpop.trf.xlu0
        %v436 = vpop.trf.xlu0
        %v437 = vpop.trf.xlu0
        %v438 = vpop.trf.xlu0
        %vm439 = vcmask 130048
        %v441 = vsel %vm439, %v391, 0
        %v444 = vsel %vm439, %v392, 0
        %v447 = vsel %vm439, %v393, 0
        %v450 = vsel %vm439, %v394, 0
        %v453 = vsel %vm439, %v395, 0
        %v456 = vsel %vm439, %v396, 0
        %v459 = vsel %vm439, %v397, 0
        %v462 = vsel %vm439, %v398, 0
        %v465 = vsel %vm439, %v399, 0
        %v468 = vsel %vm439, %v400, 0
        %v471 = vsel %vm439, %v401, 0
        %v474 = vsel %vm439, %v402, 0
        %v477 = vsel %vm439, %v403, 0
        %v480 = vsel %vm439, %v404, 0
        %v483 = vsel %vm439, %v405, 0
        %v486 = vsel %vm439, %v406, 0
        %v489 = vsel %vm439, %v423, 0
        %v492 = vsel %vm439, %v424, 0
        %v495 = vsel %vm439, %v425, 0
        %v498 = vsel %vm439, %v426, 0
        %v501 = vsel %vm439, %v427, 0
        %v504 = vsel %vm439, %v428, 0
        %v507 = vsel %vm439, %v429, 0
        %v510 = vsel %vm439, %v430, 0
        %v513 = vsel %vm439, %v431, 0
        %v516 = vsel %vm439, %v432, 0
        %v519 = vsel %vm439, %v433, 0
        %v522 = vsel %vm439, %v434, 0
        %v525 = vsel %vm439, %v435, 0
        %v528 = vsel %vm439, %v436, 0
        %v531 = vsel %vm439, %v437, 0
        %v534 = vsel %vm439, %v438, 0
        %536 = vmatprep.subr.mxu0 0.0
        %v537 = vand.u32 %v366, 4294901760
        %538 = vmatpush1.msra.mxu0 %v537
        %539 = vmatprep.subr.mxu0 0.0
        %v540 = vand.u32 %v367, 4294901760
        %541 = vmatpush1.msra.mxu0 %v540
        %542 = vmatprep.subr.mxu0 0.0
        %543 = vmatpush1.msra.mxu0 0.0
        %544 = vmatprep.subr.mxu0 0.0
        %545 = vmatpush1.msra.mxu0 0.0
        %546 = vmatprep.subr.mxu0 0.0
        %547 = vmatpush1.msra.mxu0 0.0
        %548 = vmatprep.subr.mxu0 0.0
        %549 = vmatpush1.msra.mxu0 0.0
        %550 = vmatprep.subr.mxu0 0.0
        %551 = vmatpush1.msra.mxu0 0.0
        %552 = vmatprep.subr.mxu0 0.0
        %553 = vmatpush1.msra.mxu0 0.0
        %554 = vmatprep.subr.mxu0 0.0
        %555 = vmatpush1.msra.mxu0 0.0
        %556 = vmatprep.subr.mxu0 0.0
        %557 = vmatpush1.msra.mxu0 0.0
        %558 = vmatprep.subr.mxu0 0.0
        %559 = vmatpush1.msra.mxu0 0.0
        %560 = vmatprep.subr.mxu0 0.0
        %561 = vmatpush1.msra.mxu0 0.0
        %562 = vmatprep.subr.mxu0 0.0
        %563 = vmatpush1.msra.mxu0 0.0
        %564 = vmatprep.subr.mxu0 0.0
        %565 = vmatpush1.msra.mxu0 0.0
        %566 = vmatprep.subr.mxu0 0.0
        %567 = vmatpush1.msra.mxu0 0.0
        %568 = vmatprep.subr.mxu0 0.0
        %569 = vmatpush1.msra.mxu0 0.0
        %570 = vmatprep.subr.mxu0 0.0
        %571 = vmatpush1.msra.mxu0 0.0
        %572 = vmatprep.subr.mxu0 0.0
        %573 = vmatpush1.msra.mxu0 0.0
        %574 = vmatprep.subr.mxu0 0.0
        %575 = vmatpush1.msra.mxu0 0.0
        %576 = vmatprep.subr.mxu0 0.0
        %577 = vmatpush1.msra.mxu0 0.0
        %578 = vmatprep.subr.mxu0 0.0
        %579 = vmatpush1.msra.mxu0 0.0
        %580 = vmatprep.subr.mxu0 0.0
        %581 = vmatpush1.msra.mxu0 0.0
        %582 = vmatprep.subr.mxu0 0.0
        %583 = vmatpush1.msra.mxu0 0.0
        %584 = vmatprep.subr.mxu0 0.0
        %585 = vmatpush1.msra.mxu0 0.0
        %586 = vmatprep.subr.mxu0 0.0
        %587 = vmatpush1.msra.mxu0 0.0
        %588 = vmatprep.subr.mxu0 0.0
        %589 = vmatpush1.msra.mxu0 0.0
        %590 = vmatprep.subr.mxu0 0.0
        %591 = vmatpush1.msra.mxu0 0.0
        %592 = vmatprep.subr.mxu0 0.0
        %593 = vmatpush1.msra.mxu0 0.0
        %594 = vmatprep.subr.mxu0 0.0
        %595 = vmatpush1.msra.mxu0 0.0
        %596 = vmatprep.subr.mxu0 0.0
        %597 = vmatpush1.msra.mxu0 0.0
        %598 = vmatprep.subr.mxu0 0.0
        %599 = vmatpush1.msra.mxu0 0.0
        %600 = vmatprep.subr.mxu0 0.0
        %601 = vmatpush1.msra.mxu0 0.0
        %602 = vmatprep.mubr.f32.mxu0 0.0
        %v603 = vand.u32 %v441, 4294901760
        %v604 = vsub.f32 %v441, %v603
        %v605 = vand.u32 %v604, 4294901760
        %v606 = vsub.f32 %v604, %v605
        %v607 = vand.u32 %v606, 4294901760
        %608 = vmatmul.mubr.f32.gmra.mrb[0].mxu0 %v607
        %v609 = vpop.f32.mrb[0].mxu0
        %v610 = vadd.f32 %v373, %v609
        %v611 = vpop.f32.mrb[0].mxu0
        %612 = vmatprep.mubr.f32.mxu0 0.0
        %v613 = vand.u32 %v444, 4294901760
        %v614 = vsub.f32 %v444, %v613
        %v615 = vand.u32 %v614, 4294901760
        %v616 = vsub.f32 %v614, %v615
        %v617 = vand.u32 %v616, 4294901760
        %618 = vmatmul.mubr.f32.gmra.mrb[0].mxu0 %v617
        %v619 = vpop.f32.mrb[0].mxu0
        %v620 = vadd.f32 %v373, %v619
        %v621 = vpop.f32.mrb[0].mxu0
        %622 = vmatprep.mubr.f32.mxu0 0.0
        %v623 = vand.u32 %v447, 4294901760
        %v624 = vsub.f32 %v447, %v623
        %v625 = vand.u32 %v624, 4294901760
        %v626 = vsub.f32 %v624, %v625
        %v627 = vand.u32 %v626, 4294901760
        %628 = vmatmul.mubr.f32.gmra.mrb[0].mxu0 %v627
        %v629 = vpop.f32.mrb[0].mxu0
        %v630 = vadd.f32 %v373, %v629
        %v631 = vpop.f32.mrb[0].mxu0
        %632 = vmatprep.mubr.f32.mxu0 0.0
        %v633 = vand.u32 %v450, 4294901760
        %v634 = vsub.f32 %v450, %v633
        %v635 = vand.u32 %v634, 4294901760
        %v636 = vsub.f32 %v634, %v635
        %v637 = vand.u32 %v636, 4294901760
        %638 = vmatmul.mubr.f32.gmra.mrb[0].mxu0 %v637
        %v639 = vpop.f32.mrb[0].mxu0
        %v640 = vadd.f32 %v373, %v639
        %v641 = vpop.f32.mrb[0].mxu0
        %642 = vmatprep.mubr.f32.mxu0 0.0
        %v643 = vand.u32 %v453, 4294901760
        %v644 = vsub.f32 %v453, %v643
        %v645 = vand.u32 %v644, 4294901760
        %v646 = vsub.f32 %v644, %v645
        %v647 = vand.u32 %v646, 4294901760
        %648 = vmatmul.mubr.f32.gmra.mrb[0].mxu0 %v647
        %v649 = vpop.f32.mrb[0].mxu0
        %v650 = vadd.f32 %v373, %v649
        %v651 = vpop.f32.mrb[0].mxu0
        %652 = vmatprep.mubr.f32.mxu0 0.0
        %v653 = vand.u32 %v456, 4294901760
        %v654 = vsub.f32 %v456, %v653
        %v655 = vand.u32 %v654, 4294901760
        %v656 = vsub.f32 %v654, %v655
        %v657 = vand.u32 %v656, 4294901760
        %658 = vmatmul.mubr.f32.gmra.mrb[0].mxu0 %v657
        %v659 = vpop.f32.mrb[0].mxu0
        %v660 = vadd.f32 %v373, %v659
        %v661 = vpop.f32.mrb[0].mxu0
        %662 = vmatprep.mubr.f32.mxu0 0.0
        %v663 = vand.u32 %v459, 4294901760
        %v664 = vsub.f32 %v459, %v663
        %v665 = vand.u32 %v664, 4294901760
        %v666 = vsub.f32 %v664, %v665
        %v667 = vand.u32 %v666, 4294901760
        %668 = vmatmul.mubr.f32.gmra.mrb[0].mxu0 %v667
        %v669 = vpop.f32.mrb[0].mxu0
        %v670 = vadd.f32 %v373, %v669
        %v671 = vpop.f32.mrb[0].mxu0
        %672 = vmatprep.mubr.f32.mxu0 0.0
        %v673 = vand.u32 %v462, 4294901760
        %v674 = vsub.f32 %v462, %v673
        %v675 = vand.u32 %v674, 4294901760
        %v676 = vsub.f32 %v674, %v675
        %v677 = vand.u32 %v676, 4294901760
        %678 = vmatmul.mubr.f32.gmra.mrb[0].mxu0 %v677
        %v679 = vpop.f32.mrb[0].mxu0
        %v680 = vadd.f32 %v373, %v679
        %v681 = vpop.f32.mrb[0].mxu0
        %682 = vmatprep.mubr.f32.mxu0 0.0
        %v683 = vand.u32 %v465, 4294901760
        %v684 = vsub.f32 %v465, %v683
        %v685 = vand.u32 %v684, 4294901760
        %v686 = vsub.f32 %v684, %v685
        %v687 = vand.u32 %v686, 4294901760
        %688 = vmatmul.mubr.f32.gmra.mrb[0].mxu0 %v687
        %v689 = vpop.f32.mrb[0].mxu0
        %v690 = vadd.f32 %v373, %v689
        %v691 = vpop.f32.mrb[0].mxu0
        %692 = vmatprep.mubr.f32.mxu0 0.0
        %v693 = vand.u32 %v468, 4294901760
        %v694 = vsub.f32 %v468, %v693
        %v695 = vand.u32 %v694, 4294901760
        %v696 = vsub.f32 %v694, %v695
        %v697 = vand.u32 %v696, 4294901760
        %698 = vmatmul.mubr.f32.gmra.mrb[0].mxu0 %v697
        %v699 = vpop.f32.mrb[0].mxu0
        %v700 = vadd.f32 %v373, %v699
        %v701 = vpop.f32.mrb[0].mxu0
        %702 = vmatprep.mubr.f32.mxu0 0.0
        %v703 = vand.u32 %v471, 4294901760
        %v704 = vsub.f32 %v471, %v703
        %v705 = vand.u32 %v704, 4294901760
        %v706 = vsub.f32 %v704, %v705
        %v707 = vand.u32 %v706, 4294901760
        %708 = vmatmul.mubr.f32.gmra.mrb[0].mxu0 %v707
        %v709 = vpop.f32.mrb[0].mxu0
        %v710 = vadd.f32 %v373, %v709
        %v711 = vpop.f32.mrb[0].mxu0
        %712 = vmatprep.mubr.f32.mxu0 0.0
        %v713 = vand.u32 %v474, 4294901760
        %v714 = vsub.f32 %v474, %v713
        %v715 = vand.u32 %v714, 4294901760
        %v716 = vsub.f32 %v714, %v715
        %v717 = vand.u32 %v716, 4294901760
        %718 = vmatmul.mubr.f32.gmra.mrb[0].mxu0 %v717
        %v719 = vpop.f32.mrb[0].mxu0
        %v720 = vadd.f32 %v373, %v719
        %v721 = vpop.f32.mrb[0].mxu0
        %722 = vmatprep.mubr.f32.mxu0 0.0
        %v723 = vand.u32 %v477, 4294901760
        %v724 = vsub.f32 %v477, %v723
        %v725 = vand.u32 %v724, 4294901760
        %v726 = vsub.f32 %v724, %v725
        %v727 = vand.u32 %v726, 4294901760
        %728 = vmatmul.mubr.f32.gmra.mrb[0].mxu0 %v727
        %v729 = vpop.f32.mrb[0].mxu0
        %v730 = vadd.f32 %v373, %v729
        %v731 = vpop.f32.mrb[0].mxu0
        %732 = vmatprep.mubr.f32.mxu0 0.0
        %v733 = vand.u32 %v480, 4294901760
        %v734 = vsub.f32 %v480, %v733
        %v735 = vand.u32 %v734, 4294901760
        %v736 = vsub.f32 %v734, %v735
        %v737 = vand.u32 %v736, 4294901760
        %738 = vmatmul.mubr.f32.gmra.mrb[0].mxu0 %v737
        %v739 = vpop.f32.mrb[0].mxu0
        %v740 = vadd.f32 %v373, %v739
        %v741 = vpop.f32.mrb[0].mxu0
        %742 = vmatprep.mubr.f32.mxu0 0.0
        %v743 = vand.u32 %v483, 4294901760
        %v744 = vsub.f32 %v483, %v743
        %v745 = vand.u32 %v744, 4294901760
        %v746 = vsub.f32 %v744, %v745
        %v747 = vand.u32 %v746, 4294901760
        %748 = vmatmul.mubr.f32.gmra.mrb[0].mxu0 %v747
        %v749 = vpop.f32.mrb[0].mxu0
        %v750 = vadd.f32 %v373, %v749
        %v751 = vpop.f32.mrb[0].mxu0
        %752 = vmatprep.mubr.f32.mxu0 0.0
        %v753 = vand.u32 %v486, 4294901760
        %v754 = vsub.f32 %v486, %v753
        %v755 = vand.u32 %v754, 4294901760
        %v756 = vsub.f32 %v754, %v755
        %v757 = vand.u32 %v756, 4294901760
        %758 = vmatmul.mubr.f32.gmra.mrb[0].mxu0 %v757
        %v759 = vpop.f32.mrb[0].mxu0
        %v760 = vadd.f32 %v373, %v759
        %v761 = vpop.f32.mrb[0].mxu0
        %762 = vmatprep.mubr.f32.mxu0 0.0
        %v763 = vand.u32 %v489, 4294901760
        %v764 = vsub.f32 %v489, %v763
        %v765 = vand.u32 %v764, 4294901760
        %v766 = vsub.f32 %v764, %v765
        %v767 = vand.u32 %v766, 4294901760
        %768 = vmatmul.mubr.f32.gmra.mrb[0].mxu0 %v767
        %v769 = vpop.f32.mrb[0].mxu0
        %v770 = vadd.f32 %v373, %v769
        %v771 = vpop.f32.mrb[0].mxu0
        %772 = vmatprep.mubr.f32.mxu0 0.0
        %v773 = vand.u32 %v492, 4294901760
        %v774 = vsub.f32 %v492, %v773
        %v775 = vand.u32 %v774, 4294901760
        %v776 = vsub.f32 %v774, %v775
        %v777 = vand.u32 %v776, 4294901760
        %778 = vmatmul.mubr.f32.gmra.mrb[0].mxu0 %v777
        %v779 = vpop.f32.mrb[0].mxu0
        %v780 = vadd.f32 %v373, %v779
        %v781 = vpop.f32.mrb[0].mxu0
        %782 = vmatprep.mubr.f32.mxu0 0.0
        %v783 = vand.u32 %v495, 4294901760
        %v784 = vsub.f32 %v495, %v783
        %v785 = vand.u32 %v784, 4294901760
        %v786 = vsub.f32 %v784, %v785
        %v787 = vand.u32 %v786, 4294901760
        %788 = vmatmul.mubr.f32.gmra.mrb[0].mxu0 %v787
        %v789 = vpop.f32.mrb[0].mxu0
        %v790 = vadd.f32 %v373, %v789
        %v791 = vpop.f32.mrb[0].mxu0
        %792 = vmatprep.mubr.f32.mxu0 0.0
        %v793 = vand.u32 %v498, 4294901760
        %v794 = vsub.f32 %v498, %v793
        %v795 = vand.u32 %v794, 4294901760
        %v796 = vsub.f32 %v794, %v795
        %v797 = vand.u32 %v796, 4294901760
        %798 = vmatmul.mubr.f32.gmra.mrb[0].mxu0 %v797
        %v799 = vpop.f32.mrb[0].mxu0
        %v800 = vadd.f32 %v373, %v799
        %v801 = vpop.f32.mrb[0].mxu0
        %802 = vmatprep.mubr.f32.mxu0 0.0
        %v803 = vand.u32 %v501, 4294901760
        %v804 = vsub.f32 %v501, %v803
        %v805 = vand.u32 %v804, 4294901760
        %v806 = vsub.f32 %v804, %v805
        %v807 = vand.u32 %v806, 4294901760
        %808 = vmatmul.mubr.f32.gmra.mrb[0].mxu0 %v807
        %v809 = vpop.f32.mrb[0].mxu0
        %v810 = vadd.f32 %v373, %v809
        %v811 = vpop.f32.mrb[0].mxu0
        %812 = vmatprep.mubr.f32.mxu0 0.0
        %v813 = vand.u32 %v504, 4294901760
        %v814 = vsub.f32 %v504, %v813
        %v815 = vand.u32 %v814, 4294901760
        %v816 = vsub.f32 %v814, %v815
        %v817 = vand.u32 %v816, 4294901760
        %818 = vmatmul.mubr.f32.gmra.mrb[0].mxu0 %v817
        %v819 = vpop.f32.mrb[0].mxu0
        %v820 = vadd.f32 %v373, %v819
        %v821 = vpop.f32.mrb[0].mxu0
        %822 = vmatprep.mubr.f32.mxu0 0.0
        %v823 = vand.u32 %v507, 4294901760
        %v824 = vsub.f32 %v507, %v823
        %v825 = vand.u32 %v824, 4294901760
        %v826 = vsub.f32 %v824, %v825
        %v827 = vand.u32 %v826, 4294901760
        %828 = vmatmul.mubr.f32.gmra.mrb[0].mxu0 %v827
        %v829 = vpop.f32.mrb[0].mxu0
        %v830 = vadd.f32 %v373, %v829
        %v831 = vpop.f32.mrb[0].mxu0
        %832 = vmatprep.mubr.f32.mxu0 0.0
        %v833 = vand.u32 %v510, 4294901760
        %v834 = vsub.f32 %v510, %v833
        %v835 = vand.u32 %v834, 4294901760
        %v836 = vsub.f32 %v834, %v835
        %v837 = vand.u32 %v836, 4294901760
        %838 = vmatmul.mubr.f32.gmra.mrb[0].mxu0 %v837
        %v839 = vpop.f32.mrb[0].mxu0
        %v840 = vadd.f32 %v373, %v839
        %v841 = vpop.f32.mrb[0].mxu0
        %842 = vmatprep.mubr.f32.mxu0 0.0
        %v843 = vand.u32 %v513, 4294901760
        %v844 = vsub.f32 %v513, %v843
        %v845 = vand.u32 %v844, 4294901760
        %v846 = vsub.f32 %v844, %v845
        %v847 = vand.u32 %v846, 4294901760
        %848 = vmatmul.mubr.f32.gmra.mrb[0].mxu0 %v847
        %v849 = vpop.f32.mrb[0].mxu0
        %v850 = vadd.f32 %v373, %v849
        %v851 = vpop.f32.mrb[0].mxu0
        %852 = vmatprep.mubr.f32.mxu0 0.0
        %v853 = vand.u32 %v516, 4294901760
        %v854 = vsub.f32 %v516, %v853
        %v855 = vand.u32 %v854, 4294901760
        %v856 = vsub.f32 %v854, %v855
        %v857 = vand.u32 %v856, 4294901760
        %858 = vmatmul.mubr.f32.gmra.mrb[0].mxu0 %v857
        %v859 = vpop.f32.mrb[0].mxu0
        %v860 = vadd.f32 %v373, %v859
        %v861 = vpop.f32.mrb[0].mxu0
        %862 = vmatprep.mubr.f32.mxu0 0.0
        %v863 = vand.u32 %v519, 4294901760
        %v864 = vsub.f32 %v519, %v863
        %v865 = vand.u32 %v864, 4294901760
        %v866 = vsub.f32 %v864, %v865
        %v867 = vand.u32 %v866, 4294901760
        %868 = vmatmul.mubr.f32.gmra.mrb[0].mxu0 %v867
        %v869 = vpop.f32.mrb[0].mxu0
        %v870 = vadd.f32 %v373, %v869
        %v871 = vpop.f32.mrb[0].mxu0
        %872 = vmatprep.mubr.f32.mxu0 0.0
        %v873 = vand.u32 %v522, 4294901760
        %v874 = vsub.f32 %v522, %v873
        %v875 = vand.u32 %v874, 4294901760
        %v876 = vsub.f32 %v874, %v875
        %v877 = vand.u32 %v876, 4294901760
        %878 = vmatmul.mubr.f32.gmra.mrb[0].mxu0 %v877
        %v879 = vpop.f32.mrb[0].mxu0
        %v880 = vadd.f32 %v373, %v879
        %v881 = vpop.f32.mrb[0].mxu0
        %882 = vmatprep.mubr.f32.mxu0 0.0
        %v883 = vand.u32 %v525, 4294901760
        %v884 = vsub.f32 %v525, %v883
        %v885 = vand.u32 %v884, 4294901760
        %v886 = vsub.f32 %v884, %v885
        %v887 = vand.u32 %v886, 4294901760
        %888 = vmatmul.mubr.f32.gmra.mrb[0].mxu0 %v887
        %v889 = vpop.f32.mrb[0].mxu0
        %v890 = vadd.f32 %v373, %v889
        %v891 = vpop.f32.mrb[0].mxu0
        %892 = vmatprep.mubr.f32.mxu0 0.0
        %v893 = vand.u32 %v528, 4294901760
        %v894 = vsub.f32 %v528, %v893
        %v895 = vand.u32 %v894, 4294901760
        %v896 = vsub.f32 %v894, %v895
        %v897 = vand.u32 %v896, 4294901760
        %898 = vmatmul.mubr.f32.gmra.mrb[0].mxu0 %v897
        %v899 = vpop.f32.mrb[0].mxu0
        %v900 = vadd.f32 %v373, %v899
        %v901 = vpop.f32.mrb[0].mxu0
        %902 = vmatprep.mubr.f32.mxu0 0.0
        %v903 = vand.u32 %v531, 4294901760
        %v904 = vsub.f32 %v531, %v903
        %v905 = vand.u32 %v904, 4294901760
        %v906 = vsub.f32 %v904, %v905
        %v907 = vand.u32 %v906, 4294901760
        %908 = vmatmul.mubr.f32.gmra.mrb[0].mxu0 %v907
        %v909 = vpop.f32.mrb[0].mxu0
        %v910 = vadd.f32 %v373, %v909
        %v911 = vpop.f32.mrb[0].mxu0
        %912 = vmatprep.mubr.f32.mxu0 0.0
        %v913 = vand.u32 %v534, 4294901760
        %v914 = vsub.f32 %v534, %v913
        %v915 = vand.u32 %v914, 4294901760
        %v916 = vsub.f32 %v914, %v915
        %v917 = vand.u32 %v916, 4294901760
        %918 = vmatmul.mubr.f32.gmra.mrb[0].mxu0 %v917
        %v919 = vpop.f32.mrb[0].mxu0
        %v920 = vadd.f32 %v373, %v919
        %v921 = vpop.f32.mrb[0].mxu0
        %922 = vdwg.mxu0
        %923 = vmatprep.subr.mxu0 0.0
        %v924 = vand.u32 %v366, 4294901760
        %v925 = vsub.f32 %v366, %v924
        %v926 = vand.u32 %v925, 4294901760
        %v927 = vsub.f32 %v925, %v926
        %v928 = vand.u32 %v927, 4294901760
        %929 = vmatpush1.msra.mxu0 %v928
        %930 = vmatprep.subr.mxu0 0.0
        %v931 = vand.u32 %v367, 4294901760
        %v932 = vsub.f32 %v367, %v931
        %v933 = vand.u32 %v932, 4294901760
        %v934 = vsub.f32 %v932, %v933
        %v935 = vand.u32 %v934, 4294901760
        %936 = vmatpush1.msra.mxu0 %v935
        %937 = vmatprep.subr.mxu0 0.0
        %938 = vmatpush1.msra.mxu0 0.0
        %939 = vmatprep.subr.mxu0 0.0
        %940 = vmatpush1.msra.mxu0 0.0
        %941 = vmatprep.subr.mxu0 0.0
        %942 = vmatpush1.msra.mxu0 0.0
        %943 = vmatprep.subr.mxu0 0.0
        %944 = vmatpush1.msra.mxu0 0.0
        %945 = vmatprep.subr.mxu0 0.0
        %946 = vmatpush1.msra.mxu0 0.0
        %947 = vmatprep.subr.mxu0 0.0
        %948 = vmatpush1.msra.mxu0 0.0
        %949 = vmatprep.subr.mxu0 0.0
        %950 = vmatpush1.msra.mxu0 0.0
        %951 = vmatprep.subr.mxu0 0.0
        %952 = vmatpush1.msra.mxu0 0.0
        %953 = vmatprep.subr.mxu0 0.0
        %954 = vmatpush1.msra.mxu0 0.0
        %955 = vmatprep.subr.mxu0 0.0
        %956 = vmatpush1.msra.mxu0 0.0
        %957 = vmatprep.subr.mxu0 0.0
        %958 = vmatpush1.msra.mxu0 0.0
        %959 = vmatprep.subr.mxu0 0.0
        %960 = vmatpush1.msra.mxu0 0.0
        %961 = vmatprep.subr.mxu0 0.0
        %962 = vmatpush1.msra.mxu0 0.0
        %963 = vmatprep.subr.mxu0 0.0
        %964 = vmatpush1.msra.mxu0 0.0
        %965 = vmatprep.subr.mxu0 0.0
        %966 = vmatpush1.msra.mxu0 0.0
        %967 = vmatprep.subr.mxu0 0.0
        %968 = vmatpush1.msra.mxu0 0.0
        %969 = vmatprep.subr.mxu0 0.0
        %970 = vmatpush1.msra.mxu0 0.0
        %971 = vmatprep.subr.mxu0 0.0
        %972 = vmatpush1.msra.mxu0 0.0
        %973 = vmatprep.subr.mxu0 0.0
        %974 = vmatpush1.msra.mxu0 0.0
        %975 = vmatprep.subr.mxu0 0.0
        %976 = vmatpush1.msra.mxu0 0.0
        %977 = vmatprep.subr.mxu0 0.0
        %978 = vmatpush1.msra.mxu0 0.0
        %979 = vmatprep.subr.mxu0 0.0
        %980 = vmatpush1.msra.mxu0 0.0
        %981 = vmatprep.subr.mxu0 0.0
        %982 = vmatpush1.msra.mxu0 0.0
        %983 = vmatprep.subr.mxu0 0.0
        %984 = vmatpush1.msra.mxu0 0.0
        %985 = vmatprep.subr.mxu0 0.0
        %986 = vmatpush1.msra.mxu0 0.0
        %987 = vmatprep.subr.mxu0 0.0
        %988 = vmatpush1.msra.mxu0 0.0
        %989 = vmatprep.subr.mxu0 0.0
        %990 = vmatpush1.msra.mxu0 0.0
        %991 = vmatprep.subr.mxu0 0.0
        %992 = vmatpush1.msra.mxu0 0.0
        %993 = vmatprep.subr.mxu0 0.0
        %994 = vmatpush1.msra.mxu0 0.0
        %995 = vmatprep.subr.mxu0 0.0
        %996 = vmatpush1.msra.mxu0 0.0
        %997 = vmatprep.mubr.f32.mxu0 0.0
        %v998 = vand.u32 %v441, 4294901760
        %999 = vmatmul.mubr.f32.gmra.mrb[0].mxu0 %v998
        %v1000 = vpop.f32.mrb[0].mxu0
        %v1001 = vadd.f32 %v610, %v1000
        %v1002 = vpop.f32.mrb[0].mxu0
        %1003 = vmatprep.mubr.f32.mxu0 0.0
        %v1004 = vand.u32 %v444, 4294901760
        %1005 = vmatmul.mubr.f32.gmra.mrb[0].mxu0 %v1004
        %v1006 = vpop.f32.mrb[0].mxu0
        %v1007 = vadd.f32 %v620, %v1006
        %v1008 = vpop.f32.mrb[0].mxu0
        %1009 = vmatprep.mubr.f32.mxu0 0.0
        %v1010 = vand.u32 %v447, 4294901760
        %1011 = vmatmul.mubr.f32.gmra.mrb[0].mxu0 %v1010
        %v1012 = vpop.f32.mrb[0].mxu0
        %v1013 = vadd.f32 %v630, %v1012
        %v1014 = vpop.f32.mrb[0].mxu0
        %1015 = vmatprep.mubr.f32.mxu0 0.0
        %v1016 = vand.u32 %v450, 4294901760
        %1017 = vmatmul.mubr.f32.gmra.mrb[0].mxu0 %v1016
        %v1018 = vpop.f32.mrb[0].mxu0
        %v1019 = vadd.f32 %v640, %v1018
        %v1020 = vpop.f32.mrb[0].mxu0
        %1021 = vmatprep.mubr.f32.mxu0 0.0
        %v1022 = vand.u32 %v453, 4294901760
        %1023 = vmatmul.mubr.f32.gmra.mrb[0].mxu0 %v1022
        %v1024 = vpop.f32.mrb[0].mxu0
        %v1025 = vadd.f32 %v650, %v1024
        %v1026 = vpop.f32.mrb[0].mxu0
        %1027 = vmatprep.mubr.f32.mxu0 0.0
        %v1028 = vand.u32 %v456, 4294901760
        %1029 = vmatmul.mubr.f32.gmra.mrb[0].mxu0 %v1028
        %v1030 = vpop.f32.mrb[0].mxu0
        %v1031 = vadd.f32 %v660, %v1030
        %v1032 = vpop.f32.mrb[0].mxu0
        %1033 = vmatprep.mubr.f32.mxu0 0.0
        %v1034 = vand.u32 %v459, 4294901760
        %1035 = vmatmul.mubr.f32.gmra.mrb[0].mxu0 %v1034
        %v1036 = vpop.f32.mrb[0].mxu0
        %v1037 = vadd.f32 %v670, %v1036
        %v1038 = vpop.f32.mrb[0].mxu0
        %1039 = vmatprep.mubr.f32.mxu0 0.0
        %v1040 = vand.u32 %v462, 4294901760
        %1041 = vmatmul.mubr.f32.gmra.mrb[0].mxu0 %v1040
        %v1042 = vpop.f32.mrb[0].mxu0
        %v1043 = vadd.f32 %v680, %v1042
        %v1044 = vpop.f32.mrb[0].mxu0
        %1045 = vmatprep.mubr.f32.mxu0 0.0
        %v1046 = vand.u32 %v465, 4294901760
        %1047 = vmatmul.mubr.f32.gmra.mrb[0].mxu0 %v1046
        %v1048 = vpop.f32.mrb[0].mxu0
        %v1049 = vadd.f32 %v690, %v1048
        %v1050 = vpop.f32.mrb[0].mxu0
        %1051 = vmatprep.mubr.f32.mxu0 0.0
        %v1052 = vand.u32 %v468, 4294901760
        %1053 = vmatmul.mubr.f32.gmra.mrb[0].mxu0 %v1052
        %v1054 = vpop.f32.mrb[0].mxu0
        %v1055 = vadd.f32 %v700, %v1054
        %v1056 = vpop.f32.mrb[0].mxu0
        %1057 = vmatprep.mubr.f32.mxu0 0.0
        %v1058 = vand.u32 %v471, 4294901760
        %1059 = vmatmul.mubr.f32.gmra.mrb[0].mxu0 %v1058
        %v1060 = vpop.f32.mrb[0].mxu0
        %v1061 = vadd.f32 %v710, %v1060
        %v1062 = vpop.f32.mrb[0].mxu0
        %1063 = vmatprep.mubr.f32.mxu0 0.0
        %v1064 = vand.u32 %v474, 4294901760
        %1065 = vmatmul.mubr.f32.gmra.mrb[0].mxu0 %v1064
        %v1066 = vpop.f32.mrb[0].mxu0
        %v1067 = vadd.f32 %v720, %v1066
        %v1068 = vpop.f32.mrb[0].mxu0
        %1069 = vmatprep.mubr.f32.mxu0 0.0
        %v1070 = vand.u32 %v477, 4294901760
        %1071 = vmatmul.mubr.f32.gmra.mrb[0].mxu0 %v1070
        %v1072 = vpop.f32.mrb[0].mxu0
        %v1073 = vadd.f32 %v730, %v1072
        %v1074 = vpop.f32.mrb[0].mxu0
        %1075 = vmatprep.mubr.f32.mxu0 0.0
        %v1076 = vand.u32 %v480, 4294901760
        %1077 = vmatmul.mubr.f32.gmra.mrb[0].mxu0 %v1076
        %v1078 = vpop.f32.mrb[0].mxu0
        %v1079 = vadd.f32 %v740, %v1078
        %v1080 = vpop.f32.mrb[0].mxu0
        %1081 = vmatprep.mubr.f32.mxu0 0.0
        %v1082 = vand.u32 %v483, 4294901760
        %1083 = vmatmul.mubr.f32.gmra.mrb[0].mxu0 %v1082
        %v1084 = vpop.f32.mrb[0].mxu0
        %v1085 = vadd.f32 %v750, %v1084
        %v1086 = vpop.f32.mrb[0].mxu0
        %1087 = vmatprep.mubr.f32.mxu0 0.0
        %v1088 = vand.u32 %v486, 4294901760
        %1089 = vmatmul.mubr.f32.gmra.mrb[0].mxu0 %v1088
        %v1090 = vpop.f32.mrb[0].mxu0
        %v1091 = vadd.f32 %v760, %v1090
        %v1092 = vpop.f32.mrb[0].mxu0
        %1093 = vmatprep.mubr.f32.mxu0 0.0
        %v1094 = vand.u32 %v489, 4294901760
        %1095 = vmatmul.mubr.f32.gmra.mrb[0].mxu0 %v1094
        %v1096 = vpop.f32.mrb[0].mxu0
        %v1097 = vadd.f32 %v770, %v1096
        %v1098 = vpop.f32.mrb[0].mxu0
        %1099 = vmatprep.mubr.f32.mxu0 0.0
        %v1100 = vand.u32 %v492, 4294901760
        %1101 = vmatmul.mubr.f32.gmra.mrb[0].mxu0 %v1100
        %v1102 = vpop.f32.mrb[0].mxu0
        %v1103 = vadd.f32 %v780, %v1102
        %v1104 = vpop.f32.mrb[0].mxu0
        %1105 = vmatprep.mubr.f32.mxu0 0.0
        %v1106 = vand.u32 %v495, 4294901760
        %1107 = vmatmul.mubr.f32.gmra.mrb[0].mxu0 %v1106
        %v1108 = vpop.f32.mrb[0].mxu0
        %v1109 = vadd.f32 %v790, %v1108
        %v1110 = vpop.f32.mrb[0].mxu0
        %1111 = vmatprep.mubr.f32.mxu0 0.0
        %v1112 = vand.u32 %v498, 4294901760
        %1113 = vmatmul.mubr.f32.gmra.mrb[0].mxu0 %v1112
        %v1114 = vpop.f32.mrb[0].mxu0
        %v1115 = vadd.f32 %v800, %v1114
        %v1116 = vpop.f32.mrb[0].mxu0
        %1117 = vmatprep.mubr.f32.mxu0 0.0
        %v1118 = vand.u32 %v501, 4294901760
        %1119 = vmatmul.mubr.f32.gmra.mrb[0].mxu0 %v1118
        %v1120 = vpop.f32.mrb[0].mxu0
        %v1121 = vadd.f32 %v810, %v1120
        %v1122 = vpop.f32.mrb[0].mxu0
        %1123 = vmatprep.mubr.f32.mxu0 0.0
        %v1124 = vand.u32 %v504, 4294901760
        %1125 = vmatmul.mubr.f32.gmra.mrb[0].mxu0 %v1124
        %v1126 = vpop.f32.mrb[0].mxu0
        %v1127 = vadd.f32 %v820, %v1126
        %v1128 = vpop.f32.mrb[0].mxu0
        %1129 = vmatprep.mubr.f32.mxu0 0.0
        %v1130 = vand.u32 %v507, 4294901760
        %1131 = vmatmul.mubr.f32.gmra.mrb[0].mxu0 %v1130
        %v1132 = vpop.f32.mrb[0].mxu0
        %v1133 = vadd.f32 %v830, %v1132
        %v1134 = vpop.f32.mrb[0].mxu0
        %1135 = vmatprep.mubr.f32.mxu0 0.0
        %v1136 = vand.u32 %v510, 4294901760
        %1137 = vmatmul.mubr.f32.gmra.mrb[0].mxu0 %v1136
        %v1138 = vpop.f32.mrb[0].mxu0
        %v1139 = vadd.f32 %v840, %v1138
        %v1140 = vpop.f32.mrb[0].mxu0
        %1141 = vmatprep.mubr.f32.mxu0 0.0
        %v1142 = vand.u32 %v513, 4294901760
        %1143 = vmatmul.mubr.f32.gmra.mrb[0].mxu0 %v1142
        %v1144 = vpop.f32.mrb[0].mxu0
        %v1145 = vadd.f32 %v850, %v1144
        %v1146 = vpop.f32.mrb[0].mxu0
        %1147 = vmatprep.mubr.f32.mxu0 0.0
        %v1148 = vand.u32 %v516, 4294901760
        %1149 = vmatmul.mubr.f32.gmra.mrb[0].mxu0 %v1148
        %v1150 = vpop.f32.mrb[0].mxu0
        %v1151 = vadd.f32 %v860, %v1150
        %v1152 = vpop.f32.mrb[0].mxu0
        %1153 = vmatprep.mubr.f32.mxu0 0.0
        %v1154 = vand.u32 %v519, 4294901760
        %1155 = vmatmul.mubr.f32.gmra.mrb[0].mxu0 %v1154
        %v1156 = vpop.f32.mrb[0].mxu0
        %v1157 = vadd.f32 %v870, %v1156
        %v1158 = vpop.f32.mrb[0].mxu0
        %1159 = vmatprep.mubr.f32.mxu0 0.0
        %v1160 = vand.u32 %v522, 4294901760
        %1161 = vmatmul.mubr.f32.gmra.mrb[0].mxu0 %v1160
        %v1162 = vpop.f32.mrb[0].mxu0
        %v1163 = vadd.f32 %v880, %v1162
        %v1164 = vpop.f32.mrb[0].mxu0
        %1165 = vmatprep.mubr.f32.mxu0 0.0
        %v1166 = vand.u32 %v525, 4294901760
        %1167 = vmatmul.mubr.f32.gmra.mrb[0].mxu0 %v1166
        %v1168 = vpop.f32.mrb[0].mxu0
        %v1169 = vadd.f32 %v890, %v1168
        %v1170 = vpop.f32.mrb[0].mxu0
        %1171 = vmatprep.mubr.f32.mxu0 0.0
        %v1172 = vand.u32 %v528, 4294901760
        %1173 = vmatmul.mubr.f32.gmra.mrb[0].mxu0 %v1172
        %v1174 = vpop.f32.mrb[0].mxu0
        %v1175 = vadd.f32 %v900, %v1174
        %v1176 = vpop.f32.mrb[0].mxu0
        %1177 = vmatprep.mubr.f32.mxu0 0.0
        %v1178 = vand.u32 %v531, 4294901760
        %1179 = vmatmul.mubr.f32.gmra.mrb[0].mxu0 %v1178
        %v1180 = vpop.f32.mrb[0].mxu0
        %v1181 = vadd.f32 %v910, %v1180
        %v1182 = vpop.f32.mrb[0].mxu0
        %1183 = vmatprep.mubr.f32.mxu0 0.0
        %v1184 = vand.u32 %v534, 4294901760
        %1185 = vmatmul.mubr.f32.gmra.mrb[0].mxu0 %v1184
        %v1186 = vpop.f32.mrb[0].mxu0
        %v1187 = vadd.f32 %v920, %v1186
        %v1188 = vpop.f32.mrb[0].mxu0
        %1189 = vdwg.mxu0
        %1190 = vmatprep.subr.mxu0 0.0
        %v1191 = vand.u32 %v366, 4294901760
        %v1192 = vsub.f32 %v366, %v1191
        %1193 = vmatpush1.msra.mxu0 %v1192
        %1194 = vmatprep.subr.mxu0 0.0
        %v1195 = vand.u32 %v367, 4294901760
        %v1196 = vsub.f32 %v367, %v1195
        %1197 = vmatpush1.msra.mxu0 %v1196
        %1198 = vmatprep.subr.mxu0 0.0
        %1199 = vmatpush1.msra.mxu0 0.0
        %1200 = vmatprep.subr.mxu0 0.0
        %1201 = vmatpush1.msra.mxu0 0.0
        %1202 = vmatprep.subr.mxu0 0.0
        %1203 = vmatpush1.msra.mxu0 0.0
        %1204 = vmatprep.subr.mxu0 0.0
        %1205 = vmatpush1.msra.mxu0 0.0
        %1206 = vmatprep.subr.mxu0 0.0
        %1207 = vmatpush1.msra.mxu0 0.0
        %1208 = vmatprep.subr.mxu0 0.0
        %1209 = vmatpush1.msra.mxu0 0.0
        %1210 = vmatprep.subr.mxu0 0.0
        %1211 = vmatpush1.msra.mxu0 0.0
        %1212 = vmatprep.subr.mxu0 0.0
        %1213 = vmatpush1.msra.mxu0 0.0
        %1214 = vmatprep.subr.mxu0 0.0
        %1215 = vmatpush1.msra.mxu0 0.0
        %1216 = vmatprep.subr.mxu0 0.0
        %1217 = vmatpush1.msra.mxu0 0.0
        %1218 = vmatprep.subr.mxu0 0.0
        %1219 = vmatpush1.msra.mxu0 0.0
        %1220 = vmatprep.subr.mxu0 0.0
        %1221 = vmatpush1.msra.mxu0 0.0
        %1222 = vmatprep.subr.mxu0 0.0
        %1223 = vmatpush1.msra.mxu0 0.0
        %1224 = vmatprep.subr.mxu0 0.0
        %1225 = vmatpush1.msra.mxu0 0.0
        %1226 = vmatprep.subr.mxu0 0.0
        %1227 = vmatpush1.msra.mxu0 0.0
        %1228 = vmatprep.subr.mxu0 0.0
        %1229 = vmatpush1.msra.mxu0 0.0
        %1230 = vmatprep.subr.mxu0 0.0
        %1231 = vmatpush1.msra.mxu0 0.0
        %1232 = vmatprep.subr.mxu0 0.0
        %1233 = vmatpush1.msra.mxu0 0.0
        %1234 = vmatprep.subr.mxu0 0.0
        %1235 = vmatpush1.msra.mxu0 0.0
        %1236 = vmatprep.subr.mxu0 0.0
        %1237 = vmatpush1.msra.mxu0 0.0
        %1238 = vmatprep.subr.mxu0 0.0
        %1239 = vmatpush1.msra.mxu0 0.0
        %1240 = vmatprep.subr.mxu0 0.0
        %1241 = vmatpush1.msra.mxu0 0.0
        %1242 = vmatprep.subr.mxu0 0.0
        %1243 = vmatpush1.msra.mxu0 0.0
        %1244 = vmatprep.subr.mxu0 0.0
        %1245 = vmatpush1.msra.mxu0 0.0
        %1246 = vmatprep.subr.mxu0 0.0
        %1247 = vmatpush1.msra.mxu0 0.0
        %1248 = vmatprep.subr.mxu0 0.0
        %1249 = vmatpush1.msra.mxu0 0.0
        %1250 = vmatprep.subr.mxu0 0.0
        %1251 = vmatpush1.msra.mxu0 0.0
        %1252 = vmatprep.subr.mxu0 0.0
        %1253 = vmatpush1.msra.mxu0 0.0
        %1254 = vmatprep.subr.mxu0 0.0
        %1255 = vmatpush1.msra.mxu0 0.0
        %1256 = vmatprep.subr.mxu0 0.0
        %1257 = vmatpush1.msra.mxu0 0.0
        %1258 = vmatprep.mubr.f32.mxu0 0.0
        %v1259 = vand.u32 %v441, 4294901760
        %v1260 = vsub.f32 %v441, %v1259
        %1261 = vmatmul.mubr.f32.gmra.mrb[0].mxu0 %v1260
        %v1262 = vpop.f32.mrb[0].mxu0
        %v1263 = vadd.f32 %v1001, %v1262
        %v1264 = vpop.f32.mrb[0].mxu0
        %1265 = vmatprep.mubr.f32.mxu0 0.0
        %v1266 = vand.u32 %v444, 4294901760
        %v1267 = vsub.f32 %v444, %v1266
        %1268 = vmatmul.mubr.f32.gmra.mrb[0].mxu0 %v1267
        %v1269 = vpop.f32.mrb[0].mxu0
        %v1270 = vadd.f32 %v1007, %v1269
        %v1271 = vpop.f32.mrb[0].mxu0
        %1272 = vmatprep.mubr.f32.mxu0 0.0
        %v1273 = vand.u32 %v447, 4294901760
        %v1274 = vsub.f32 %v447, %v1273
        %1275 = vmatmul.mubr.f32.gmra.mrb[0].mxu0 %v1274
        %v1276 = vpop.f32.mrb[0].mxu0
        %v1277 = vadd.f32 %v1013, %v1276
        %v1278 = vpop.f32.mrb[0].mxu0
        %1279 = vmatprep.mubr.f32.mxu0 0.0
        %v1280 = vand.u32 %v450, 4294901760
        %v1281 = vsub.f32 %v450, %v1280
        %1282 = vmatmul.mubr.f32.gmra.mrb[0].mxu0 %v1281
        %v1283 = vpop.f32.mrb[0].mxu0
        %v1284 = vadd.f32 %v1019, %v1283
        %v1285 = vpop.f32.mrb[0].mxu0
        %1286 = vmatprep.mubr.f32.mxu0 0.0
        %v1287 = vand.u32 %v453, 4294901760
        %v1288 = vsub.f32 %v453, %v1287
        %1289 = vmatmul.mubr.f32.gmra.mrb[0].mxu0 %v1288
        %v1290 = vpop.f32.mrb[0].mxu0
        %v1291 = vadd.f32 %v1025, %v1290
        %v1292 = vpop.f32.mrb[0].mxu0
        %1293 = vmatprep.mubr.f32.mxu0 0.0
        %v1294 = vand.u32 %v456, 4294901760
        %v1295 = vsub.f32 %v456, %v1294
        %1296 = vmatmul.mubr.f32.gmra.mrb[0].mxu0 %v1295
        %v1297 = vpop.f32.mrb[0].mxu0
        %v1298 = vadd.f32 %v1031, %v1297
        %v1299 = vpop.f32.mrb[0].mxu0
        %1300 = vmatprep.mubr.f32.mxu0 0.0
        %v1301 = vand.u32 %v459, 4294901760
        %v1302 = vsub.f32 %v459, %v1301
        %1303 = vmatmul.mubr.f32.gmra.mrb[0].mxu0 %v1302
        %v1304 = vpop.f32.mrb[0].mxu0
        %v1305 = vadd.f32 %v1037, %v1304
        %v1306 = vpop.f32.mrb[0].mxu0
        %1307 = vmatprep.mubr.f32.mxu0 0.0
        %v1308 = vand.u32 %v462, 4294901760
        %v1309 = vsub.f32 %v462, %v1308
        %1310 = vmatmul.mubr.f32.gmra.mrb[0].mxu0 %v1309
        %v1311 = vpop.f32.mrb[0].mxu0
        %v1312 = vadd.f32 %v1043, %v1311
        %v1313 = vpop.f32.mrb[0].mxu0
        %1314 = vmatprep.mubr.f32.mxu0 0.0
        %v1315 = vand.u32 %v465, 4294901760
        %v1316 = vsub.f32 %v465, %v1315
        %1317 = vmatmul.mubr.f32.gmra.mrb[0].mxu0 %v1316
        %v1318 = vpop.f32.mrb[0].mxu0
        %v1319 = vadd.f32 %v1049, %v1318
        %v1320 = vpop.f32.mrb[0].mxu0
        %1321 = vmatprep.mubr.f32.mxu0 0.0
        %v1322 = vand.u32 %v468, 4294901760
        %v1323 = vsub.f32 %v468, %v1322
        %1324 = vmatmul.mubr.f32.gmra.mrb[0].mxu0 %v1323
        %v1325 = vpop.f32.mrb[0].mxu0
        %v1326 = vadd.f32 %v1055, %v1325
        %v1327 = vpop.f32.mrb[0].mxu0
        %1328 = vmatprep.mubr.f32.mxu0 0.0
        %v1329 = vand.u32 %v471, 4294901760
        %v1330 = vsub.f32 %v471, %v1329
        %1331 = vmatmul.mubr.f32.gmra.mrb[0].mxu0 %v1330
        %v1332 = vpop.f32.mrb[0].mxu0
        %v1333 = vadd.f32 %v1061, %v1332
        %v1334 = vpop.f32.mrb[0].mxu0
        %1335 = vmatprep.mubr.f32.mxu0 0.0
        %v1336 = vand.u32 %v474, 4294901760
        %v1337 = vsub.f32 %v474, %v1336
        %1338 = vmatmul.mubr.f32.gmra.mrb[0].mxu0 %v1337
        %v1339 = vpop.f32.mrb[0].mxu0
        %v1340 = vadd.f32 %v1067, %v1339
        %v1341 = vpop.f32.mrb[0].mxu0
        %1342 = vmatprep.mubr.f32.mxu0 0.0
        %v1343 = vand.u32 %v477, 4294901760
        %v1344 = vsub.f32 %v477, %v1343
        %1345 = vmatmul.mubr.f32.gmra.mrb[0].mxu0 %v1344
        %v1346 = vpop.f32.mrb[0].mxu0
        %v1347 = vadd.f32 %v1073, %v1346
        %v1348 = vpop.f32.mrb[0].mxu0
        %1349 = vmatprep.mubr.f32.mxu0 0.0
        %v1350 = vand.u32 %v480, 4294901760
        %v1351 = vsub.f32 %v480, %v1350
        %1352 = vmatmul.mubr.f32.gmra.mrb[0].mxu0 %v1351
        %v1353 = vpop.f32.mrb[0].mxu0
        %v1354 = vadd.f32 %v1079, %v1353
        %v1355 = vpop.f32.mrb[0].mxu0
        %1356 = vmatprep.mubr.f32.mxu0 0.0
        %v1357 = vand.u32 %v483, 4294901760
        %v1358 = vsub.f32 %v483, %v1357
        %1359 = vmatmul.mubr.f32.gmra.mrb[0].mxu0 %v1358
        %v1360 = vpop.f32.mrb[0].mxu0
        %v1361 = vadd.f32 %v1085, %v1360
        %v1362 = vpop.f32.mrb[0].mxu0
        %1363 = vmatprep.mubr.f32.mxu0 0.0
        %v1364 = vand.u32 %v486, 4294901760
        %v1365 = vsub.f32 %v486, %v1364
        %1366 = vmatmul.mubr.f32.gmra.mrb[0].mxu0 %v1365
        %v1367 = vpop.f32.mrb[0].mxu0
        %v1368 = vadd.f32 %v1091, %v1367
        %v1369 = vpop.f32.mrb[0].mxu0
        %1370 = vmatprep.mubr.f32.mxu0 0.0
        %v1371 = vand.u32 %v489, 4294901760
        %v1372 = vsub.f32 %v489, %v1371
        %1373 = vmatmul.mubr.f32.gmra.mrb[0].mxu0 %v1372
        %v1374 = vpop.f32.mrb[0].mxu0
        %v1375 = vadd.f32 %v1097, %v1374
        %v1376 = vpop.f32.mrb[0].mxu0
        %1377 = vmatprep.mubr.f32.mxu0 0.0
        %v1378 = vand.u32 %v492, 4294901760
        %v1379 = vsub.f32 %v492, %v1378
        %1380 = vmatmul.mubr.f32.gmra.mrb[0].mxu0 %v1379
        %v1381 = vpop.f32.mrb[0].mxu0
        %v1382 = vadd.f32 %v1103, %v1381
        %v1383 = vpop.f32.mrb[0].mxu0
        %1384 = vmatprep.mubr.f32.mxu0 0.0
        %v1385 = vand.u32 %v495, 4294901760
        %v1386 = vsub.f32 %v495, %v1385
        %1387 = vmatmul.mubr.f32.gmra.mrb[0].mxu0 %v1386
        %v1388 = vpop.f32.mrb[0].mxu0
        %v1389 = vadd.f32 %v1109, %v1388
        %v1390 = vpop.f32.mrb[0].mxu0
        %1391 = vmatprep.mubr.f32.mxu0 0.0
        %v1392 = vand.u32 %v498, 4294901760
        %v1393 = vsub.f32 %v498, %v1392
        %1394 = vmatmul.mubr.f32.gmra.mrb[0].mxu0 %v1393
        %v1395 = vpop.f32.mrb[0].mxu0
        %v1396 = vadd.f32 %v1115, %v1395
        %v1397 = vpop.f32.mrb[0].mxu0
        %1398 = vmatprep.mubr.f32.mxu0 0.0
        %v1399 = vand.u32 %v501, 4294901760
        %v1400 = vsub.f32 %v501, %v1399
        %1401 = vmatmul.mubr.f32.gmra.mrb[0].mxu0 %v1400
        %v1402 = vpop.f32.mrb[0].mxu0
        %v1403 = vadd.f32 %v1121, %v1402
        %v1404 = vpop.f32.mrb[0].mxu0
        %1405 = vmatprep.mubr.f32.mxu0 0.0
        %v1406 = vand.u32 %v504, 4294901760
        %v1407 = vsub.f32 %v504, %v1406
        %1408 = vmatmul.mubr.f32.gmra.mrb[0].mxu0 %v1407
        %v1409 = vpop.f32.mrb[0].mxu0
        %v1410 = vadd.f32 %v1127, %v1409
        %v1411 = vpop.f32.mrb[0].mxu0
        %1412 = vmatprep.mubr.f32.mxu0 0.0
        %v1413 = vand.u32 %v507, 4294901760
        %v1414 = vsub.f32 %v507, %v1413
        %1415 = vmatmul.mubr.f32.gmra.mrb[0].mxu0 %v1414
        %v1416 = vpop.f32.mrb[0].mxu0
        %v1417 = vadd.f32 %v1133, %v1416
        %v1418 = vpop.f32.mrb[0].mxu0
        %1419 = vmatprep.mubr.f32.mxu0 0.0
        %v1420 = vand.u32 %v510, 4294901760
        %v1421 = vsub.f32 %v510, %v1420
        %1422 = vmatmul.mubr.f32.gmra.mrb[0].mxu0 %v1421
        %v1423 = vpop.f32.mrb[0].mxu0
        %v1424 = vadd.f32 %v1139, %v1423
        %v1425 = vpop.f32.mrb[0].mxu0
        %1426 = vmatprep.mubr.f32.mxu0 0.0
        %v1427 = vand.u32 %v513, 4294901760
        %v1428 = vsub.f32 %v513, %v1427
        %1429 = vmatmul.mubr.f32.gmra.mrb[0].mxu0 %v1428
        %v1430 = vpop.f32.mrb[0].mxu0
        %v1431 = vadd.f32 %v1145, %v1430
        %v1432 = vpop.f32.mrb[0].mxu0
        %1433 = vmatprep.mubr.f32.mxu0 0.0
        %v1434 = vand.u32 %v516, 4294901760
        %v1435 = vsub.f32 %v516, %v1434
        %1436 = vmatmul.mubr.f32.gmra.mrb[0].mxu0 %v1435
        %v1437 = vpop.f32.mrb[0].mxu0
        %v1438 = vadd.f32 %v1151, %v1437
        %v1439 = vpop.f32.mrb[0].mxu0
        %1440 = vmatprep.mubr.f32.mxu0 0.0
        %v1441 = vand.u32 %v519, 4294901760
        %v1442 = vsub.f32 %v519, %v1441
        %1443 = vmatmul.mubr.f32.gmra.mrb[0].mxu0 %v1442
        %v1444 = vpop.f32.mrb[0].mxu0
        %v1445 = vadd.f32 %v1157, %v1444
        %v1446 = vpop.f32.mrb[0].mxu0
        %1447 = vmatprep.mubr.f32.mxu0 0.0
        %v1448 = vand.u32 %v522, 4294901760
        %v1449 = vsub.f32 %v522, %v1448
        %1450 = vmatmul.mubr.f32.gmra.mrb[0].mxu0 %v1449
        %v1451 = vpop.f32.mrb[0].mxu0
        %v1452 = vadd.f32 %v1163, %v1451
        %v1453 = vpop.f32.mrb[0].mxu0
        %1454 = vmatprep.mubr.f32.mxu0 0.0
        %v1455 = vand.u32 %v525, 4294901760
        %v1456 = vsub.f32 %v525, %v1455
        %1457 = vmatmul.mubr.f32.gmra.mrb[0].mxu0 %v1456
        %v1458 = vpop.f32.mrb[0].mxu0
        %v1459 = vadd.f32 %v1169, %v1458
        %v1460 = vpop.f32.mrb[0].mxu0
        %1461 = vmatprep.mubr.f32.mxu0 0.0
        %v1462 = vand.u32 %v528, 4294901760
        %v1463 = vsub.f32 %v528, %v1462
        %1464 = vmatmul.mubr.f32.gmra.mrb[0].mxu0 %v1463
        %v1465 = vpop.f32.mrb[0].mxu0
        %v1466 = vadd.f32 %v1175, %v1465
        %v1467 = vpop.f32.mrb[0].mxu0
        %1468 = vmatprep.mubr.f32.mxu0 0.0
        %v1469 = vand.u32 %v531, 4294901760
        %v1470 = vsub.f32 %v531, %v1469
        %1471 = vmatmul.mubr.f32.gmra.mrb[0].mxu0 %v1470
        %v1472 = vpop.f32.mrb[0].mxu0
        %v1473 = vadd.f32 %v1181, %v1472
        %v1474 = vpop.f32.mrb[0].mxu0
        %1475 = vmatprep.mubr.f32.mxu0 0.0
        %v1476 = vand.u32 %v534, 4294901760
        %v1477 = vsub.f32 %v534, %v1476
        %1478 = vmatmul.mubr.f32.gmra.mrb[0].mxu0 %v1477
        %v1479 = vpop.f32.mrb[0].mxu0
        %v1480 = vadd.f32 %v1187, %v1479
        %v1481 = vpop.f32.mrb[0].mxu0
        %1482 = vdwg.mxu0
        %1483 = vmatprep.subr.mxu0 0.0
        %v1484 = vand.u32 %v366, 4294901760
        %1485 = vmatpush1.msra.mxu0 %v1484
        %1486 = vmatprep.subr.mxu0 0.0
        %v1487 = vand.u32 %v367, 4294901760
        %1488 = vmatpush1.msra.mxu0 %v1487
        %1489 = vmatprep.subr.mxu0 0.0
        %1490 = vmatpush1.msra.mxu0 0.0
        %1491 = vmatprep.subr.mxu0 0.0
        %1492 = vmatpush1.msra.mxu0 0.0
        %1493 = vmatprep.subr.mxu0 0.0
        %1494 = vmatpush1.msra.mxu0 0.0
        %1495 = vmatprep.subr.mxu0 0.0
        %1496 = vmatpush1.msra.mxu0 0.0
        %1497 = vmatprep.subr.mxu0 0.0
        %1498 = vmatpush1.msra.mxu0 0.0
        %1499 = vmatprep.subr.mxu0 0.0
        %1500 = vmatpush1.msra.mxu0 0.0
        %1501 = vmatprep.subr.mxu0 0.0
        %1502 = vmatpush1.msra.mxu0 0.0
        %1503 = vmatprep.subr.mxu0 0.0
        %1504 = vmatpush1.msra.mxu0 0.0
        %1505 = vmatprep.subr.mxu0 0.0
        %1506 = vmatpush1.msra.mxu0 0.0
        %1507 = vmatprep.subr.mxu0 0.0
        %1508 = vmatpush1.msra.mxu0 0.0
        %1509 = vmatprep.subr.mxu0 0.0
        %1510 = vmatpush1.msra.mxu0 0.0
        %1511 = vmatprep.subr.mxu0 0.0
        %1512 = vmatpush1.msra.mxu0 0.0
        %1513 = vmatprep.subr.mxu0 0.0
        %1514 = vmatpush1.msra.mxu0 0.0
        %1515 = vmatprep.subr.mxu0 0.0
        %1516 = vmatpush1.msra.mxu0 0.0
        %1517 = vmatprep.subr.mxu0 0.0
        %1518 = vmatpush1.msra.mxu0 0.0
        %1519 = vmatprep.subr.mxu0 0.0
        %1520 = vmatpush1.msra.mxu0 0.0
        %1521 = vmatprep.subr.mxu0 0.0
        %1522 = vmatpush1.msra.mxu0 0.0
        %1523 = vmatprep.subr.mxu0 0.0
        %1524 = vmatpush1.msra.mxu0 0.0
        %1525 = vmatprep.subr.mxu0 0.0
        %1526 = vmatpush1.msra.mxu0 0.0
        %1527 = vmatprep.subr.mxu0 0.0
        %1528 = vmatpush1.msra.mxu0 0.0
        %1529 = vmatprep.subr.mxu0 0.0
        %1530 = vmatpush1.msra.mxu0 0.0
        %1531 = vmatprep.subr.mxu0 0.0
        %1532 = vmatpush1.msra.mxu0 0.0
        %1533 = vmatprep.subr.mxu0 0.0
        %1534 = vmatpush1.msra.mxu0 0.0
        %1535 = vmatprep.subr.mxu0 0.0
        %1536 = vmatpush1.msra.mxu0 0.0
        %1537 = vmatprep.subr.mxu0 0.0
        %1538 = vmatpush1.msra.mxu0 0.0
        %1539 = vmatprep.subr.mxu0 0.0
        %1540 = vmatpush1.msra.mxu0 0.0
        %1541 = vmatprep.subr.mxu0 0.0
        %1542 = vmatpush1.msra.mxu0 0.0
        %1543 = vmatprep.subr.mxu0 0.0
        %1544 = vmatpush1.msra.mxu0 0.0
        %1545 = vmatprep.subr.mxu0 0.0
        %1546 = vmatpush1.msra.mxu0 0.0
        %1547 = vmatprep.subr.mxu0 0.0
        %1548 = vmatpush1.msra.mxu0 0.0
        %1549 = vmatprep.mubr.f32.mxu0 0.0
        %v1550 = vand.u32 %v441, 4294901760
        %v1551 = vsub.f32 %v441, %v1550
        %v1552 = vand.u32 %v1551, 4294901760
        %1553 = vmatmul.mubr.f32.gmra.mrb[0].mxu0 %v1552
        %v1554 = vpop.f32.mrb[0].mxu0
        %v1555 = vadd.f32 %v1263, %v1554
        %v1556 = vpop.f32.mrb[0].mxu0
        %1557 = vmatprep.mubr.f32.mxu0 0.0
        %v1558 = vand.u32 %v444, 4294901760
        %v1559 = vsub.f32 %v444, %v1558
        %v1560 = vand.u32 %v1559, 4294901760
        %1561 = vmatmul.mubr.f32.gmra.mrb[0].mxu0 %v1560
        %v1562 = vpop.f32.mrb[0].mxu0
        %v1563 = vadd.f32 %v1270, %v1562
        %v1564 = vpop.f32.mrb[0].mxu0
        %1565 = vmatprep.mubr.f32.mxu0 0.0
        %v1566 = vand.u32 %v447, 4294901760
        %v1567 = vsub.f32 %v447, %v1566
        %v1568 = vand.u32 %v1567, 4294901760
        %1569 = vmatmul.mubr.f32.gmra.mrb[0].mxu0 %v1568
        %v1570 = vpop.f32.mrb[0].mxu0
        %v1571 = vadd.f32 %v1277, %v1570
        %v1572 = vpop.f32.mrb[0].mxu0
        %1573 = vmatprep.mubr.f32.mxu0 0.0
        %v1574 = vand.u32 %v450, 4294901760
        %v1575 = vsub.f32 %v450, %v1574
        %v1576 = vand.u32 %v1575, 4294901760
        %1577 = vmatmul.mubr.f32.gmra.mrb[0].mxu0 %v1576
        %v1578 = vpop.f32.mrb[0].mxu0
        %v1579 = vadd.f32 %v1284, %v1578
        %v1580 = vpop.f32.mrb[0].mxu0
        %1581 = vmatprep.mubr.f32.mxu0 0.0
        %v1582 = vand.u32 %v453, 4294901760
        %v1583 = vsub.f32 %v453, %v1582
        %v1584 = vand.u32 %v1583, 4294901760
        %1585 = vmatmul.mubr.f32.gmra.mrb[0].mxu0 %v1584
        %v1586 = vpop.f32.mrb[0].mxu0
        %v1587 = vadd.f32 %v1291, %v1586
        %v1588 = vpop.f32.mrb[0].mxu0
        %1589 = vmatprep.mubr.f32.mxu0 0.0
        %v1590 = vand.u32 %v456, 4294901760
        %v1591 = vsub.f32 %v456, %v1590
        %v1592 = vand.u32 %v1591, 4294901760
        %1593 = vmatmul.mubr.f32.gmra.mrb[0].mxu0 %v1592
        %v1594 = vpop.f32.mrb[0].mxu0
        %v1595 = vadd.f32 %v1298, %v1594
        %v1596 = vpop.f32.mrb[0].mxu0
        %1597 = vmatprep.mubr.f32.mxu0 0.0
        %v1598 = vand.u32 %v459, 4294901760
        %v1599 = vsub.f32 %v459, %v1598
        %v1600 = vand.u32 %v1599, 4294901760
        %1601 = vmatmul.mubr.f32.gmra.mrb[0].mxu0 %v1600
        %v1602 = vpop.f32.mrb[0].mxu0
        %v1603 = vadd.f32 %v1305, %v1602
        %v1604 = vpop.f32.mrb[0].mxu0
        %1605 = vmatprep.mubr.f32.mxu0 0.0
        %v1606 = vand.u32 %v462, 4294901760
        %v1607 = vsub.f32 %v462, %v1606
        %v1608 = vand.u32 %v1607, 4294901760
        %1609 = vmatmul.mubr.f32.gmra.mrb[0].mxu0 %v1608
        %v1610 = vpop.f32.mrb[0].mxu0
        %v1611 = vadd.f32 %v1312, %v1610
        %v1612 = vpop.f32.mrb[0].mxu0
        %1613 = vmatprep.mubr.f32.mxu0 0.0
        %v1614 = vand.u32 %v465, 4294901760
        %v1615 = vsub.f32 %v465, %v1614
        %v1616 = vand.u32 %v1615, 4294901760
        %1617 = vmatmul.mubr.f32.gmra.mrb[0].mxu0 %v1616
        %v1618 = vpop.f32.mrb[0].mxu0
        %v1619 = vadd.f32 %v1319, %v1618
        %v1620 = vpop.f32.mrb[0].mxu0
        %1621 = vmatprep.mubr.f32.mxu0 0.0
        %v1622 = vand.u32 %v468, 4294901760
        %v1623 = vsub.f32 %v468, %v1622
        %v1624 = vand.u32 %v1623, 4294901760
        %1625 = vmatmul.mubr.f32.gmra.mrb[0].mxu0 %v1624
        %v1626 = vpop.f32.mrb[0].mxu0
        %v1627 = vadd.f32 %v1326, %v1626
        %v1628 = vpop.f32.mrb[0].mxu0
        %1629 = vmatprep.mubr.f32.mxu0 0.0
        %v1630 = vand.u32 %v471, 4294901760
        %v1631 = vsub.f32 %v471, %v1630
        %v1632 = vand.u32 %v1631, 4294901760
        %1633 = vmatmul.mubr.f32.gmra.mrb[0].mxu0 %v1632
        %v1634 = vpop.f32.mrb[0].mxu0
        %v1635 = vadd.f32 %v1333, %v1634
        %v1636 = vpop.f32.mrb[0].mxu0
        %1637 = vmatprep.mubr.f32.mxu0 0.0
        %v1638 = vand.u32 %v474, 4294901760
        %v1639 = vsub.f32 %v474, %v1638
        %v1640 = vand.u32 %v1639, 4294901760
        %1641 = vmatmul.mubr.f32.gmra.mrb[0].mxu0 %v1640
        %v1642 = vpop.f32.mrb[0].mxu0
        %v1643 = vadd.f32 %v1340, %v1642
        %v1644 = vpop.f32.mrb[0].mxu0
        %1645 = vmatprep.mubr.f32.mxu0 0.0
        %v1646 = vand.u32 %v477, 4294901760
        %v1647 = vsub.f32 %v477, %v1646
        %v1648 = vand.u32 %v1647, 4294901760
        %1649 = vmatmul.mubr.f32.gmra.mrb[0].mxu0 %v1648
        %v1650 = vpop.f32.mrb[0].mxu0
        %v1651 = vadd.f32 %v1347, %v1650
        %v1652 = vpop.f32.mrb[0].mxu0
        %1653 = vmatprep.mubr.f32.mxu0 0.0
        %v1654 = vand.u32 %v480, 4294901760
        %v1655 = vsub.f32 %v480, %v1654
        %v1656 = vand.u32 %v1655, 4294901760
        %1657 = vmatmul.mubr.f32.gmra.mrb[0].mxu0 %v1656
        %v1658 = vpop.f32.mrb[0].mxu0
        %v1659 = vadd.f32 %v1354, %v1658
        %v1660 = vpop.f32.mrb[0].mxu0
        %1661 = vmatprep.mubr.f32.mxu0 0.0
        %v1662 = vand.u32 %v483, 4294901760
        %v1663 = vsub.f32 %v483, %v1662
        %v1664 = vand.u32 %v1663, 4294901760
        %1665 = vmatmul.mubr.f32.gmra.mrb[0].mxu0 %v1664
        %v1666 = vpop.f32.mrb[0].mxu0
        %v1667 = vadd.f32 %v1361, %v1666
        %v1668 = vpop.f32.mrb[0].mxu0
        %1669 = vmatprep.mubr.f32.mxu0 0.0
        %v1670 = vand.u32 %v486, 4294901760
        %v1671 = vsub.f32 %v486, %v1670
        %v1672 = vand.u32 %v1671, 4294901760
        %1673 = vmatmul.mubr.f32.gmra.mrb[0].mxu0 %v1672
        %v1674 = vpop.f32.mrb[0].mxu0
        %v1675 = vadd.f32 %v1368, %v1674
        %v1676 = vpop.f32.mrb[0].mxu0
        %1677 = vmatprep.mubr.f32.mxu0 0.0
        %v1678 = vand.u32 %v489, 4294901760
        %v1679 = vsub.f32 %v489, %v1678
        %v1680 = vand.u32 %v1679, 4294901760
        %1681 = vmatmul.mubr.f32.gmra.mrb[0].mxu0 %v1680
        %v1682 = vpop.f32.mrb[0].mxu0
        %v1683 = vadd.f32 %v1375, %v1682
        %v1684 = vpop.f32.mrb[0].mxu0
        %1685 = vmatprep.mubr.f32.mxu0 0.0
        %v1686 = vand.u32 %v492, 4294901760
        %v1687 = vsub.f32 %v492, %v1686
        %v1688 = vand.u32 %v1687, 4294901760
        %1689 = vmatmul.mubr.f32.gmra.mrb[0].mxu0 %v1688
        %v1690 = vpop.f32.mrb[0].mxu0
        %v1691 = vadd.f32 %v1382, %v1690
        %v1692 = vpop.f32.mrb[0].mxu0
        %1693 = vmatprep.mubr.f32.mxu0 0.0
        %v1694 = vand.u32 %v495, 4294901760
        %v1695 = vsub.f32 %v495, %v1694
        %v1696 = vand.u32 %v1695, 4294901760
        %1697 = vmatmul.mubr.f32.gmra.mrb[0].mxu0 %v1696
        %v1698 = vpop.f32.mrb[0].mxu0
        %v1699 = vadd.f32 %v1389, %v1698
        %v1700 = vpop.f32.mrb[0].mxu0
        %1701 = vmatprep.mubr.f32.mxu0 0.0
        %v1702 = vand.u32 %v498, 4294901760
        %v1703 = vsub.f32 %v498, %v1702
        %v1704 = vand.u32 %v1703, 4294901760
        %1705 = vmatmul.mubr.f32.gmra.mrb[0].mxu0 %v1704
        %v1706 = vpop.f32.mrb[0].mxu0
        %v1707 = vadd.f32 %v1396, %v1706
        %v1708 = vpop.f32.mrb[0].mxu0
        %1709 = vmatprep.mubr.f32.mxu0 0.0
        %v1710 = vand.u32 %v501, 4294901760
        %v1711 = vsub.f32 %v501, %v1710
        %v1712 = vand.u32 %v1711, 4294901760
        %1713 = vmatmul.mubr.f32.gmra.mrb[0].mxu0 %v1712
        %v1714 = vpop.f32.mrb[0].mxu0
        %v1715 = vadd.f32 %v1403, %v1714
        %v1716 = vpop.f32.mrb[0].mxu0
        %1717 = vmatprep.mubr.f32.mxu0 0.0
        %v1718 = vand.u32 %v504, 4294901760
        %v1719 = vsub.f32 %v504, %v1718
        %v1720 = vand.u32 %v1719, 4294901760
        %1721 = vmatmul.mubr.f32.gmra.mrb[0].mxu0 %v1720
        %v1722 = vpop.f32.mrb[0].mxu0
        %v1723 = vadd.f32 %v1410, %v1722
        %v1724 = vpop.f32.mrb[0].mxu0
        %1725 = vmatprep.mubr.f32.mxu0 0.0
        %v1726 = vand.u32 %v507, 4294901760
        %v1727 = vsub.f32 %v507, %v1726
        %v1728 = vand.u32 %v1727, 4294901760
        %1729 = vmatmul.mubr.f32.gmra.mrb[0].mxu0 %v1728
        %v1730 = vpop.f32.mrb[0].mxu0
        %v1731 = vadd.f32 %v1417, %v1730
        %v1732 = vpop.f32.mrb[0].mxu0
        %1733 = vmatprep.mubr.f32.mxu0 0.0
        %v1734 = vand.u32 %v510, 4294901760
        %v1735 = vsub.f32 %v510, %v1734
        %v1736 = vand.u32 %v1735, 4294901760
        %1737 = vmatmul.mubr.f32.gmra.mrb[0].mxu0 %v1736
        %v1738 = vpop.f32.mrb[0].mxu0
        %v1739 = vadd.f32 %v1424, %v1738
        %v1740 = vpop.f32.mrb[0].mxu0
        %1741 = vmatprep.mubr.f32.mxu0 0.0
        %v1742 = vand.u32 %v513, 4294901760
        %v1743 = vsub.f32 %v513, %v1742
        %v1744 = vand.u32 %v1743, 4294901760
        %1745 = vmatmul.mubr.f32.gmra.mrb[0].mxu0 %v1744
        %v1746 = vpop.f32.mrb[0].mxu0
        %v1747 = vadd.f32 %v1431, %v1746
        %v1748 = vpop.f32.mrb[0].mxu0
        %1749 = vmatprep.mubr.f32.mxu0 0.0
        %v1750 = vand.u32 %v516, 4294901760
        %v1751 = vsub.f32 %v516, %v1750
        %v1752 = vand.u32 %v1751, 4294901760
        %1753 = vmatmul.mubr.f32.gmra.mrb[0].mxu0 %v1752
        %v1754 = vpop.f32.mrb[0].mxu0
        %v1755 = vadd.f32 %v1438, %v1754
        %v1756 = vpop.f32.mrb[0].mxu0
        %1757 = vmatprep.mubr.f32.mxu0 0.0
        %v1758 = vand.u32 %v519, 4294901760
        %v1759 = vsub.f32 %v519, %v1758
        %v1760 = vand.u32 %v1759, 4294901760
        %1761 = vmatmul.mubr.f32.gmra.mrb[0].mxu0 %v1760
        %v1762 = vpop.f32.mrb[0].mxu0
        %v1763 = vadd.f32 %v1445, %v1762
        %v1764 = vpop.f32.mrb[0].mxu0
        %1765 = vmatprep.mubr.f32.mxu0 0.0
        %v1766 = vand.u32 %v522, 4294901760
        %v1767 = vsub.f32 %v522, %v1766
        %v1768 = vand.u32 %v1767, 4294901760
        %1769 = vmatmul.mubr.f32.gmra.mrb[0].mxu0 %v1768
        %v1770 = vpop.f32.mrb[0].mxu0
        %v1771 = vadd.f32 %v1452, %v1770
        %v1772 = vpop.f32.mrb[0].mxu0
        %1773 = vmatprep.mubr.f32.mxu0 0.0
        %v1774 = vand.u32 %v525, 4294901760
        %v1775 = vsub.f32 %v525, %v1774
        %v1776 = vand.u32 %v1775, 4294901760
        %1777 = vmatmul.mubr.f32.gmra.mrb[0].mxu0 %v1776
        %v1778 = vpop.f32.mrb[0].mxu0
        %v1779 = vadd.f32 %v1459, %v1778
        %v1780 = vpop.f32.mrb[0].mxu0
        %1781 = vmatprep.mubr.f32.mxu0 0.0
        %v1782 = vand.u32 %v528, 4294901760
        %v1783 = vsub.f32 %v528, %v1782
        %v1784 = vand.u32 %v1783, 4294901760
        %1785 = vmatmul.mubr.f32.gmra.mrb[0].mxu0 %v1784
        %v1786 = vpop.f32.mrb[0].mxu0
        %v1787 = vadd.f32 %v1466, %v1786
        %v1788 = vpop.f32.mrb[0].mxu0
        %1789 = vmatprep.mubr.f32.mxu0 0.0
        %v1790 = vand.u32 %v531, 4294901760
        %v1791 = vsub.f32 %v531, %v1790
        %v1792 = vand.u32 %v1791, 4294901760
        %1793 = vmatmul.mubr.f32.gmra.mrb[0].mxu0 %v1792
        %v1794 = vpop.f32.mrb[0].mxu0
        %v1795 = vadd.f32 %v1473, %v1794
        %v1796 = vpop.f32.mrb[0].mxu0
        %1797 = vmatprep.mubr.f32.mxu0 0.0
        %v1798 = vand.u32 %v534, 4294901760
        %v1799 = vsub.f32 %v534, %v1798
        %v1800 = vand.u32 %v1799, 4294901760
        %1801 = vmatmul.mubr.f32.gmra.mrb[0].mxu0 %v1800
        %v1802 = vpop.f32.mrb[0].mxu0
        %v1803 = vadd.f32 %v1480, %v1802
        %v1804 = vpop.f32.mrb[0].mxu0
        %1805 = vdwg.mxu0
        %1806 = vmatprep.subr.mxu0 0.0
        %v1807 = vand.u32 %v366, 4294901760
        %v1808 = vsub.f32 %v366, %v1807
        %v1809 = vand.u32 %v1808, 4294901760
        %1810 = vmatpush1.msra.mxu0 %v1809
        %1811 = vmatprep.subr.mxu0 0.0
        %v1812 = vand.u32 %v367, 4294901760
        %v1813 = vsub.f32 %v367, %v1812
        %v1814 = vand.u32 %v1813, 4294901760
        %1815 = vmatpush1.msra.mxu0 %v1814
        %1816 = vmatprep.subr.mxu0 0.0
        %1817 = vmatpush1.msra.mxu0 0.0
        %1818 = vmatprep.subr.mxu0 0.0
        %1819 = vmatpush1.msra.mxu0 0.0
        %1820 = vmatprep.subr.mxu0 0.0
        %1821 = vmatpush1.msra.mxu0 0.0
        %1822 = vmatprep.subr.mxu0 0.0
        %1823 = vmatpush1.msra.mxu0 0.0
        %1824 = vmatprep.subr.mxu0 0.0
        %1825 = vmatpush1.msra.mxu0 0.0
        %1826 = vmatprep.subr.mxu0 0.0
        %1827 = vmatpush1.msra.mxu0 0.0
        %1828 = vmatprep.subr.mxu0 0.0
        %1829 = vmatpush1.msra.mxu0 0.0
        %1830 = vmatprep.subr.mxu0 0.0
        %1831 = vmatpush1.msra.mxu0 0.0
        %1832 = vmatprep.subr.mxu0 0.0
        %1833 = vmatpush1.msra.mxu0 0.0
        %1834 = vmatprep.subr.mxu0 0.0
        %1835 = vmatpush1.msra.mxu0 0.0
        %1836 = vmatprep.subr.mxu0 0.0
        %1837 = vmatpush1.msra.mxu0 0.0
        %1838 = vmatprep.subr.mxu0 0.0
        %1839 = vmatpush1.msra.mxu0 0.0
        %1840 = vmatprep.subr.mxu0 0.0
        %1841 = vmatpush1.msra.mxu0 0.0
        %1842 = vmatprep.subr.mxu0 0.0
        %1843 = vmatpush1.msra.mxu0 0.0
        %1844 = vmatprep.subr.mxu0 0.0
        %1845 = vmatpush1.msra.mxu0 0.0
        %1846 = vmatprep.subr.mxu0 0.0
        %1847 = vmatpush1.msra.mxu0 0.0
        %1848 = vmatprep.subr.mxu0 0.0
        %1849 = vmatpush1.msra.mxu0 0.0
        %1850 = vmatprep.subr.mxu0 0.0
        %1851 = vmatpush1.msra.mxu0 0.0
        %1852 = vmatprep.subr.mxu0 0.0
        %1853 = vmatpush1.msra.mxu0 0.0
        %1854 = vmatprep.subr.mxu0 0.0
        %1855 = vmatpush1.msra.mxu0 0.0
        %1856 = vmatprep.subr.mxu0 0.0
        %1857 = vmatpush1.msra.mxu0 0.0
        %1858 = vmatprep.subr.mxu0 0.0
        %1859 = vmatpush1.msra.mxu0 0.0
        %1860 = vmatprep.subr.mxu0 0.0
        %1861 = vmatpush1.msra.mxu0 0.0
        %1862 = vmatprep.subr.mxu0 0.0
        %1863 = vmatpush1.msra.mxu0 0.0
        %1864 = vmatprep.subr.mxu0 0.0
        %1865 = vmatpush1.msra.mxu0 0.0
        %1866 = vmatprep.subr.mxu0 0.0
        %1867 = vmatpush1.msra.mxu0 0.0
        %1868 = vmatprep.subr.mxu0 0.0
        %1869 = vmatpush1.msra.mxu0 0.0
        %1870 = vmatprep.subr.mxu0 0.0
        %1871 = vmatpush1.msra.mxu0 0.0
        %1872 = vmatprep.subr.mxu0 0.0
        %1873 = vmatpush1.msra.mxu0 0.0
        %1874 = vmatprep.subr.mxu0 0.0
        %1875 = vmatpush1.msra.mxu0 0.0
        %1876 = vmatprep.mubr.f32.mxu0 0.0
        %v1877 = vand.u32 %v441, 4294901760
        %1878 = vmatmul.mubr.f32.gmra.mrb[0].mxu0 %v1877
        %v1879 = vpop.f32.mrb[0].mxu0
        %v1880 = vadd.f32 %v1555, %v1879
        %v1881 = vpop.f32.mrb[0].mxu0
        %1882 = vmatprep.mubr.f32.mxu0 0.0
        %v1883 = vand.u32 %v444, 4294901760
        %1884 = vmatmul.mubr.f32.gmra.mrb[0].mxu0 %v1883
        %v1885 = vpop.f32.mrb[0].mxu0
        %v1886 = vadd.f32 %v1563, %v1885
        %v1887 = vpop.f32.mrb[0].mxu0
        %1888 = vmatprep.mubr.f32.mxu0 0.0
        %v1889 = vand.u32 %v447, 4294901760
        %1890 = vmatmul.mubr.f32.gmra.mrb[0].mxu0 %v1889
        %v1891 = vpop.f32.mrb[0].mxu0
        %v1892 = vadd.f32 %v1571, %v1891
        %v1893 = vpop.f32.mrb[0].mxu0
        %1894 = vmatprep.mubr.f32.mxu0 0.0
        %v1895 = vand.u32 %v450, 4294901760
        %1896 = vmatmul.mubr.f32.gmra.mrb[0].mxu0 %v1895
        %v1897 = vpop.f32.mrb[0].mxu0
        %v1898 = vadd.f32 %v1579, %v1897
        %v1899 = vpop.f32.mrb[0].mxu0
        %1900 = vmatprep.mubr.f32.mxu0 0.0
        %v1901 = vand.u32 %v453, 4294901760
        %1902 = vmatmul.mubr.f32.gmra.mrb[0].mxu0 %v1901
        %v1903 = vpop.f32.mrb[0].mxu0
        %v1904 = vadd.f32 %v1587, %v1903
        %v1905 = vpop.f32.mrb[0].mxu0
        %1906 = vmatprep.mubr.f32.mxu0 0.0
        %v1907 = vand.u32 %v456, 4294901760
        %1908 = vmatmul.mubr.f32.gmra.mrb[0].mxu0 %v1907
        %v1909 = vpop.f32.mrb[0].mxu0
        %v1910 = vadd.f32 %v1595, %v1909
        %v1911 = vpop.f32.mrb[0].mxu0
        %1912 = vmatprep.mubr.f32.mxu0 0.0
        %v1913 = vand.u32 %v459, 4294901760
        %1914 = vmatmul.mubr.f32.gmra.mrb[0].mxu0 %v1913
        %v1915 = vpop.f32.mrb[0].mxu0
        %v1916 = vadd.f32 %v1603, %v1915
        %v1917 = vpop.f32.mrb[0].mxu0
        %1918 = vmatprep.mubr.f32.mxu0 0.0
        %v1919 = vand.u32 %v462, 4294901760
        %1920 = vmatmul.mubr.f32.gmra.mrb[0].mxu0 %v1919
        %v1921 = vpop.f32.mrb[0].mxu0
        %v1922 = vadd.f32 %v1611, %v1921
        %v1923 = vpop.f32.mrb[0].mxu0
        %1924 = vmatprep.mubr.f32.mxu0 0.0
        %v1925 = vand.u32 %v465, 4294901760
        %1926 = vmatmul.mubr.f32.gmra.mrb[0].mxu0 %v1925
        %v1927 = vpop.f32.mrb[0].mxu0
        %v1928 = vadd.f32 %v1619, %v1927
        %v1929 = vpop.f32.mrb[0].mxu0
        %1930 = vmatprep.mubr.f32.mxu0 0.0
        %v1931 = vand.u32 %v468, 4294901760
        %1932 = vmatmul.mubr.f32.gmra.mrb[0].mxu0 %v1931
        %v1933 = vpop.f32.mrb[0].mxu0
        %v1934 = vadd.f32 %v1627, %v1933
        %v1935 = vpop.f32.mrb[0].mxu0
        %1936 = vmatprep.mubr.f32.mxu0 0.0
        %v1937 = vand.u32 %v471, 4294901760
        %1938 = vmatmul.mubr.f32.gmra.mrb[0].mxu0 %v1937
        %v1939 = vpop.f32.mrb[0].mxu0
        %v1940 = vadd.f32 %v1635, %v1939
        %v1941 = vpop.f32.mrb[0].mxu0
        %1942 = vmatprep.mubr.f32.mxu0 0.0
        %v1943 = vand.u32 %v474, 4294901760
        %1944 = vmatmul.mubr.f32.gmra.mrb[0].mxu0 %v1943
        %v1945 = vpop.f32.mrb[0].mxu0
        %v1946 = vadd.f32 %v1643, %v1945
        %v1947 = vpop.f32.mrb[0].mxu0
        %1948 = vmatprep.mubr.f32.mxu0 0.0
        %v1949 = vand.u32 %v477, 4294901760
        %1950 = vmatmul.mubr.f32.gmra.mrb[0].mxu0 %v1949
        %v1951 = vpop.f32.mrb[0].mxu0
        %v1952 = vadd.f32 %v1651, %v1951
        %v1953 = vpop.f32.mrb[0].mxu0
        %1954 = vmatprep.mubr.f32.mxu0 0.0
        %v1955 = vand.u32 %v480, 4294901760
        %1956 = vmatmul.mubr.f32.gmra.mrb[0].mxu0 %v1955
        %v1957 = vpop.f32.mrb[0].mxu0
        %v1958 = vadd.f32 %v1659, %v1957
        %v1959 = vpop.f32.mrb[0].mxu0
        %1960 = vmatprep.mubr.f32.mxu0 0.0
        %v1961 = vand.u32 %v483, 4294901760
        %1962 = vmatmul.mubr.f32.gmra.mrb[0].mxu0 %v1961
        %v1963 = vpop.f32.mrb[0].mxu0
        %v1964 = vadd.f32 %v1667, %v1963
        %v1965 = vpop.f32.mrb[0].mxu0
        %1966 = vmatprep.mubr.f32.mxu0 0.0
        %v1967 = vand.u32 %v486, 4294901760
        %1968 = vmatmul.mubr.f32.gmra.mrb[0].mxu0 %v1967
        %v1969 = vpop.f32.mrb[0].mxu0
        %v1970 = vadd.f32 %v1675, %v1969
        %v1971 = vpop.f32.mrb[0].mxu0
        %1972 = vmatprep.mubr.f32.mxu0 0.0
        %v1973 = vand.u32 %v489, 4294901760
        %1974 = vmatmul.mubr.f32.gmra.mrb[0].mxu0 %v1973
        %v1975 = vpop.f32.mrb[0].mxu0
        %v1976 = vadd.f32 %v1683, %v1975
        %v1977 = vpop.f32.mrb[0].mxu0
        %1978 = vmatprep.mubr.f32.mxu0 0.0
        %v1979 = vand.u32 %v492, 4294901760
        %1980 = vmatmul.mubr.f32.gmra.mrb[0].mxu0 %v1979
        %v1981 = vpop.f32.mrb[0].mxu0
        %v1982 = vadd.f32 %v1691, %v1981
        %v1983 = vpop.f32.mrb[0].mxu0
        %1984 = vmatprep.mubr.f32.mxu0 0.0
        %v1985 = vand.u32 %v495, 4294901760
        %1986 = vmatmul.mubr.f32.gmra.mrb[0].mxu0 %v1985
        %v1987 = vpop.f32.mrb[0].mxu0
        %v1988 = vadd.f32 %v1699, %v1987
        %v1989 = vpop.f32.mrb[0].mxu0
        %1990 = vmatprep.mubr.f32.mxu0 0.0
        %v1991 = vand.u32 %v498, 4294901760
        %1992 = vmatmul.mubr.f32.gmra.mrb[0].mxu0 %v1991
        %v1993 = vpop.f32.mrb[0].mxu0
        %v1994 = vadd.f32 %v1707, %v1993
        %v1995 = vpop.f32.mrb[0].mxu0
        %1996 = vmatprep.mubr.f32.mxu0 0.0
        %v1997 = vand.u32 %v501, 4294901760
        %1998 = vmatmul.mubr.f32.gmra.mrb[0].mxu0 %v1997
        %v1999 = vpop.f32.mrb[0].mxu0
        %v2000 = vadd.f32 %v1715, %v1999
        %v2001 = vpop.f32.mrb[0].mxu0
        %2002 = vmatprep.mubr.f32.mxu0 0.0
        %v2003 = vand.u32 %v504, 4294901760
        %2004 = vmatmul.mubr.f32.gmra.mrb[0].mxu0 %v2003
        %v2005 = vpop.f32.mrb[0].mxu0
        %v2006 = vadd.f32 %v1723, %v2005
        %v2007 = vpop.f32.mrb[0].mxu0
        %2008 = vmatprep.mubr.f32.mxu0 0.0
        %v2009 = vand.u32 %v507, 4294901760
        %2010 = vmatmul.mubr.f32.gmra.mrb[0].mxu0 %v2009
        %v2011 = vpop.f32.mrb[0].mxu0
        %v2012 = vadd.f32 %v1731, %v2011
        %v2013 = vpop.f32.mrb[0].mxu0
        %2014 = vmatprep.mubr.f32.mxu0 0.0
        %v2015 = vand.u32 %v510, 4294901760
        %2016 = vmatmul.mubr.f32.gmra.mrb[0].mxu0 %v2015
        %v2017 = vpop.f32.mrb[0].mxu0
        %v2018 = vadd.f32 %v1739, %v2017
        %v2019 = vpop.f32.mrb[0].mxu0
        %2020 = vmatprep.mubr.f32.mxu0 0.0
        %v2021 = vand.u32 %v513, 4294901760
        %2022 = vmatmul.mubr.f32.gmra.mrb[0].mxu0 %v2021
        %v2023 = vpop.f32.mrb[0].mxu0
        %v2024 = vadd.f32 %v1747, %v2023
        %v2025 = vpop.f32.mrb[0].mxu0
        %2026 = vmatprep.mubr.f32.mxu0 0.0
        %v2027 = vand.u32 %v516, 4294901760
        %2028 = vmatmul.mubr.f32.gmra.mrb[0].mxu0 %v2027
        %v2029 = vpop.f32.mrb[0].mxu0
        %v2030 = vadd.f32 %v1755, %v2029
        %v2031 = vpop.f32.mrb[0].mxu0
        %2032 = vmatprep.mubr.f32.mxu0 0.0
        %v2033 = vand.u32 %v519, 4294901760
        %2034 = vmatmul.mubr.f32.gmra.mrb[0].mxu0 %v2033
        %v2035 = vpop.f32.mrb[0].mxu0
        %v2036 = vadd.f32 %v1763, %v2035
        %v2037 = vpop.f32.mrb[0].mxu0
        %2038 = vmatprep.mubr.f32.mxu0 0.0
        %v2039 = vand.u32 %v522, 4294901760
        %2040 = vmatmul.mubr.f32.gmra.mrb[0].mxu0 %v2039
        %v2041 = vpop.f32.mrb[0].mxu0
        %v2042 = vadd.f32 %v1771, %v2041
        %v2043 = vpop.f32.mrb[0].mxu0
        %2044 = vmatprep.mubr.f32.mxu0 0.0
        %v2045 = vand.u32 %v525, 4294901760
        %2046 = vmatmul.mubr.f32.gmra.mrb[0].mxu0 %v2045
        %v2047 = vpop.f32.mrb[0].mxu0
        %v2048 = vadd.f32 %v1779, %v2047
        %v2049 = vpop.f32.mrb[0].mxu0
        %2050 = vmatprep.mubr.f32.mxu0 0.0
        %v2051 = vand.u32 %v528, 4294901760
        %2052 = vmatmul.mubr.f32.gmra.mrb[0].mxu0 %v2051
        %v2053 = vpop.f32.mrb[0].mxu0
        %v2054 = vadd.f32 %v1787, %v2053
        %v2055 = vpop.f32.mrb[0].mxu0
        %2056 = vmatprep.mubr.f32.mxu0 0.0
        %v2057 = vand.u32 %v531, 4294901760
        %2058 = vmatmul.mubr.f32.gmra.mrb[0].mxu0 %v2057
        %v2059 = vpop.f32.mrb[0].mxu0
        %v2060 = vadd.f32 %v1795, %v2059
        %v2061 = vpop.f32.mrb[0].mxu0
        %2062 = vmatprep.mubr.f32.mxu0 0.0
        %v2063 = vand.u32 %v534, 4294901760
        %2064 = vmatmul.mubr.f32.gmra.mrb[0].mxu0 %v2063
        %v2065 = vpop.f32.mrb[0].mxu0
        %v2066 = vadd.f32 %v1803, %v2065
        %v2067 = vpop.f32.mrb[0].mxu0
        %2068 = vdwg.mxu0
        %2069 = vmatprep.subr.mxu0 0.0
        %v2070 = vand.u32 %v366, 4294901760
        %2071 = vmatpush1.msra.mxu0 %v2070
        %2072 = vmatprep.subr.mxu0 0.0
        %v2073 = vand.u32 %v367, 4294901760
        %2074 = vmatpush1.msra.mxu0 %v2073
        %2075 = vmatprep.subr.mxu0 0.0
        %2076 = vmatpush1.msra.mxu0 0.0
        %2077 = vmatprep.subr.mxu0 0.0
        %2078 = vmatpush1.msra.mxu0 0.0
        %2079 = vmatprep.subr.mxu0 0.0
        %2080 = vmatpush1.msra.mxu0 0.0
        %2081 = vmatprep.subr.mxu0 0.0
        %2082 = vmatpush1.msra.mxu0 0.0
        %2083 = vmatprep.subr.mxu0 0.0
        %2084 = vmatpush1.msra.mxu0 0.0
        %2085 = vmatprep.subr.mxu0 0.0
        %2086 = vmatpush1.msra.mxu0 0.0
        %2087 = vmatprep.subr.mxu0 0.0
        %2088 = vmatpush1.msra.mxu0 0.0
        %2089 = vmatprep.subr.mxu0 0.0
        %2090 = vmatpush1.msra.mxu0 0.0
        %2091 = vmatprep.subr.mxu0 0.0
        %2092 = vmatpush1.msra.mxu0 0.0
        %2093 = vmatprep.subr.mxu0 0.0
        %2094 = vmatpush1.msra.mxu0 0.0
        %2095 = vmatprep.subr.mxu0 0.0
        %2096 = vmatpush1.msra.mxu0 0.0
        %2097 = vmatprep.subr.mxu0 0.0
        %2098 = vmatpush1.msra.mxu0 0.0
        %2099 = vmatprep.subr.mxu0 0.0
        %2100 = vmatpush1.msra.mxu0 0.0
        %2101 = vmatprep.subr.mxu0 0.0
        %2102 = vmatpush1.msra.mxu0 0.0
        %2103 = vmatprep.subr.mxu0 0.0
        %2104 = vmatpush1.msra.mxu0 0.0
        %2105 = vmatprep.subr.mxu0 0.0
        %2106 = vmatpush1.msra.mxu0 0.0
        %2107 = vmatprep.subr.mxu0 0.0
        %2108 = vmatpush1.msra.mxu0 0.0
        %2109 = vmatprep.subr.mxu0 0.0
        %2110 = vmatpush1.msra.mxu0 0.0
        %2111 = vmatprep.subr.mxu0 0.0
        %2112 = vmatpush1.msra.mxu0 0.0
        %2113 = vmatprep.subr.mxu0 0.0
        %2114 = vmatpush1.msra.mxu0 0.0
        %2115 = vmatprep.subr.mxu0 0.0
        %2116 = vmatpush1.msra.mxu0 0.0
        %2117 = vmatprep.subr.mxu0 0.0
        %2118 = vmatpush1.msra.mxu0 0.0
        %2119 = vmatprep.subr.mxu0 0.0
        %2120 = vmatpush1.msra.mxu0 0.0
        %2121 = vmatprep.subr.mxu0 0.0
        %2122 = vmatpush1.msra.mxu0 0.0
        %2123 = vmatprep.subr.mxu0 0.0
        %2124 = vmatpush1.msra.mxu0 0.0
        %2125 = vmatprep.subr.mxu0 0.0
        %2126 = vmatpush1.msra.mxu0 0.0
        %2127 = vmatprep.subr.mxu0 0.0
        %2128 = vmatpush1.msra.mxu0 0.0
        %2129 = vmatprep.subr.mxu0 0.0
        %2130 = vmatpush1.msra.mxu0 0.0
        %2131 = vmatprep.subr.mxu0 0.0
        %2132 = vmatpush1.msra.mxu0 0.0
        %2133 = vmatprep.subr.mxu0 0.0
        %2134 = vmatpush1.msra.mxu0 0.0
        %2135 = vmatprep.mubr.f32.mxu0 0.0
        %v2136 = vand.u32 %v441, 4294901760
        %2137 = vmatmul.mubr.f32.gmra.mrb[0].mxu0 %v2136
        %v2138 = vpop.f32.mrb[0].mxu0
        %v2139 = vadd.f32 %v1880, %v2138
        %v2140 = vpop.f32.mrb[0].mxu0
        %2141 = vmatprep.mubr.f32.mxu0 0.0
        %v2142 = vand.u32 %v444, 4294901760
        %2143 = vmatmul.mubr.f32.gmra.mrb[0].mxu0 %v2142
        %v2144 = vpop.f32.mrb[0].mxu0
        %v2145 = vadd.f32 %v1886, %v2144
        %v2146 = vpop.f32.mrb[0].mxu0
        %2147 = vmatprep.mubr.f32.mxu0 0.0
        %v2148 = vand.u32 %v447, 4294901760
        %2149 = vmatmul.mubr.f32.gmra.mrb[0].mxu0 %v2148
        %v2150 = vpop.f32.mrb[0].mxu0
        %v2151 = vadd.f32 %v1892, %v2150
        %v2152 = vpop.f32.mrb[0].mxu0
        %2153 = vmatprep.mubr.f32.mxu0 0.0
        %v2154 = vand.u32 %v450, 4294901760
        %2155 = vmatmul.mubr.f32.gmra.mrb[0].mxu0 %v2154
        %v2156 = vpop.f32.mrb[0].mxu0
        %v2157 = vadd.f32 %v1898, %v2156
        %v2158 = vpop.f32.mrb[0].mxu0
        %2159 = vmatprep.mubr.f32.mxu0 0.0
        %v2160 = vand.u32 %v453, 4294901760
        %2161 = vmatmul.mubr.f32.gmra.mrb[0].mxu0 %v2160
        %v2162 = vpop.f32.mrb[0].mxu0
        %v2163 = vadd.f32 %v1904, %v2162
        %v2164 = vpop.f32.mrb[0].mxu0
        %2165 = vmatprep.mubr.f32.mxu0 0.0
        %v2166 = vand.u32 %v456, 4294901760
        %2167 = vmatmul.mubr.f32.gmra.mrb[0].mxu0 %v2166
        %v2168 = vpop.f32.mrb[0].mxu0
        %v2169 = vadd.f32 %v1910, %v2168
        %v2170 = vpop.f32.mrb[0].mxu0
        %2171 = vmatprep.mubr.f32.mxu0 0.0
        %v2172 = vand.u32 %v459, 4294901760
        %2173 = vmatmul.mubr.f32.gmra.mrb[0].mxu0 %v2172
        %v2174 = vpop.f32.mrb[0].mxu0
        %v2175 = vadd.f32 %v1916, %v2174
        %v2176 = vpop.f32.mrb[0].mxu0
        %2177 = vmatprep.mubr.f32.mxu0 0.0
        %v2178 = vand.u32 %v462, 4294901760
        %2179 = vmatmul.mubr.f32.gmra.mrb[0].mxu0 %v2178
        %v2180 = vpop.f32.mrb[0].mxu0
        %v2181 = vadd.f32 %v1922, %v2180
        %v2182 = vpop.f32.mrb[0].mxu0
        %2183 = vmatprep.mubr.f32.mxu0 0.0
        %v2184 = vand.u32 %v465, 4294901760
        %2185 = vmatmul.mubr.f32.gmra.mrb[0].mxu0 %v2184
        %v2186 = vpop.f32.mrb[0].mxu0
        %v2187 = vadd.f32 %v1928, %v2186
        %v2188 = vpop.f32.mrb[0].mxu0
        %2189 = vmatprep.mubr.f32.mxu0 0.0
        %v2190 = vand.u32 %v468, 4294901760
        %2191 = vmatmul.mubr.f32.gmra.mrb[0].mxu0 %v2190
        %v2192 = vpop.f32.mrb[0].mxu0
        %v2193 = vadd.f32 %v1934, %v2192
        %v2194 = vpop.f32.mrb[0].mxu0
        %2195 = vmatprep.mubr.f32.mxu0 0.0
        %v2196 = vand.u32 %v471, 4294901760
        %2197 = vmatmul.mubr.f32.gmra.mrb[0].mxu0 %v2196
        %v2198 = vpop.f32.mrb[0].mxu0
        %v2199 = vadd.f32 %v1940, %v2198
        %v2200 = vpop.f32.mrb[0].mxu0
        %2201 = vmatprep.mubr.f32.mxu0 0.0
        %v2202 = vand.u32 %v474, 4294901760
        %2203 = vmatmul.mubr.f32.gmra.mrb[0].mxu0 %v2202
        %v2204 = vpop.f32.mrb[0].mxu0
        %v2205 = vadd.f32 %v1946, %v2204
        %v2206 = vpop.f32.mrb[0].mxu0
        %2207 = vmatprep.mubr.f32.mxu0 0.0
        %v2208 = vand.u32 %v477, 4294901760
        %2209 = vmatmul.mubr.f32.gmra.mrb[0].mxu0 %v2208
        %v2210 = vpop.f32.mrb[0].mxu0
        %v2211 = vadd.f32 %v1952, %v2210
        %v2212 = vpop.f32.mrb[0].mxu0
        %2213 = vmatprep.mubr.f32.mxu0 0.0
        %v2214 = vand.u32 %v480, 4294901760
        %2215 = vmatmul.mubr.f32.gmra.mrb[0].mxu0 %v2214
        %v2216 = vpop.f32.mrb[0].mxu0
        %v2217 = vadd.f32 %v1958, %v2216
        %v2218 = vpop.f32.mrb[0].mxu0
        %2219 = vmatprep.mubr.f32.mxu0 0.0
        %v2220 = vand.u32 %v483, 4294901760
        %2221 = vmatmul.mubr.f32.gmra.mrb[0].mxu0 %v2220
        %v2222 = vpop.f32.mrb[0].mxu0
        %v2223 = vadd.f32 %v1964, %v2222
        %v2224 = vpop.f32.mrb[0].mxu0
        %2225 = vmatprep.mubr.f32.mxu0 0.0
        %v2226 = vand.u32 %v486, 4294901760
        %2227 = vmatmul.mubr.f32.gmra.mrb[0].mxu0 %v2226
        %v2228 = vpop.f32.mrb[0].mxu0
        %v2229 = vadd.f32 %v1970, %v2228
        %v2230 = vpop.f32.mrb[0].mxu0
        %2231 = vmatprep.mubr.f32.mxu0 0.0
        %v2232 = vand.u32 %v489, 4294901760
        %2233 = vmatmul.mubr.f32.gmra.mrb[0].mxu0 %v2232
        %v2234 = vpop.f32.mrb[0].mxu0
        %v2235 = vadd.f32 %v1976, %v2234
        %v2236 = vpop.f32.mrb[0].mxu0
        %2237 = vmatprep.mubr.f32.mxu0 0.0
        %v2238 = vand.u32 %v492, 4294901760
        %2239 = vmatmul.mubr.f32.gmra.mrb[0].mxu0 %v2238
        %v2240 = vpop.f32.mrb[0].mxu0
        %v2241 = vadd.f32 %v1982, %v2240
        %v2242 = vpop.f32.mrb[0].mxu0
        %2243 = vmatprep.mubr.f32.mxu0 0.0
        %v2244 = vand.u32 %v495, 4294901760
        %2245 = vmatmul.mubr.f32.gmra.mrb[0].mxu0 %v2244
        %v2246 = vpop.f32.mrb[0].mxu0
        %v2247 = vadd.f32 %v1988, %v2246
        %v2248 = vpop.f32.mrb[0].mxu0
        %2249 = vmatprep.mubr.f32.mxu0 0.0
        %v2250 = vand.u32 %v498, 4294901760
        %2251 = vmatmul.mubr.f32.gmra.mrb[0].mxu0 %v2250
        %v2252 = vpop.f32.mrb[0].mxu0
        %v2253 = vadd.f32 %v1994, %v2252
        %v2254 = vpop.f32.mrb[0].mxu0
        %2255 = vmatprep.mubr.f32.mxu0 0.0
        %v2256 = vand.u32 %v501, 4294901760
        %2257 = vmatmul.mubr.f32.gmra.mrb[0].mxu0 %v2256
        %v2258 = vpop.f32.mrb[0].mxu0
        %v2259 = vadd.f32 %v2000, %v2258
        %v2260 = vpop.f32.mrb[0].mxu0
        %2261 = vmatprep.mubr.f32.mxu0 0.0
        %v2262 = vand.u32 %v504, 4294901760
        %2263 = vmatmul.mubr.f32.gmra.mrb[0].mxu0 %v2262
        %v2264 = vpop.f32.mrb[0].mxu0
        %v2265 = vadd.f32 %v2006, %v2264
        %v2266 = vpop.f32.mrb[0].mxu0
        %2267 = vmatprep.mubr.f32.mxu0 0.0
        %v2268 = vand.u32 %v507, 4294901760
        %2269 = vmatmul.mubr.f32.gmra.mrb[0].mxu0 %v2268
        %v2270 = vpop.f32.mrb[0].mxu0
        %v2271 = vadd.f32 %v2012, %v2270
        %v2272 = vpop.f32.mrb[0].mxu0
        %2273 = vmatprep.mubr.f32.mxu0 0.0
        %v2274 = vand.u32 %v510, 4294901760
        %2275 = vmatmul.mubr.f32.gmra.mrb[0].mxu0 %v2274
        %v2276 = vpop.f32.mrb[0].mxu0
        %v2277 = vadd.f32 %v2018, %v2276
        %v2278 = vpop.f32.mrb[0].mxu0
        %2279 = vmatprep.mubr.f32.mxu0 0.0
        %v2280 = vand.u32 %v513, 4294901760
        %2281 = vmatmul.mubr.f32.gmra.mrb[0].mxu0 %v2280
        %v2282 = vpop.f32.mrb[0].mxu0
        %v2283 = vadd.f32 %v2024, %v2282
        %v2284 = vpop.f32.mrb[0].mxu0
        %2285 = vmatprep.mubr.f32.mxu0 0.0
        %v2286 = vand.u32 %v516, 4294901760
        %2287 = vmatmul.mubr.f32.gmra.mrb[0].mxu0 %v2286
        %v2288 = vpop.f32.mrb[0].mxu0
        %v2289 = vadd.f32 %v2030, %v2288
        %v2290 = vpop.f32.mrb[0].mxu0
        %2291 = vmatprep.mubr.f32.mxu0 0.0
        %v2292 = vand.u32 %v519, 4294901760
        %2293 = vmatmul.mubr.f32.gmra.mrb[0].mxu0 %v2292
        %v2294 = vpop.f32.mrb[0].mxu0
        %v2295 = vadd.f32 %v2036, %v2294
        %v2296 = vpop.f32.mrb[0].mxu0
        %2297 = vmatprep.mubr.f32.mxu0 0.0
        %v2298 = vand.u32 %v522, 4294901760
        %2299 = vmatmul.mubr.f32.gmra.mrb[0].mxu0 %v2298
        %v2300 = vpop.f32.mrb[0].mxu0
        %v2301 = vadd.f32 %v2042, %v2300
        %v2302 = vpop.f32.mrb[0].mxu0
        %2303 = vmatprep.mubr.f32.mxu0 0.0
        %v2304 = vand.u32 %v525, 4294901760
        %2305 = vmatmul.mubr.f32.gmra.mrb[0].mxu0 %v2304
        %v2306 = vpop.f32.mrb[0].mxu0
        %v2307 = vadd.f32 %v2048, %v2306
        %v2308 = vpop.f32.mrb[0].mxu0
        %2309 = vmatprep.mubr.f32.mxu0 0.0
        %v2310 = vand.u32 %v528, 4294901760
        %2311 = vmatmul.mubr.f32.gmra.mrb[0].mxu0 %v2310
        %v2312 = vpop.f32.mrb[0].mxu0
        %v2313 = vadd.f32 %v2054, %v2312
        %v2314 = vpop.f32.mrb[0].mxu0
        %2315 = vmatprep.mubr.f32.mxu0 0.0
        %v2316 = vand.u32 %v531, 4294901760
        %2317 = vmatmul.mubr.f32.gmra.mrb[0].mxu0 %v2316
        %v2318 = vpop.f32.mrb[0].mxu0
        %v2319 = vadd.f32 %v2060, %v2318
        %v2320 = vpop.f32.mrb[0].mxu0
        %2321 = vmatprep.mubr.f32.mxu0 0.0
        %v2322 = vand.u32 %v534, 4294901760
        %2323 = vmatmul.mubr.f32.gmra.mrb[0].mxu0 %v2322
        %v2324 = vpop.f32.mrb[0].mxu0
        %v2325 = vadd.f32 %v2066, %v2324
        %v2326 = vpop.f32.mrb[0].mxu0
        %2327 = vdwg.mxu0
        %v2328 = vxor.u32 %v2139, 2147483648
        %v2329 = vxor.u32 %v2145, 2147483648
        %v2330 = vxor.u32 %v2151, 2147483648
        %v2331 = vxor.u32 %v2157, 2147483648
        %v2332 = vxor.u32 %v2163, 2147483648
        %v2333 = vxor.u32 %v2169, 2147483648
        %v2334 = vxor.u32 %v2175, 2147483648
        %v2335 = vxor.u32 %v2181, 2147483648
        %v2336 = vxor.u32 %v2187, 2147483648
        %v2337 = vxor.u32 %v2193, 2147483648
        %v2338 = vxor.u32 %v2199, 2147483648
        %v2339 = vxor.u32 %v2205, 2147483648
        %v2340 = vxor.u32 %v2211, 2147483648
        %v2341 = vxor.u32 %v2217, 2147483648
        %v2342 = vxor.u32 %v2223, 2147483648
        %v2343 = vxor.u32 %v2229, 2147483648
        %v2344 = vxor.u32 %v2235, 2147483648
        %v2345 = vxor.u32 %v2241, 2147483648
        %v2346 = vxor.u32 %v2247, 2147483648
        %v2347 = vxor.u32 %v2253, 2147483648
        %v2348 = vxor.u32 %v2259, 2147483648
        %v2349 = vxor.u32 %v2265, 2147483648
        %v2350 = vxor.u32 %v2271, 2147483648
        %v2351 = vxor.u32 %v2277, 2147483648
        %v2352 = vxor.u32 %v2283, 2147483648
        %v2353 = vxor.u32 %v2289, 2147483648
        %v2354 = vxor.u32 %v2295, 2147483648
        %v2355 = vxor.u32 %v2301, 2147483648
        %v2356 = vxor.u32 %v2307, 2147483648
        %v2357 = vxor.u32 %v2313, 2147483648
        %v2358 = vxor.u32 %v2319, 2147483648
        %v2359 = vxor.u32 %v2325, 2147483648
        %v2360 = vmul.f32 %v2328, 1.442695
        %v2361 = vpow.pop %v2360
        %v2362 = vmul.f32 %v2329, 1.442695
        %v2363 = vpow.pop %v2362
        %v2364 = vmul.f32 %v2330, 1.442695
        %v2365 = vpow.pop %v2364
        %v2366 = vmul.f32 %v2331, 1.442695
        %v2367 = vpow.pop %v2366
        %v2368 = vmul.f32 %v2332, 1.442695
        %v2369 = vpow.pop %v2368
        %v2370 = vmul.f32 %v2333, 1.442695
        %v2371 = vpow.pop %v2370
        %v2372 = vmul.f32 %v2334, 1.442695
        %v2373 = vpow.pop %v2372
        %v2374 = vmul.f32 %v2335, 1.442695
        %v2375 = vpow.pop %v2374
        %v2376 = vmul.f32 %v2336, 1.442695
        %v2377 = vpow.pop %v2376
        %v2378 = vmul.f32 %v2337, 1.442695
        %v2379 = vpow.pop %v2378
        %v2380 = vmul.f32 %v2338, 1.442695
        %v2381 = vpow.pop %v2380
        %v2382 = vmul.f32 %v2339, 1.442695
        %v2383 = vpow.pop %v2382
        %v2384 = vmul.f32 %v2340, 1.442695
        %v2385 = vpow.pop %v2384
        %v2386 = vmul.f32 %v2341, 1.442695
        %v2387 = vpow.pop %v2386
        %v2388 = vmul.f32 %v2342, 1.442695
        %v2389 = vpow.pop %v2388
        %v2390 = vmul.f32 %v2343, 1.442695
        %v2391 = vpow.pop %v2390
        %v2392 = vmul.f32 %v2344, 1.442695
        %v2393 = vpow.pop %v2392
        %v2394 = vmul.f32 %v2345, 1.442695
        %v2395 = vpow.pop %v2394
        %v2396 = vmul.f32 %v2346, 1.442695
        %v2397 = vpow.pop %v2396
        %v2398 = vmul.f32 %v2347, 1.442695
        %v2399 = vpow.pop %v2398
        %v2400 = vmul.f32 %v2348, 1.442695
        %v2401 = vpow.pop %v2400
        %v2402 = vmul.f32 %v2349, 1.442695
        %v2403 = vpow.pop %v2402
        %v2404 = vmul.f32 %v2350, 1.442695
        %v2405 = vpow.pop %v2404
        %v2406 = vmul.f32 %v2351, 1.442695
        %v2407 = vpow.pop %v2406
        %v2408 = vmul.f32 %v2352, 1.442695
        %v2409 = vpow.pop %v2408
        %v2410 = vmul.f32 %v2353, 1.442695
        %v2411 = vpow.pop %v2410
        %v2412 = vmul.f32 %v2354, 1.442695
        %v2413 = vpow.pop %v2412
        %v2414 = vmul.f32 %v2355, 1.442695
        %v2415 = vpow.pop %v2414
        %v2416 = vmul.f32 %v2356, 1.442695
        %v2417 = vpow.pop %v2416
        %v2418 = vmul.f32 %v2357, 1.442695
        %v2419 = vpow.pop %v2418
        %v2420 = vmul.f32 %v2358, 1.442695
        %v2421 = vpow.pop %v2420
        %v2422 = vmul.f32 %v2359, 1.442695
        %v2423 = vpow.pop %v2422
        %v2424 = vadd.f32 %v2361, 1.0
        %v2425 = vadd.f32 %v2363, 1.0
        %v2426 = vadd.f32 %v2365, 1.0
        %v2427 = vadd.f32 %v2367, 1.0
        %v2428 = vadd.f32 %v2369, 1.0
        %v2429 = vadd.f32 %v2371, 1.0
        %v2430 = vadd.f32 %v2373, 1.0
        %v2431 = vadd.f32 %v2375, 1.0
        %v2432 = vadd.f32 %v2377, 1.0
        %v2433 = vadd.f32 %v2379, 1.0
        %v2434 = vadd.f32 %v2381, 1.0
        %v2435 = vadd.f32 %v2383, 1.0
        %v2436 = vadd.f32 %v2385, 1.0
        %v2437 = vadd.f32 %v2387, 1.0
        %v2438 = vadd.f32 %v2389, 1.0
        %v2439 = vadd.f32 %v2391, 1.0
        %v2440 = vadd.f32 %v2393, 1.0
        %v2441 = vadd.f32 %v2395, 1.0
        %v2442 = vadd.f32 %v2397, 1.0
        %v2443 = vadd.f32 %v2399, 1.0
        %v2444 = vadd.f32 %v2401, 1.0
        %v2445 = vadd.f32 %v2403, 1.0
        %v2446 = vadd.f32 %v2405, 1.0
        %v2447 = vadd.f32 %v2407, 1.0
        %v2448 = vadd.f32 %v2409, 1.0
        %v2449 = vadd.f32 %v2411, 1.0
        %v2450 = vadd.f32 %v2413, 1.0
        %v2451 = vadd.f32 %v2415, 1.0
        %v2452 = vadd.f32 %v2417, 1.0
        %v2453 = vadd.f32 %v2419, 1.0
        %v2454 = vadd.f32 %v2421, 1.0
        %v2455 = vadd.f32 %v2423, 1.0
        %v2456 = vrcp.pop %v2424
        %v2457 = vmul.f32 1.0, %v2456
        %v2458 = vrcp.pop %v2425
        %v2459 = vmul.f32 1.0, %v2458
        %v2460 = vrcp.pop %v2426
        %v2461 = vmul.f32 1.0, %v2460
        %v2462 = vrcp.pop %v2427
        %v2463 = vmul.f32 1.0, %v2462
        %v2464 = vrcp.pop %v2428
        %v2465 = vmul.f32 1.0, %v2464
        %v2466 = vrcp.pop %v2429
        %v2467 = vmul.f32 1.0, %v2466
        %v2468 = vrcp.pop %v2430
        %v2469 = vmul.f32 1.0, %v2468
        %v2470 = vrcp.pop %v2431
        %v2471 = vmul.f32 1.0, %v2470
        %v2472 = vrcp.pop %v2432
        %v2473 = vmul.f32 1.0, %v2472
        %v2474 = vrcp.pop %v2433
        %v2475 = vmul.f32 1.0, %v2474
        %v2476 = vrcp.pop %v2434
        %v2477 = vmul.f32 1.0, %v2476
        %v2478 = vrcp.pop %v2435
        %v2479 = vmul.f32 1.0, %v2478
        %v2480 = vrcp.pop %v2436
        %v2481 = vmul.f32 1.0, %v2480
        %v2482 = vrcp.pop %v2437
        %v2483 = vmul.f32 1.0, %v2482
        %v2484 = vrcp.pop %v2438
        %v2485 = vmul.f32 1.0, %v2484
        %v2486 = vrcp.pop %v2439
        %v2487 = vmul.f32 1.0, %v2486
        %v2488 = vrcp.pop %v2440
        %v2489 = vmul.f32 1.0, %v2488
        %v2490 = vrcp.pop %v2441
        %v2491 = vmul.f32 1.0, %v2490
        %v2492 = vrcp.pop %v2442
        %v2493 = vmul.f32 1.0, %v2492
        %v2494 = vrcp.pop %v2443
        %v2495 = vmul.f32 1.0, %v2494
        %v2496 = vrcp.pop %v2444
        %v2497 = vmul.f32 1.0, %v2496
        %v2498 = vrcp.pop %v2445
        %v2499 = vmul.f32 1.0, %v2498
        %v2500 = vrcp.pop %v2446
        %v2501 = vmul.f32 1.0, %v2500
        %v2502 = vrcp.pop %v2447
        %v2503 = vmul.f32 1.0, %v2502
        %v2504 = vrcp.pop %v2448
        %v2505 = vmul.f32 1.0, %v2504
        %v2506 = vrcp.pop %v2449
        %v2507 = vmul.f32 1.0, %v2506
        %v2508 = vrcp.pop %v2450
        %v2509 = vmul.f32 1.0, %v2508
        %v2510 = vrcp.pop %v2451
        %v2511 = vmul.f32 1.0, %v2510
        %v2512 = vrcp.pop %v2452
        %v2513 = vmul.f32 1.0, %v2512
        %v2514 = vrcp.pop %v2453
        %v2515 = vmul.f32 1.0, %v2514
        %v2516 = vrcp.pop %v2454
        %v2517 = vmul.f32 1.0, %v2516
        %v2518 = vrcp.pop %v2455
        %v2519 = vmul.f32 1.0, %v2518
        %v2520 = vlaneseq
        %v2521 = vand.u32 %v2520, 127
        %vm2522 = vcmp.ge.s32.totalorder %v2521, 20
        %v2523 = vsub.s32 %v2521, 20
        %v2524 = vsel %vm2522, %v2523, %v2521
        %vm2525 = vcmp.ge.s32.totalorder %v2521, 40
        %v2526 = vsub.s32 %v2521, 40
        %v2527 = vsel %vm2525, %v2526, %v2524
        %vm2528 = vcmp.eq.s32.totalorder %v2527, 0
        %vm2529 = vcmp.eq.s32.totalorder %v2527, 1
        %vm2530 = vcmp.lt.s32.totalorder %v2527, 2
        %vm2531 = vcmp.ge.s32.totalorder %v2527, 2
        %vm2532 = vcmp.lt.s32.totalorder %v2527, 4
        %vm2533 = vmand %vm2531, %vm2532
        %s2534 = smul.u32 %s27, 256
        %v2535 = vlaneseq
        %v2536 = vshrl.u32 %v2535, 7
        %v2537 = vadd.s32 %v2536, 8
        %v2538 = vadd.s32 %v2536, 16
        %v2539 = vadd.s32 %v2536, 24
        %v2540 = vadd.s32 %v2536, 32
        %v2541 = vadd.s32 %v2536, 40
        %v2542 = vadd.s32 %v2536, 48
        %v2543 = vadd.s32 %v2536, 56
        %v2544 = vadd.s32 %v2536, 64
        %v2545 = vadd.s32 %v2536, 72
        %v2546 = vadd.s32 %v2536, 80
        %v2547 = vadd.s32 %v2536, 88
        %v2548 = vadd.s32 %v2536, 96
        %v2549 = vadd.s32 %v2536, 104
        %v2550 = vadd.s32 %v2536, 112
        %v2551 = vadd.s32 %v2536, 120
        %v2552 = vadd.s32 %v2536, 128
        %v2553 = vadd.s32 %v2536, 136
        %v2554 = vadd.s32 %v2536, 144
        %v2555 = vadd.s32 %v2536, 152
        %v2556 = vadd.s32 %v2536, 160
        %v2557 = vadd.s32 %v2536, 168
        %v2558 = vadd.s32 %v2536, 176
        %v2559 = vadd.s32 %v2536, 184
        %v2560 = vadd.s32 %v2536, 192
        %v2561 = vadd.s32 %v2536, 200
        %v2562 = vadd.s32 %v2536, 208
        %v2563 = vadd.s32 %v2536, 216
        %v2564 = vadd.s32 %v2536, 224
        %v2565 = vadd.s32 %v2536, 232
        %v2566 = vadd.s32 %v2536, 240
        %v2567 = vadd.s32 %v2536, 248
        %v2568 = vstv %s2534
        %v2569 = vadd.s32 %v2568, %v2536
        %v2570 = vadd.s32 %v2568, %v2537
        %v2571 = vadd.s32 %v2568, %v2538
        %v2572 = vadd.s32 %v2568, %v2539
        %v2573 = vadd.s32 %v2568, %v2540
        %v2574 = vadd.s32 %v2568, %v2541
        %v2575 = vadd.s32 %v2568, %v2542
        %v2576 = vadd.s32 %v2568, %v2543
        %v2577 = vadd.s32 %v2568, %v2544
        %v2578 = vadd.s32 %v2568, %v2545
        %v2579 = vadd.s32 %v2568, %v2546
        %v2580 = vadd.s32 %v2568, %v2547
        %v2581 = vadd.s32 %v2568, %v2548
        %v2582 = vadd.s32 %v2568, %v2549
        %v2583 = vadd.s32 %v2568, %v2550
        %v2584 = vadd.s32 %v2568, %v2551
        %v2585 = vadd.s32 %v2568, %v2552
        %v2586 = vadd.s32 %v2568, %v2553
        %v2587 = vadd.s32 %v2568, %v2554
        %v2588 = vadd.s32 %v2568, %v2555
        %v2589 = vadd.s32 %v2568, %v2556
        %v2590 = vadd.s32 %v2568, %v2557
        %v2591 = vadd.s32 %v2568, %v2558
        %v2592 = vadd.s32 %v2568, %v2559
        %v2593 = vadd.s32 %v2568, %v2560
        %v2594 = vadd.s32 %v2568, %v2561
        %v2595 = vadd.s32 %v2568, %v2562
        %v2596 = vadd.s32 %v2568, %v2563
        %v2597 = vadd.s32 %v2568, %v2564
        %v2598 = vadd.s32 %v2568, %v2565
        %v2599 = vadd.s32 %v2568, %v2566
        %v2600 = vadd.s32 %v2568, %v2567
        %v2601 = vcvt.s32.f32 %v2569
        %v2602 = vcvt.s32.f32 %v2570
        %v2603 = vcvt.s32.f32 %v2571
        %v2604 = vcvt.s32.f32 %v2572
        %v2605 = vcvt.s32.f32 %v2573
        %v2606 = vcvt.s32.f32 %v2574
        %v2607 = vcvt.s32.f32 %v2575
        %v2608 = vcvt.s32.f32 %v2576
        %v2609 = vcvt.s32.f32 %v2577
        %v2610 = vcvt.s32.f32 %v2578
        %v2611 = vcvt.s32.f32 %v2579
        %v2612 = vcvt.s32.f32 %v2580
        %v2613 = vcvt.s32.f32 %v2581
        %v2614 = vcvt.s32.f32 %v2582
        %v2615 = vcvt.s32.f32 %v2583
        %v2616 = vcvt.s32.f32 %v2584
        %v2617 = vcvt.s32.f32 %v2585
        %v2618 = vcvt.s32.f32 %v2586
        %v2619 = vcvt.s32.f32 %v2587
        %v2620 = vcvt.s32.f32 %v2588
        %v2621 = vcvt.s32.f32 %v2589
        %v2622 = vcvt.s32.f32 %v2590
        %v2623 = vcvt.s32.f32 %v2591
        %v2624 = vcvt.s32.f32 %v2592
        %v2625 = vcvt.s32.f32 %v2593
        %v2626 = vcvt.s32.f32 %v2594
        %v2627 = vcvt.s32.f32 %v2595
        %v2628 = vcvt.s32.f32 %v2596
        %v2629 = vcvt.s32.f32 %v2597
        %v2630 = vcvt.s32.f32 %v2598
        %v2631 = vcvt.s32.f32 %v2599
        %v2632 = vcvt.s32.f32 %v2600
        %v2633 = vrcp.pop 16.0
        %v2634 = vmul.f32 %v2601, %v2633
        %v2635 = vmul.f32 %v2602, %v2633
        %v2636 = vmul.f32 %v2603, %v2633
        %v2637 = vmul.f32 %v2604, %v2633
        %v2638 = vmul.f32 %v2605, %v2633
        %v2639 = vmul.f32 %v2606, %v2633
        %v2640 = vmul.f32 %v2607, %v2633
        %v2641 = vmul.f32 %v2608, %v2633
        %v2642 = vmul.f32 %v2609, %v2633
        %v2643 = vmul.f32 %v2610, %v2633
        %v2644 = vmul.f32 %v2611, %v2633
        %v2645 = vmul.f32 %v2612, %v2633
        %v2646 = vmul.f32 %v2613, %v2633
        %v2647 = vmul.f32 %v2614, %v2633
        %v2648 = vmul.f32 %v2615, %v2633
        %v2649 = vmul.f32 %v2616, %v2633
        %v2650 = vmul.f32 %v2617, %v2633
        %v2651 = vmul.f32 %v2618, %v2633
        %v2652 = vmul.f32 %v2619, %v2633
        %v2653 = vmul.f32 %v2620, %v2633
        %v2654 = vmul.f32 %v2621, %v2633
        %v2655 = vmul.f32 %v2622, %v2633
        %v2656 = vmul.f32 %v2623, %v2633
        %v2657 = vmul.f32 %v2624, %v2633
        %v2658 = vmul.f32 %v2625, %v2633
        %v2659 = vmul.f32 %v2626, %v2633
        %v2660 = vmul.f32 %v2627, %v2633
        %v2661 = vmul.f32 %v2628, %v2633
        %v2662 = vmul.f32 %v2629, %v2633
        %v2663 = vmul.f32 %v2630, %v2633
        %v2664 = vmul.f32 %v2631, %v2633
        %v2665 = vmul.f32 %v2632, %v2633
        %v2666 = vfloor.f32 %v2634
        %v2667 = vfloor.f32 %v2635
        %v2668 = vfloor.f32 %v2636
        %v2669 = vfloor.f32 %v2637
        %v2670 = vfloor.f32 %v2638
        %v2671 = vfloor.f32 %v2639
        %v2672 = vfloor.f32 %v2640
        %v2673 = vfloor.f32 %v2641
        %v2674 = vfloor.f32 %v2642
        %v2675 = vfloor.f32 %v2643
        %v2676 = vfloor.f32 %v2644
        %v2677 = vfloor.f32 %v2645
        %v2678 = vfloor.f32 %v2646
        %v2679 = vfloor.f32 %v2647
        %v2680 = vfloor.f32 %v2648
        %v2681 = vfloor.f32 %v2649
        %v2682 = vfloor.f32 %v2650
        %v2683 = vfloor.f32 %v2651
        %v2684 = vfloor.f32 %v2652
        %v2685 = vfloor.f32 %v2653
        %v2686 = vfloor.f32 %v2654
        %v2687 = vfloor.f32 %v2655
        %v2688 = vfloor.f32 %v2656
        %v2689 = vfloor.f32 %v2657
        %v2690 = vfloor.f32 %v2658
        %v2691 = vfloor.f32 %v2659
        %v2692 = vfloor.f32 %v2660
        %v2693 = vfloor.f32 %v2661
        %v2694 = vfloor.f32 %v2662
        %v2695 = vfloor.f32 %v2663
        %v2696 = vfloor.f32 %v2664
        %v2697 = vfloor.f32 %v2665
        %v2698 = vmul.f32 %v2666, 16.0
        %v2699 = vmul.f32 %v2667, 16.0
        %v2700 = vmul.f32 %v2668, 16.0
        %v2701 = vmul.f32 %v2669, 16.0
        %v2702 = vmul.f32 %v2670, 16.0
        %v2703 = vmul.f32 %v2671, 16.0
        %v2704 = vmul.f32 %v2672, 16.0
        %v2705 = vmul.f32 %v2673, 16.0
        %v2706 = vmul.f32 %v2674, 16.0
        %v2707 = vmul.f32 %v2675, 16.0
        %v2708 = vmul.f32 %v2676, 16.0
        %v2709 = vmul.f32 %v2677, 16.0
        %v2710 = vmul.f32 %v2678, 16.0
        %v2711 = vmul.f32 %v2679, 16.0
        %v2712 = vmul.f32 %v2680, 16.0
        %v2713 = vmul.f32 %v2681, 16.0
        %v2714 = vmul.f32 %v2682, 16.0
        %v2715 = vmul.f32 %v2683, 16.0
        %v2716 = vmul.f32 %v2684, 16.0
        %v2717 = vmul.f32 %v2685, 16.0
        %v2718 = vmul.f32 %v2686, 16.0
        %v2719 = vmul.f32 %v2687, 16.0
        %v2720 = vmul.f32 %v2688, 16.0
        %v2721 = vmul.f32 %v2689, 16.0
        %v2722 = vmul.f32 %v2690, 16.0
        %v2723 = vmul.f32 %v2691, 16.0
        %v2724 = vmul.f32 %v2692, 16.0
        %v2725 = vmul.f32 %v2693, 16.0
        %v2726 = vmul.f32 %v2694, 16.0
        %v2727 = vmul.f32 %v2695, 16.0
        %v2728 = vmul.f32 %v2696, 16.0
        %v2729 = vmul.f32 %v2697, 16.0
        %v2730 = vsub.f32 %v2601, %v2698
        %v2731 = vsub.f32 %v2602, %v2699
        %v2732 = vsub.f32 %v2603, %v2700
        %v2733 = vsub.f32 %v2604, %v2701
        %v2734 = vsub.f32 %v2605, %v2702
        %v2735 = vsub.f32 %v2606, %v2703
        %v2736 = vsub.f32 %v2607, %v2704
        %v2737 = vsub.f32 %v2608, %v2705
        %v2738 = vsub.f32 %v2609, %v2706
        %v2739 = vsub.f32 %v2610, %v2707
        %v2740 = vsub.f32 %v2611, %v2708
        %v2741 = vsub.f32 %v2612, %v2709
        %v2742 = vsub.f32 %v2613, %v2710
        %v2743 = vsub.f32 %v2614, %v2711
        %v2744 = vsub.f32 %v2615, %v2712
        %v2745 = vsub.f32 %v2616, %v2713
        %v2746 = vsub.f32 %v2617, %v2714
        %v2747 = vsub.f32 %v2618, %v2715
        %v2748 = vsub.f32 %v2619, %v2716
        %v2749 = vsub.f32 %v2620, %v2717
        %v2750 = vsub.f32 %v2621, %v2718
        %v2751 = vsub.f32 %v2622, %v2719
        %v2752 = vsub.f32 %v2623, %v2720
        %v2753 = vsub.f32 %v2624, %v2721
        %v2754 = vsub.f32 %v2625, %v2722
        %v2755 = vsub.f32 %v2626, %v2723
        %v2756 = vsub.f32 %v2627, %v2724
        %v2757 = vsub.f32 %v2628, %v2725
        %v2758 = vsub.f32 %v2629, %v2726
        %v2759 = vsub.f32 %v2630, %v2727
        %v2760 = vsub.f32 %v2631, %v2728
        %v2761 = vsub.f32 %v2632, %v2729
        %v2762 = vsel %vm2528, 1, 0
        %vm2763 = vcmp.eq.s32.totalorder %v2762, 1
        %v2764 = vsel %vm2763, %v2730, 0.0
        %v2765 = vsel %vm2763, %v2731, 0.0
        %v2766 = vsel %vm2763, %v2732, 0.0
        %v2767 = vsel %vm2763, %v2733, 0.0
        %v2768 = vsel %vm2763, %v2734, 0.0
        %v2769 = vsel %vm2763, %v2735, 0.0
        %v2770 = vsel %vm2763, %v2736, 0.0
        %v2771 = vsel %vm2763, %v2737, 0.0
        %v2772 = vsel %vm2763, %v2738, 0.0
        %v2773 = vsel %vm2763, %v2739, 0.0
        %v2774 = vsel %vm2763, %v2740, 0.0
        %v2775 = vsel %vm2763, %v2741, 0.0
        %v2776 = vsel %vm2763, %v2742, 0.0
        %v2777 = vsel %vm2763, %v2743, 0.0
        %v2778 = vsel %vm2763, %v2744, 0.0
        %v2779 = vsel %vm2763, %v2745, 0.0
        %v2780 = vsel %vm2763, %v2746, 0.0
        %v2781 = vsel %vm2763, %v2747, 0.0
        %v2782 = vsel %vm2763, %v2748, 0.0
        %v2783 = vsel %vm2763, %v2749, 0.0
        %v2784 = vsel %vm2763, %v2750, 0.0
        %v2785 = vsel %vm2763, %v2751, 0.0
        %v2786 = vsel %vm2763, %v2752, 0.0
        %v2787 = vsel %vm2763, %v2753, 0.0
        %v2788 = vsel %vm2763, %v2754, 0.0
        %v2789 = vsel %vm2763, %v2755, 0.0
        %v2790 = vsel %vm2763, %v2756, 0.0
        %v2791 = vsel %vm2763, %v2757, 0.0
        %v2792 = vsel %vm2763, %v2758, 0.0
        %v2793 = vsel %vm2763, %v2759, 0.0
        %v2794 = vsel %vm2763, %v2760, 0.0
        %v2795 = vsel %vm2763, %v2761, 0.0
        %v2796 = vsel %vm2529, 1, 0
        %vm2797 = vcmp.eq.s32.totalorder %v2796, 1
        %v2798 = vsel %vm2797, %v2666, 0.0
        %v2799 = vsel %vm2797, %v2667, 0.0
        %v2800 = vsel %vm2797, %v2668, 0.0
        %v2801 = vsel %vm2797, %v2669, 0.0
        %v2802 = vsel %vm2797, %v2670, 0.0
        %v2803 = vsel %vm2797, %v2671, 0.0
        %v2804 = vsel %vm2797, %v2672, 0.0
        %v2805 = vsel %vm2797, %v2673, 0.0
        %v2806 = vsel %vm2797, %v2674, 0.0
        %v2807 = vsel %vm2797, %v2675, 0.0
        %v2808 = vsel %vm2797, %v2676, 0.0
        %v2809 = vsel %vm2797, %v2677, 0.0
        %v2810 = vsel %vm2797, %v2678, 0.0
        %v2811 = vsel %vm2797, %v2679, 0.0
        %v2812 = vsel %vm2797, %v2680, 0.0
        %v2813 = vsel %vm2797, %v2681, 0.0
        %v2814 = vsel %vm2797, %v2682, 0.0
        %v2815 = vsel %vm2797, %v2683, 0.0
        %v2816 = vsel %vm2797, %v2684, 0.0
        %v2817 = vsel %vm2797, %v2685, 0.0
        %v2818 = vsel %vm2797, %v2686, 0.0
        %v2819 = vsel %vm2797, %v2687, 0.0
        %v2820 = vsel %vm2797, %v2688, 0.0
        %v2821 = vsel %vm2797, %v2689, 0.0
        %v2822 = vsel %vm2797, %v2690, 0.0
        %v2823 = vsel %vm2797, %v2691, 0.0
        %v2824 = vsel %vm2797, %v2692, 0.0
        %v2825 = vsel %vm2797, %v2693, 0.0
        %v2826 = vsel %vm2797, %v2694, 0.0
        %v2827 = vsel %vm2797, %v2695, 0.0
        %v2828 = vsel %vm2797, %v2696, 0.0
        %v2829 = vsel %vm2797, %v2697, 0.0
        %v2830 = vadd.f32 %v2764, %v2798
        %v2831 = vadd.f32 %v2765, %v2799
        %v2832 = vadd.f32 %v2766, %v2800
        %v2833 = vadd.f32 %v2767, %v2801
        %v2834 = vadd.f32 %v2768, %v2802
        %v2835 = vadd.f32 %v2769, %v2803
        %v2836 = vadd.f32 %v2770, %v2804
        %v2837 = vadd.f32 %v2771, %v2805
        %v2838 = vadd.f32 %v2772, %v2806
        %v2839 = vadd.f32 %v2773, %v2807
        %v2840 = vadd.f32 %v2774, %v2808
        %v2841 = vadd.f32 %v2775, %v2809
        %v2842 = vadd.f32 %v2776, %v2810
        %v2843 = vadd.f32 %v2777, %v2811
        %v2844 = vadd.f32 %v2778, %v2812
        %v2845 = vadd.f32 %v2779, %v2813
        %v2846 = vadd.f32 %v2780, %v2814
        %v2847 = vadd.f32 %v2781, %v2815
        %v2848 = vadd.f32 %v2782, %v2816
        %v2849 = vadd.f32 %v2783, %v2817
        %v2850 = vadd.f32 %v2784, %v2818
        %v2851 = vadd.f32 %v2785, %v2819
        %v2852 = vadd.f32 %v2786, %v2820
        %v2853 = vadd.f32 %v2787, %v2821
        %v2854 = vadd.f32 %v2788, %v2822
        %v2855 = vadd.f32 %v2789, %v2823
        %v2856 = vadd.f32 %v2790, %v2824
        %v2857 = vadd.f32 %v2791, %v2825
        %v2858 = vadd.f32 %v2792, %v2826
        %v2859 = vadd.f32 %v2793, %v2827
        %v2860 = vadd.f32 %v2794, %v2828
        %v2861 = vadd.f32 %v2795, %v2829
        %v2862 = vmul.f32 %v2457, 2.0
        %v2863 = vmul.f32 %v2459, 2.0
        %v2864 = vmul.f32 %v2461, 2.0
        %v2865 = vmul.f32 %v2463, 2.0
        %v2866 = vmul.f32 %v2465, 2.0
        %v2867 = vmul.f32 %v2467, 2.0
        %v2868 = vmul.f32 %v2469, 2.0
        %v2869 = vmul.f32 %v2471, 2.0
        %v2870 = vmul.f32 %v2473, 2.0
        %v2871 = vmul.f32 %v2475, 2.0
        %v2872 = vmul.f32 %v2477, 2.0
        %v2873 = vmul.f32 %v2479, 2.0
        %v2874 = vmul.f32 %v2481, 2.0
        %v2875 = vmul.f32 %v2483, 2.0
        %v2876 = vmul.f32 %v2485, 2.0
        %v2877 = vmul.f32 %v2487, 2.0
        %v2878 = vmul.f32 %v2489, 2.0
        %v2879 = vmul.f32 %v2491, 2.0
        %v2880 = vmul.f32 %v2493, 2.0
        %v2881 = vmul.f32 %v2495, 2.0
        %v2882 = vmul.f32 %v2497, 2.0
        %v2883 = vmul.f32 %v2499, 2.0
        %v2884 = vmul.f32 %v2501, 2.0
        %v2885 = vmul.f32 %v2503, 2.0
        %v2886 = vmul.f32 %v2505, 2.0
        %v2887 = vmul.f32 %v2507, 2.0
        %v2888 = vmul.f32 %v2509, 2.0
        %v2889 = vmul.f32 %v2511, 2.0
        %v2890 = vmul.f32 %v2513, 2.0
        %v2891 = vmul.f32 %v2515, 2.0
        %v2892 = vmul.f32 %v2517, 2.0
        %v2893 = vmul.f32 %v2519, 2.0
        %v2894 = vsub.f32 %v2862, 0.5
        %v2895 = vsub.f32 %v2863, 0.5
        %v2896 = vsub.f32 %v2864, 0.5
        %v2897 = vsub.f32 %v2865, 0.5
        %v2898 = vsub.f32 %v2866, 0.5
        %v2899 = vsub.f32 %v2867, 0.5
        %v2900 = vsub.f32 %v2868, 0.5
        %v2901 = vsub.f32 %v2869, 0.5
        %v2902 = vsub.f32 %v2870, 0.5
        %v2903 = vsub.f32 %v2871, 0.5
        %v2904 = vsub.f32 %v2872, 0.5
        %v2905 = vsub.f32 %v2873, 0.5
        %v2906 = vsub.f32 %v2874, 0.5
        %v2907 = vsub.f32 %v2875, 0.5
        %v2908 = vsub.f32 %v2876, 0.5
        %v2909 = vsub.f32 %v2877, 0.5
        %v2910 = vsub.f32 %v2878, 0.5
        %v2911 = vsub.f32 %v2879, 0.5
        %v2912 = vsub.f32 %v2880, 0.5
        %v2913 = vsub.f32 %v2881, 0.5
        %v2914 = vsub.f32 %v2882, 0.5
        %v2915 = vsub.f32 %v2883, 0.5
        %v2916 = vsub.f32 %v2884, 0.5
        %v2917 = vsub.f32 %v2885, 0.5
        %v2918 = vsub.f32 %v2886, 0.5
        %v2919 = vsub.f32 %v2887, 0.5
        %v2920 = vsub.f32 %v2888, 0.5
        %v2921 = vsub.f32 %v2889, 0.5
        %v2922 = vsub.f32 %v2890, 0.5
        %v2923 = vsub.f32 %v2891, 0.5
        %v2924 = vsub.f32 %v2892, 0.5
        %v2925 = vsub.f32 %v2893, 0.5
        %v2926 = vadd.f32 %v2894, %v2830
        %v2927 = vadd.f32 %v2895, %v2831
        %v2928 = vadd.f32 %v2896, %v2832
        %v2929 = vadd.f32 %v2897, %v2833
        %v2930 = vadd.f32 %v2898, %v2834
        %v2931 = vadd.f32 %v2899, %v2835
        %v2932 = vadd.f32 %v2900, %v2836
        %v2933 = vadd.f32 %v2901, %v2837
        %v2934 = vadd.f32 %v2902, %v2838
        %v2935 = vadd.f32 %v2903, %v2839
        %v2936 = vadd.f32 %v2904, %v2840
        %v2937 = vadd.f32 %v2905, %v2841
        %v2938 = vadd.f32 %v2906, %v2842
        %v2939 = vadd.f32 %v2907, %v2843
        %v2940 = vadd.f32 %v2908, %v2844
        %v2941 = vadd.f32 %v2909, %v2845
        %v2942 = vadd.f32 %v2910, %v2846
        %v2943 = vadd.f32 %v2911, %v2847
        %v2944 = vadd.f32 %v2912, %v2848
        %v2945 = vadd.f32 %v2913, %v2849
        %v2946 = vadd.f32 %v2914, %v2850
        %v2947 = vadd.f32 %v2915, %v2851
        %v2948 = vadd.f32 %v2916, %v2852
        %v2949 = vadd.f32 %v2917, %v2853
        %v2950 = vadd.f32 %v2918, %v2854
        %v2951 = vadd.f32 %v2919, %v2855
        %v2952 = vadd.f32 %v2920, %v2856
        %v2953 = vadd.f32 %v2921, %v2857
        %v2954 = vadd.f32 %v2922, %v2858
        %v2955 = vadd.f32 %v2923, %v2859
        %v2956 = vadd.f32 %v2924, %v2860
        %v2957 = vadd.f32 %v2925, %v2861
        %v2958 = vmul.f32 %v2926, 8.0
        %v2959 = vmul.f32 %v2927, 8.0
        %v2960 = vmul.f32 %v2928, 8.0
        %v2961 = vmul.f32 %v2929, 8.0
        %v2962 = vmul.f32 %v2930, 8.0
        %v2963 = vmul.f32 %v2931, 8.0
        %v2964 = vmul.f32 %v2932, 8.0
        %v2965 = vmul.f32 %v2933, 8.0
        %v2966 = vmul.f32 %v2934, 8.0
        %v2967 = vmul.f32 %v2935, 8.0
        %v2968 = vmul.f32 %v2936, 8.0
        %v2969 = vmul.f32 %v2937, 8.0
        %v2970 = vmul.f32 %v2938, 8.0
        %v2971 = vmul.f32 %v2939, 8.0
        %v2972 = vmul.f32 %v2940, 8.0
        %v2973 = vmul.f32 %v2941, 8.0
        %v2974 = vmul.f32 %v2942, 8.0
        %v2975 = vmul.f32 %v2943, 8.0
        %v2976 = vmul.f32 %v2944, 8.0
        %v2977 = vmul.f32 %v2945, 8.0
        %v2978 = vmul.f32 %v2946, 8.0
        %v2979 = vmul.f32 %v2947, 8.0
        %v2980 = vmul.f32 %v2948, 8.0
        %v2981 = vmul.f32 %v2949, 8.0
        %v2982 = vmul.f32 %v2950, 8.0
        %v2983 = vmul.f32 %v2951, 8.0
        %v2984 = vmul.f32 %v2952, 8.0
        %v2985 = vmul.f32 %v2953, 8.0
        %v2986 = vmul.f32 %v2954, 8.0
        %v2987 = vmul.f32 %v2955, 8.0
        %v2988 = vmul.f32 %v2956, 8.0
        %v2989 = vmul.f32 %v2957, 8.0
        %v2990 = vmul.f32 %v2862, %v2862
        %v2991 = vmul.f32 %v2863, %v2863
        %v2992 = vmul.f32 %v2864, %v2864
        %v2993 = vmul.f32 %v2865, %v2865
        %v2994 = vmul.f32 %v2866, %v2866
        %v2995 = vmul.f32 %v2867, %v2867
        %v2996 = vmul.f32 %v2868, %v2868
        %v2997 = vmul.f32 %v2869, %v2869
        %v2998 = vmul.f32 %v2870, %v2870
        %v2999 = vmul.f32 %v2871, %v2871
        %v3000 = vmul.f32 %v2872, %v2872
        %v3001 = vmul.f32 %v2873, %v2873
        %v3002 = vmul.f32 %v2874, %v2874
        %v3003 = vmul.f32 %v2875, %v2875
        %v3004 = vmul.f32 %v2876, %v2876
        %v3005 = vmul.f32 %v2877, %v2877
        %v3006 = vmul.f32 %v2878, %v2878
        %v3007 = vmul.f32 %v2879, %v2879
        %v3008 = vmul.f32 %v2880, %v2880
        %v3009 = vmul.f32 %v2881, %v2881
        %v3010 = vmul.f32 %v2882, %v2882
        %v3011 = vmul.f32 %v2883, %v2883
        %v3012 = vmul.f32 %v2884, %v2884
        %v3013 = vmul.f32 %v2885, %v2885
        %v3014 = vmul.f32 %v2886, %v2886
        %v3015 = vmul.f32 %v2887, %v2887
        %v3016 = vmul.f32 %v2888, %v2888
        %v3017 = vmul.f32 %v2889, %v2889
        %v3018 = vmul.f32 %v2890, %v2890
        %v3019 = vmul.f32 %v2891, %v2891
        %v3020 = vmul.f32 %v2892, %v2892
        %v3021 = vmul.f32 %v2893, %v2893
        %v3022 = vld [vmem:[%s3] sm:$0x1]
        %v3024 = vlaneseq
        %v3025 = vshrl.u32 %v3024, 7
        %v3026 = vsub.s32 0, %v3025
        %v3027 = vrot.slane %v3022, %v3026
        %v3029 = vmul.f32 %v2990, %v3027
        %v3030 = vmul.f32 %v2991, %v3027
        %v3031 = vmul.f32 %v2992, %v3027
        %v3032 = vmul.f32 %v2993, %v3027
        %v3033 = vmul.f32 %v2994, %v3027
        %v3034 = vmul.f32 %v2995, %v3027
        %v3035 = vmul.f32 %v2996, %v3027
        %v3036 = vmul.f32 %v2997, %v3027
        %v3037 = vmul.f32 %v2998, %v3027
        %v3038 = vmul.f32 %v2999, %v3027
        %v3039 = vmul.f32 %v3000, %v3027
        %v3040 = vmul.f32 %v3001, %v3027
        %v3041 = vmul.f32 %v3002, %v3027
        %v3042 = vmul.f32 %v3003, %v3027
        %v3043 = vmul.f32 %v3004, %v3027
        %v3044 = vmul.f32 %v3005, %v3027
        %v3045 = vmul.f32 %v3006, %v3027
        %v3046 = vmul.f32 %v3007, %v3027
        %v3047 = vmul.f32 %v3008, %v3027
        %v3048 = vmul.f32 %v3009, %v3027
        %v3049 = vmul.f32 %v3010, %v3027
        %v3050 = vmul.f32 %v3011, %v3027
        %v3051 = vmul.f32 %v3012, %v3027
        %v3052 = vmul.f32 %v3013, %v3027
        %v3053 = vmul.f32 %v3014, %v3027
        %v3054 = vmul.f32 %v3015, %v3027
        %v3055 = vmul.f32 %v3016, %v3027
        %v3056 = vmul.f32 %v3017, %v3027
        %v3057 = vmul.f32 %v3018, %v3027
        %v3058 = vmul.f32 %v3019, %v3027
        %v3059 = vmul.f32 %v3020, %v3027
        %v3060 = vmul.f32 %v3021, %v3027
        %v3061 = vsel %vm2533, 1, 0
        %vm3062 = vcmp.eq.s32.totalorder %v3061, 1
        %v3063 = vsel %vm3062, %v3029, %v2457
        %v3064 = vsel %vm3062, %v3030, %v2459
        %v3065 = vsel %vm3062, %v3031, %v2461
        %v3066 = vsel %vm3062, %v3032, %v2463
        %v3067 = vsel %vm3062, %v3033, %v2465
        %v3068 = vsel %vm3062, %v3034, %v2467
        %v3069 = vsel %vm3062, %v3035, %v2469
        %v3070 = vsel %vm3062, %v3036, %v2471
        %v3071 = vsel %vm3062, %v3037, %v2473
        %v3072 = vsel %vm3062, %v3038, %v2475
        %v3073 = vsel %vm3062, %v3039, %v2477
        %v3074 = vsel %vm3062, %v3040, %v2479
        %v3075 = vsel %vm3062, %v3041, %v2481
        %v3076 = vsel %vm3062, %v3042, %v2483
        %v3077 = vsel %vm3062, %v3043, %v2485
        %v3078 = vsel %vm3062, %v3044, %v2487
        %v3079 = vsel %vm3062, %v3045, %v2489
        %v3080 = vsel %vm3062, %v3046, %v2491
        %v3081 = vsel %vm3062, %v3047, %v2493
        %v3082 = vsel %vm3062, %v3048, %v2495
        %v3083 = vsel %vm3062, %v3049, %v2497
        %v3084 = vsel %vm3062, %v3050, %v2499
        %v3085 = vsel %vm3062, %v3051, %v2501
        %v3086 = vsel %vm3062, %v3052, %v2503
        %v3087 = vsel %vm3062, %v3053, %v2505
        %v3088 = vsel %vm3062, %v3054, %v2507
        %v3089 = vsel %vm3062, %v3055, %v2509
        %v3090 = vsel %vm3062, %v3056, %v2511
        %v3091 = vsel %vm3062, %v3057, %v2513
        %v3092 = vsel %vm3062, %v3058, %v2515
        %v3093 = vsel %vm3062, %v3059, %v2517
        %v3094 = vsel %vm3062, %v3060, %v2519
        %v3095 = vsel %vm2530, 1, 0
        %vm3096 = vcmp.eq.s32.totalorder %v3095, 1
        %v3097 = vsel %vm3096, %v2958, %v3063
        %v3098 = vsel %vm3096, %v2959, %v3064
        %v3099 = vsel %vm3096, %v2960, %v3065
        %v3100 = vsel %vm3096, %v2961, %v3066
        %v3101 = vsel %vm3096, %v2962, %v3067
        %v3102 = vsel %vm3096, %v2963, %v3068
        %v3103 = vsel %vm3096, %v2964, %v3069
        %v3104 = vsel %vm3096, %v2965, %v3070
        %v3105 = vsel %vm3096, %v2966, %v3071
        %v3106 = vsel %vm3096, %v2967, %v3072
        %v3107 = vsel %vm3096, %v2968, %v3073
        %v3108 = vsel %vm3096, %v2969, %v3074
        %v3109 = vsel %vm3096, %v2970, %v3075
        %v3110 = vsel %vm3096, %v2971, %v3076
        %v3111 = vsel %vm3096, %v2972, %v3077
        %v3112 = vsel %vm3096, %v2973, %v3078
        %v3113 = vsel %vm3096, %v2974, %v3079
        %v3114 = vsel %vm3096, %v2975, %v3080
        %v3115 = vsel %vm3096, %v2976, %v3081
        %v3116 = vsel %vm3096, %v2977, %v3082
        %v3117 = vsel %vm3096, %v2978, %v3083
        %v3118 = vsel %vm3096, %v2979, %v3084
        %v3119 = vsel %vm3096, %v2980, %v3085
        %v3120 = vsel %vm3096, %v2981, %v3086
        %v3121 = vsel %vm3096, %v2982, %v3087
        %v3122 = vsel %vm3096, %v2983, %v3088
        %v3123 = vsel %vm3096, %v2984, %v3089
        %v3124 = vsel %vm3096, %v2985, %v3090
        %v3125 = vsel %vm3096, %v2986, %v3091
        %v3126 = vsel %vm3096, %v2987, %v3092
        %v3127 = vsel %vm3096, %v2988, %v3093
        %v3128 = vsel %vm3096, %v2989, %v3094
        %vm3129 = vcmask 162816
        %3130 = vst.msk [vmem:[%s340] sm:$0xff] %vm3129, %v2139
        %3131 = vst.msk [vmem:[%s340 + $0x8] sm:$0xff] %vm3129, %v2145
        %3132 = vst.msk [vmem:[%s340 + $0x10] sm:$0xff] %vm3129, %v2151
        %3133 = vst.msk [vmem:[%s340 + $0x18] sm:$0xff] %vm3129, %v2157
        %3134 = vst.msk [vmem:[%s340 + $0x20] sm:$0xff] %vm3129, %v2163
        %3135 = vst.msk [vmem:[%s340 + $0x28] sm:$0xff] %vm3129, %v2169
        %3136 = vst.msk [vmem:[%s340 + $0x30] sm:$0xff] %vm3129, %v2175
        %3137 = vst.msk [vmem:[%s340 + $0x38] sm:$0xff] %vm3129, %v2181
        %3138 = vst.msk [vmem:[%s340 + $0x40] sm:$0xff] %vm3129, %v2187
        %3139 = vst.msk [vmem:[%s340 + $0x48] sm:$0xff] %vm3129, %v2193
        %3140 = vst.msk [vmem:[%s340 + $0x50] sm:$0xff] %vm3129, %v2199
        %3141 = vst.msk [vmem:[%s340 + $0x58] sm:$0xff] %vm3129, %v2205
        %3142 = vst.msk [vmem:[%s340 + $0x60] sm:$0xff] %vm3129, %v2211
        %3143 = vst.msk [vmem:[%s340 + $0x68] sm:$0xff] %vm3129, %v2217
        %3144 = vst.msk [vmem:[%s340 + $0x70] sm:$0xff] %vm3129, %v2223
        %3145 = vst.msk [vmem:[%s340 + $0x78] sm:$0xff] %vm3129, %v2229
        %3146 = vst.msk [vmem:[%s340 + $0x80] sm:$0xff] %vm3129, %v2235
        %3147 = vst.msk [vmem:[%s340 + $0x88] sm:$0xff] %vm3129, %v2241
        %3148 = vst.msk [vmem:[%s340 + $0x90] sm:$0xff] %vm3129, %v2247
        %3149 = vst.msk [vmem:[%s340 + $0x98] sm:$0xff] %vm3129, %v2253
        %3150 = vst.msk [vmem:[%s340 + $0xa0] sm:$0xff] %vm3129, %v2259
        %3151 = vst.msk [vmem:[%s340 + $0xa8] sm:$0xff] %vm3129, %v2265
        %3152 = vst.msk [vmem:[%s340 + $0xb0] sm:$0xff] %vm3129, %v2271
        %3153 = vst.msk [vmem:[%s340 + $0xb8] sm:$0xff] %vm3129, %v2277
        %3154 = vst.msk [vmem:[%s340 + $0xc0] sm:$0xff] %vm3129, %v2283
        %3155 = vst.msk [vmem:[%s340 + $0xc8] sm:$0xff] %vm3129, %v2289
        %3156 = vst.msk [vmem:[%s340 + $0xd0] sm:$0xff] %vm3129, %v2295
        %3157 = vst.msk [vmem:[%s340 + $0xd8] sm:$0xff] %vm3129, %v2301
        %3158 = vst.msk [vmem:[%s340 + $0xe0] sm:$0xff] %vm3129, %v2307
        %3159 = vst.msk [vmem:[%s340 + $0xe8] sm:$0xff] %vm3129, %v2313
        %3160 = vst.msk [vmem:[%s340 + $0xf0] sm:$0xff] %vm3129, %v2319
        %3161 = vst.msk [vmem:[%s340 + $0xf8] sm:$0xff] %vm3129, %v2325
        %3162 = vst.msk [vmem:[%s350] sm:$0xff] %vm3129, %v3097
        %3163 = vst.msk [vmem:[%s350 + $0x8] sm:$0xff] %vm3129, %v3098
        %3164 = vst.msk [vmem:[%s350 + $0x10] sm:$0xff] %vm3129, %v3099
        %3165 = vst.msk [vmem:[%s350 + $0x18] sm:$0xff] %vm3129, %v3100
        %3166 = vst.msk [vmem:[%s350 + $0x20] sm:$0xff] %vm3129, %v3101
        %3167 = vst.msk [vmem:[%s350 + $0x28] sm:$0xff] %vm3129, %v3102
        %3168 = vst.msk [vmem:[%s350 + $0x30] sm:$0xff] %vm3129, %v3103
        %3169 = vst.msk [vmem:[%s350 + $0x38] sm:$0xff] %vm3129, %v3104
        %3170 = vst.msk [vmem:[%s350 + $0x40] sm:$0xff] %vm3129, %v3105
        %3171 = vst.msk [vmem:[%s350 + $0x48] sm:$0xff] %vm3129, %v3106
        %3172 = vst.msk [vmem:[%s350 + $0x50] sm:$0xff] %vm3129, %v3107
        %3173 = vst.msk [vmem:[%s350 + $0x58] sm:$0xff] %vm3129, %v3108
        %3174 = vst.msk [vmem:[%s350 + $0x60] sm:$0xff] %vm3129, %v3109
        %3175 = vst.msk [vmem:[%s350 + $0x68] sm:$0xff] %vm3129, %v3110
        %3176 = vst.msk [vmem:[%s350 + $0x70] sm:$0xff] %vm3129, %v3111
        %3177 = vst.msk [vmem:[%s350 + $0x78] sm:$0xff] %vm3129, %v3112
        %3178 = vst.msk [vmem:[%s350 + $0x80] sm:$0xff] %vm3129, %v3113
        %3179 = vst.msk [vmem:[%s350 + $0x88] sm:$0xff] %vm3129, %v3114
        %3180 = vst.msk [vmem:[%s350 + $0x90] sm:$0xff] %vm3129, %v3115
        %3181 = vst.msk [vmem:[%s350 + $0x98] sm:$0xff] %vm3129, %v3116
        %3182 = vst.msk [vmem:[%s350 + $0xa0] sm:$0xff] %vm3129, %v3117
        %3183 = vst.msk [vmem:[%s350 + $0xa8] sm:$0xff] %vm3129, %v3118
        %3184 = vst.msk [vmem:[%s350 + $0xb0] sm:$0xff] %vm3129, %v3119
        %3185 = vst.msk [vmem:[%s350 + $0xb8] sm:$0xff] %vm3129, %v3120
        %3186 = vst.msk [vmem:[%s350 + $0xc0] sm:$0xff] %vm3129, %v3121
        %3187 = vst.msk [vmem:[%s350 + $0xc8] sm:$0xff] %vm3129, %v3122
        %3188 = vst.msk [vmem:[%s350 + $0xd0] sm:$0xff] %vm3129, %v3123
        %3189 = vst.msk [vmem:[%s350 + $0xd8] sm:$0xff] %vm3129, %v3124
        %3190 = vst.msk [vmem:[%s350 + $0xe0] sm:$0xff] %vm3129, %v3125
        %3191 = vst.msk [vmem:[%s350 + $0xe8] sm:$0xff] %vm3129, %v3126
        %3192 = vst.msk [vmem:[%s350 + $0xf0] sm:$0xff] %vm3129, %v3127
        %3193 = vst.msk [vmem:[%s350 + $0xf8] sm:$0xff] %vm3129, %v3128
        %3226 = vrot.lane.b32.xlu0 %v2139, 123
        %v3227 = vpop.permute.xlu0 %3226
        %3228 = vrot.lane.b32.xlu0 %v2145, 123
        %v3229 = vpop.permute.xlu0 %3228
        %3230 = vrot.lane.b32.xlu0 %v2151, 123
        %v3231 = vpop.permute.xlu0 %3230
        %3232 = vrot.lane.b32.xlu0 %v2157, 123
        %v3233 = vpop.permute.xlu0 %3232
        %3234 = vrot.lane.b32.xlu0 %v2163, 123
        %v3235 = vpop.permute.xlu0 %3234
        %3236 = vrot.lane.b32.xlu0 %v2169, 123
        %v3237 = vpop.permute.xlu0 %3236
        %3238 = vrot.lane.b32.xlu0 %v2175, 123
        %v3239 = vpop.permute.xlu0 %3238
        %3240 = vrot.lane.b32.xlu0 %v2181, 123
        %v3241 = vpop.permute.xlu0 %3240
        %3242 = vrot.lane.b32.xlu0 %v2187, 123
        %v3243 = vpop.permute.xlu0 %3242
        %3244 = vrot.lane.b32.xlu0 %v2193, 123
        %v3245 = vpop.permute.xlu0 %3244
        %3246 = vrot.lane.b32.xlu0 %v2199, 123
        %v3247 = vpop.permute.xlu0 %3246
        %3248 = vrot.lane.b32.xlu0 %v2205, 123
        %v3249 = vpop.permute.xlu0 %3248
        %3250 = vrot.lane.b32.xlu0 %v2211, 123
        %v3251 = vpop.permute.xlu0 %3250
        %3252 = vrot.lane.b32.xlu0 %v2217, 123
        %v3253 = vpop.permute.xlu0 %3252
        %3254 = vrot.lane.b32.xlu0 %v2223, 123
        %v3255 = vpop.permute.xlu0 %3254
        %3256 = vrot.lane.b32.xlu0 %v2229, 123
        %v3257 = vpop.permute.xlu0 %3256
        %3258 = vrot.lane.b32.xlu0 %v2235, 123
        %v3259 = vpop.permute.xlu0 %3258
        %3260 = vrot.lane.b32.xlu0 %v2241, 123
        %v3261 = vpop.permute.xlu0 %3260
        %3262 = vrot.lane.b32.xlu0 %v2247, 123
        %v3263 = vpop.permute.xlu0 %3262
        %3264 = vrot.lane.b32.xlu0 %v2253, 123
        %v3265 = vpop.permute.xlu0 %3264
        %3266 = vrot.lane.b32.xlu0 %v2259, 123
        %v3267 = vpop.permute.xlu0 %3266
        %3268 = vrot.lane.b32.xlu0 %v2265, 123
        %v3269 = vpop.permute.xlu0 %3268
        %3270 = vrot.lane.b32.xlu0 %v2271, 123
        %v3271 = vpop.permute.xlu0 %3270
        %3272 = vrot.lane.b32.xlu0 %v2277, 123
        %v3273 = vpop.permute.xlu0 %3272
        %3274 = vrot.lane.b32.xlu0 %v2283, 123
        %v3275 = vpop.permute.xlu0 %3274
        %3276 = vrot.lane.b32.xlu0 %v2289, 123
        %v3277 = vpop.permute.xlu0 %3276
        %3278 = vrot.lane.b32.xlu0 %v2295, 123
        %v3279 = vpop.permute.xlu0 %3278
        %3280 = vrot.lane.b32.xlu0 %v2301, 123
        %v3281 = vpop.permute.xlu0 %3280
        %3282 = vrot.lane.b32.xlu0 %v2307, 123
        %v3283 = vpop.permute.xlu0 %3282
        %3284 = vrot.lane.b32.xlu0 %v2313, 123
        %v3285 = vpop.permute.xlu0 %3284
        %3286 = vrot.lane.b32.xlu0 %v2319, 123
        %v3287 = vpop.permute.xlu0 %3286
        %3288 = vrot.lane.b32.xlu0 %v2325, 123
        %v3289 = vpop.permute.xlu0 %3288
        %vm3322 = vcmask 121856
        %3323 = vst.msk [vmem:[%s360] sm:$0xff] %vm3322, %v3227
        %3324 = vst.msk [vmem:[%s360 + $0x8] sm:$0xff] %vm3322, %v3229
        %3325 = vst.msk [vmem:[%s360 + $0x10] sm:$0xff] %vm3322, %v3231
        %3326 = vst.msk [vmem:[%s360 + $0x18] sm:$0xff] %vm3322, %v3233
        %3327 = vst.msk [vmem:[%s360 + $0x20] sm:$0xff] %vm3322, %v3235
        %3328 = vst.msk [vmem:[%s360 + $0x28] sm:$0xff] %vm3322, %v3237
        %3329 = vst.msk [vmem:[%s360 + $0x30] sm:$0xff] %vm3322, %v3239
        %3330 = vst.msk [vmem:[%s360 + $0x38] sm:$0xff] %vm3322, %v3241
        %3331 = vst.msk [vmem:[%s360 + $0x40] sm:$0xff] %vm3322, %v3243
        %3332 = vst.msk [vmem:[%s360 + $0x48] sm:$0xff] %vm3322, %v3245
        %3333 = vst.msk [vmem:[%s360 + $0x50] sm:$0xff] %vm3322, %v3247
        %3334 = vst.msk [vmem:[%s360 + $0x58] sm:$0xff] %vm3322, %v3249
        %3335 = vst.msk [vmem:[%s360 + $0x60] sm:$0xff] %vm3322, %v3251
        %3336 = vst.msk [vmem:[%s360 + $0x68] sm:$0xff] %vm3322, %v3253
        %3337 = vst.msk [vmem:[%s360 + $0x70] sm:$0xff] %vm3322, %v3255
        %3338 = vst.msk [vmem:[%s360 + $0x78] sm:$0xff] %vm3322, %v3257
        %3339 = vst.msk [vmem:[%s360 + $0x80] sm:$0xff] %vm3322, %v3259
        %3340 = vst.msk [vmem:[%s360 + $0x88] sm:$0xff] %vm3322, %v3261
        %3341 = vst.msk [vmem:[%s360 + $0x90] sm:$0xff] %vm3322, %v3263
        %3342 = vst.msk [vmem:[%s360 + $0x98] sm:$0xff] %vm3322, %v3265
        %3343 = vst.msk [vmem:[%s360 + $0xa0] sm:$0xff] %vm3322, %v3267
        %3344 = vst.msk [vmem:[%s360 + $0xa8] sm:$0xff] %vm3322, %v3269
        %3345 = vst.msk [vmem:[%s360 + $0xb0] sm:$0xff] %vm3322, %v3271
        %3346 = vst.msk [vmem:[%s360 + $0xb8] sm:$0xff] %vm3322, %v3273
        %3347 = vst.msk [vmem:[%s360 + $0xc0] sm:$0xff] %vm3322, %v3275
        %3348 = vst.msk [vmem:[%s360 + $0xc8] sm:$0xff] %vm3322, %v3277
        %3349 = vst.msk [vmem:[%s360 + $0xd0] sm:$0xff] %vm3322, %v3279
        %3350 = vst.msk [vmem:[%s360 + $0xd8] sm:$0xff] %vm3322, %v3281
        %3351 = vst.msk [vmem:[%s360 + $0xe0] sm:$0xff] %vm3322, %v3283
        %3352 = vst.msk [vmem:[%s360 + $0xe8] sm:$0xff] %vm3322, %v3285
        %3353 = vst.msk [vmem:[%s360 + $0xf0] sm:$0xff] %vm3322, %v3287
        %3354 = vst.msk [vmem:[%s360 + $0xf8] sm:$0xff] %vm3322, %v3289
        %3355 = vrot.lane.b32.xlu0 %v2139, 108
        %v3356 = vpop.permute.xlu0 %3355
        %3357 = vrot.lane.b32.xlu0 %v2145, 108
        %v3358 = vpop.permute.xlu0 %3357
        %3359 = vrot.lane.b32.xlu0 %v2151, 108
        %v3360 = vpop.permute.xlu0 %3359
        %3361 = vrot.lane.b32.xlu0 %v2157, 108
        %v3362 = vpop.permute.xlu0 %3361
        %3363 = vrot.lane.b32.xlu0 %v2163, 108
        %v3364 = vpop.permute.xlu0 %3363
        %3365 = vrot.lane.b32.xlu0 %v2169, 108
        %v3366 = vpop.permute.xlu0 %3365
        %3367 = vrot.lane.b32.xlu0 %v2175, 108
        %v3368 = vpop.permute.xlu0 %3367
        %3369 = vrot.lane.b32.xlu0 %v2181, 108
        %v3370 = vpop.permute.xlu0 %3369
        %3371 = vrot.lane.b32.xlu0 %v2187, 108
        %v3372 = vpop.permute.xlu0 %3371
        %3373 = vrot.lane.b32.xlu0 %v2193, 108
        %v3374 = vpop.permute.xlu0 %3373
        %3375 = vrot.lane.b32.xlu0 %v2199, 108
        %v3376 = vpop.permute.xlu0 %3375
        %3377 = vrot.lane.b32.xlu0 %v2205, 108
        %v3378 = vpop.permute.xlu0 %3377
        %3379 = vrot.lane.b32.xlu0 %v2211, 108
        %v3380 = vpop.permute.xlu0 %3379
        %3381 = vrot.lane.b32.xlu0 %v2217, 108
        %v3382 = vpop.permute.xlu0 %3381
        %3383 = vrot.lane.b32.xlu0 %v2223, 108
        %v3384 = vpop.permute.xlu0 %3383
        %3385 = vrot.lane.b32.xlu0 %v2229, 108
        %v3386 = vpop.permute.xlu0 %3385
        %3387 = vrot.lane.b32.xlu0 %v2235, 108
        %v3388 = vpop.permute.xlu0 %3387
        %3389 = vrot.lane.b32.xlu0 %v2241, 108
        %v3390 = vpop.permute.xlu0 %3389
        %3391 = vrot.lane.b32.xlu0 %v2247, 108
        %v3392 = vpop.permute.xlu0 %3391
        %3393 = vrot.lane.b32.xlu0 %v2253, 108
        %v3394 = vpop.permute.xlu0 %3393
        %3395 = vrot.lane.b32.xlu0 %v2259, 108
        %v3396 = vpop.permute.xlu0 %3395
        %3397 = vrot.lane.b32.xlu0 %v2265, 108
        %v3398 = vpop.permute.xlu0 %3397
        %3399 = vrot.lane.b32.xlu0 %v2271, 108
        %v3400 = vpop.permute.xlu0 %3399
        %3401 = vrot.lane.b32.xlu0 %v2277, 108
        %v3402 = vpop.permute.xlu0 %3401
        %3403 = vrot.lane.b32.xlu0 %v2283, 108
        %v3404 = vpop.permute.xlu0 %3403
        %3405 = vrot.lane.b32.xlu0 %v2289, 108
        %v3406 = vpop.permute.xlu0 %3405
        %3407 = vrot.lane.b32.xlu0 %v2295, 108
        %v3408 = vpop.permute.xlu0 %3407
        %3409 = vrot.lane.b32.xlu0 %v2301, 108
        %v3410 = vpop.permute.xlu0 %3409
        %3411 = vrot.lane.b32.xlu0 %v2307, 108
        %v3412 = vpop.permute.xlu0 %3411
        %3413 = vrot.lane.b32.xlu0 %v2313, 108
        %v3414 = vpop.permute.xlu0 %3413
        %3415 = vrot.lane.b32.xlu0 %v2319, 108
        %v3416 = vpop.permute.xlu0 %3415
        %3417 = vrot.lane.b32.xlu0 %v2325, 108
        %v3418 = vpop.permute.xlu0 %3417
        %s3451 = scalar_lea.vmem %s340, 256
        %3452 = vst.msk [vmem:[%s3451] sm:$0xff] %vm3129, %v3356
        %3453 = vst.msk [vmem:[%s3451 + $0x8] sm:$0xff] %vm3129, %v3358
        %3454 = vst.msk [vmem:[%s3451 + $0x10] sm:$0xff] %vm3129, %v3360
        %3455 = vst.msk [vmem:[%s3451 + $0x18] sm:$0xff] %vm3129, %v3362
        %3456 = vst.msk [vmem:[%s3451 + $0x20] sm:$0xff] %vm3129, %v3364
        %3457 = vst.msk [vmem:[%s3451 + $0x28] sm:$0xff] %vm3129, %v3366
        %3458 = vst.msk [vmem:[%s3451 + $0x30] sm:$0xff] %vm3129, %v3368
        %3459 = vst.msk [vmem:[%s3451 + $0x38] sm:$0xff] %vm3129, %v3370
        %3460 = vst.msk [vmem:[%s3451 + $0x40] sm:$0xff] %vm3129, %v3372
        %3461 = vst.msk [vmem:[%s3451 + $0x48] sm:$0xff] %vm3129, %v3374
        %3462 = vst.msk [vmem:[%s3451 + $0x50] sm:$0xff] %vm3129, %v3376
        %3463 = vst.msk [vmem:[%s3451 + $0x58] sm:$0xff] %vm3129, %v3378
        %3464 = vst.msk [vmem:[%s3451 + $0x60] sm:$0xff] %vm3129, %v3380
        %3465 = vst.msk [vmem:[%s3451 + $0x68] sm:$0xff] %vm3129, %v3382
        %3466 = vst.msk [vmem:[%s3451 + $0x70] sm:$0xff] %vm3129, %v3384
        %3467 = vst.msk [vmem:[%s3451 + $0x78] sm:$0xff] %vm3129, %v3386
        %3468 = vst.msk [vmem:[%s3451 + $0x80] sm:$0xff] %vm3129, %v3388
        %3469 = vst.msk [vmem:[%s3451 + $0x88] sm:$0xff] %vm3129, %v3390
        %3470 = vst.msk [vmem:[%s3451 + $0x90] sm:$0xff] %vm3129, %v3392
        %3471 = vst.msk [vmem:[%s3451 + $0x98] sm:$0xff] %vm3129, %v3394
        %3472 = vst.msk [vmem:[%s3451 + $0xa0] sm:$0xff] %vm3129, %v3396
        %3473 = vst.msk [vmem:[%s3451 + $0xa8] sm:$0xff] %vm3129, %v3398
        %3474 = vst.msk [vmem:[%s3451 + $0xb0] sm:$0xff] %vm3129, %v3400
        %3475 = vst.msk [vmem:[%s3451 + $0xb8] sm:$0xff] %vm3129, %v3402
        %3476 = vst.msk [vmem:[%s3451 + $0xc0] sm:$0xff] %vm3129, %v3404
        %3477 = vst.msk [vmem:[%s3451 + $0xc8] sm:$0xff] %vm3129, %v3406
        %3478 = vst.msk [vmem:[%s3451 + $0xd0] sm:$0xff] %vm3129, %v3408
        %3479 = vst.msk [vmem:[%s3451 + $0xd8] sm:$0xff] %vm3129, %v3410
        %3480 = vst.msk [vmem:[%s3451 + $0xe0] sm:$0xff] %vm3129, %v3412
        %3481 = vst.msk [vmem:[%s3451 + $0xe8] sm:$0xff] %vm3129, %v3414
        %3482 = vst.msk [vmem:[%s3451 + $0xf0] sm:$0xff] %vm3129, %v3416
        %3483 = vst.msk [vmem:[%s3451 + $0xf8] sm:$0xff] %vm3129, %v3418
        %3516 = vrot.lane.b32.xlu0 %v3097, 108
        %v3517 = vpop.permute.xlu0 %3516
        %3518 = vrot.lane.b32.xlu0 %v3098, 108
        %v3519 = vpop.permute.xlu0 %3518
        %3520 = vrot.lane.b32.xlu0 %v3099, 108
        %v3521 = vpop.permute.xlu0 %3520
        %3522 = vrot.lane.b32.xlu0 %v3100, 108
        %v3523 = vpop.permute.xlu0 %3522
        %3524 = vrot.lane.b32.xlu0 %v3101, 108
        %v3525 = vpop.permute.xlu0 %3524
        %3526 = vrot.lane.b32.xlu0 %v3102, 108
        %v3527 = vpop.permute.xlu0 %3526
        %3528 = vrot.lane.b32.xlu0 %v3103, 108
        %v3529 = vpop.permute.xlu0 %3528
        %3530 = vrot.lane.b32.xlu0 %v3104, 108
        %v3531 = vpop.permute.xlu0 %3530
        %3532 = vrot.lane.b32.xlu0 %v3105, 108
        %v3533 = vpop.permute.xlu0 %3532
        %3534 = vrot.lane.b32.xlu0 %v3106, 108
        %v3535 = vpop.permute.xlu0 %3534
        %3536 = vrot.lane.b32.xlu0 %v3107, 108
        %v3537 = vpop.permute.xlu0 %3536
        %3538 = vrot.lane.b32.xlu0 %v3108, 108
        %v3539 = vpop.permute.xlu0 %3538
        %3540 = vrot.lane.b32.xlu0 %v3109, 108
        %v3541 = vpop.permute.xlu0 %3540
        %3542 = vrot.lane.b32.xlu0 %v3110, 108
        %v3543 = vpop.permute.xlu0 %3542
        %3544 = vrot.lane.b32.xlu0 %v3111, 108
        %v3545 = vpop.permute.xlu0 %3544
        %3546 = vrot.lane.b32.xlu0 %v3112, 108
        %v3547 = vpop.permute.xlu0 %3546
        %3548 = vrot.lane.b32.xlu0 %v3113, 108
        %v3549 = vpop.permute.xlu0 %3548
        %3550 = vrot.lane.b32.xlu0 %v3114, 108
        %v3551 = vpop.permute.xlu0 %3550
        %3552 = vrot.lane.b32.xlu0 %v3115, 108
        %v3553 = vpop.permute.xlu0 %3552
        %3554 = vrot.lane.b32.xlu0 %v3116, 108
        %v3555 = vpop.permute.xlu0 %3554
        %3556 = vrot.lane.b32.xlu0 %v3117, 108
        %v3557 = vpop.permute.xlu0 %3556
        %3558 = vrot.lane.b32.xlu0 %v3118, 108
        %v3559 = vpop.permute.xlu0 %3558
        %3560 = vrot.lane.b32.xlu0 %v3119, 108
        %v3561 = vpop.permute.xlu0 %3560
        %3562 = vrot.lane.b32.xlu0 %v3120, 108
        %v3563 = vpop.permute.xlu0 %3562
        %3564 = vrot.lane.b32.xlu0 %v3121, 108
        %v3565 = vpop.permute.xlu0 %3564
        %3566 = vrot.lane.b32.xlu0 %v3122, 108
        %v3567 = vpop.permute.xlu0 %3566
        %3568 = vrot.lane.b32.xlu0 %v3123, 108
        %v3569 = vpop.permute.xlu0 %3568
        %3570 = vrot.lane.b32.xlu0 %v3124, 108
        %v3571 = vpop.permute.xlu0 %3570
        %3572 = vrot.lane.b32.xlu0 %v3125, 108
        %v3573 = vpop.permute.xlu0 %3572
        %3574 = vrot.lane.b32.xlu0 %v3126, 108
        %v3575 = vpop.permute.xlu0 %3574
        %3576 = vrot.lane.b32.xlu0 %v3127, 108
        %v3577 = vpop.permute.xlu0 %3576
        %3578 = vrot.lane.b32.xlu0 %v3128, 108
        %v3579 = vpop.permute.xlu0 %3578
        %s3612 = scalar_lea.vmem %s350, 256
        %3613 = vst.msk [vmem:[%s3612] sm:$0xff] %vm3129, %v3517
        %3614 = vst.msk [vmem:[%s3612 + $0x8] sm:$0xff] %vm3129, %v3519
        %3615 = vst.msk [vmem:[%s3612 + $0x10] sm:$0xff] %vm3129, %v3521
        %3616 = vst.msk [vmem:[%s3612 + $0x18] sm:$0xff] %vm3129, %v3523
        %3617 = vst.msk [vmem:[%s3612 + $0x20] sm:$0xff] %vm3129, %v3525
        %3618 = vst.msk [vmem:[%s3612 + $0x28] sm:$0xff] %vm3129, %v3527
        %3619 = vst.msk [vmem:[%s3612 + $0x30] sm:$0xff] %vm3129, %v3529
        %3620 = vst.msk [vmem:[%s3612 + $0x38] sm:$0xff] %vm3129, %v3531
        %3621 = vst.msk [vmem:[%s3612 + $0x40] sm:$0xff] %vm3129, %v3533
        %3622 = vst.msk [vmem:[%s3612 + $0x48] sm:$0xff] %vm3129, %v3535
        %3623 = vst.msk [vmem:[%s3612 + $0x50] sm:$0xff] %vm3129, %v3537
        %3624 = vst.msk [vmem:[%s3612 + $0x58] sm:$0xff] %vm3129, %v3539
        %3625 = vst.msk [vmem:[%s3612 + $0x60] sm:$0xff] %vm3129, %v3541
        %3626 = vst.msk [vmem:[%s3612 + $0x68] sm:$0xff] %vm3129, %v3543
        %3627 = vst.msk [vmem:[%s3612 + $0x70] sm:$0xff] %vm3129, %v3545
        %3628 = vst.msk [vmem:[%s3612 + $0x78] sm:$0xff] %vm3129, %v3547
        %3629 = vst.msk [vmem:[%s3612 + $0x80] sm:$0xff] %vm3129, %v3549
        %3630 = vst.msk [vmem:[%s3612 + $0x88] sm:$0xff] %vm3129, %v3551
        %3631 = vst.msk [vmem:[%s3612 + $0x90] sm:$0xff] %vm3129, %v3553
        %3632 = vst.msk [vmem:[%s3612 + $0x98] sm:$0xff] %vm3129, %v3555
        %3633 = vst.msk [vmem:[%s3612 + $0xa0] sm:$0xff] %vm3129, %v3557
        %3634 = vst.msk [vmem:[%s3612 + $0xa8] sm:$0xff] %vm3129, %v3559
        %3635 = vst.msk [vmem:[%s3612 + $0xb0] sm:$0xff] %vm3129, %v3561
        %3636 = vst.msk [vmem:[%s3612 + $0xb8] sm:$0xff] %vm3129, %v3563
        %3637 = vst.msk [vmem:[%s3612 + $0xc0] sm:$0xff] %vm3129, %v3565
        %3638 = vst.msk [vmem:[%s3612 + $0xc8] sm:$0xff] %vm3129, %v3567
        %3639 = vst.msk [vmem:[%s3612 + $0xd0] sm:$0xff] %vm3129, %v3569
        %3640 = vst.msk [vmem:[%s3612 + $0xd8] sm:$0xff] %vm3129, %v3571
        %3641 = vst.msk [vmem:[%s3612 + $0xe0] sm:$0xff] %vm3129, %v3573
        %3642 = vst.msk [vmem:[%s3612 + $0xe8] sm:$0xff] %vm3129, %v3575
        %3643 = vst.msk [vmem:[%s3612 + $0xf0] sm:$0xff] %vm3129, %v3577
        %3644 = vst.msk [vmem:[%s3612 + $0xf8] sm:$0xff] %vm3129, %v3579
        %3645 = vrot.lane.b32.xlu0 %v2139, 103
        %v3646 = vpop.permute.xlu0 %3645
        %3647 = vrot.lane.b32.xlu0 %v2145, 103
        %v3648 = vpop.permute.xlu0 %3647
        %3649 = vrot.lane.b32.xlu0 %v2151, 103
        %v3650 = vpop.permute.xlu0 %3649
        %3651 = vrot.lane.b32.xlu0 %v2157, 103
        %v3652 = vpop.permute.xlu0 %3651
        %3653 = vrot.lane.b32.xlu0 %v2163, 103
        %v3654 = vpop.permute.xlu0 %3653
        %3655 = vrot.lane.b32.xlu0 %v2169, 103
        %v3656 = vpop.permute.xlu0 %3655
        %3657 = vrot.lane.b32.xlu0 %v2175, 103
        %v3658 = vpop.permute.xlu0 %3657
        %3659 = vrot.lane.b32.xlu0 %v2181, 103
        %v3660 = vpop.permute.xlu0 %3659
        %3661 = vrot.lane.b32.xlu0 %v2187, 103
        %v3662 = vpop.permute.xlu0 %3661
        %3663 = vrot.lane.b32.xlu0 %v2193, 103
        %v3664 = vpop.permute.xlu0 %3663
        %3665 = vrot.lane.b32.xlu0 %v2199, 103
        %v3666 = vpop.permute.xlu0 %3665
        %3667 = vrot.lane.b32.xlu0 %v2205, 103
        %v3668 = vpop.permute.xlu0 %3667
        %3669 = vrot.lane.b32.xlu0 %v2211, 103
        %v3670 = vpop.permute.xlu0 %3669
        %3671 = vrot.lane.b32.xlu0 %v2217, 103
        %v3672 = vpop.permute.xlu0 %3671
        %3673 = vrot.lane.b32.xlu0 %v2223, 103
        %v3674 = vpop.permute.xlu0 %3673
        %3675 = vrot.lane.b32.xlu0 %v2229, 103
        %v3676 = vpop.permute.xlu0 %3675
        %3677 = vrot.lane.b32.xlu0 %v2235, 103
        %v3678 = vpop.permute.xlu0 %3677
        %3679 = vrot.lane.b32.xlu0 %v2241, 103
        %v3680 = vpop.permute.xlu0 %3679
        %3681 = vrot.lane.b32.xlu0 %v2247, 103
        %v3682 = vpop.permute.xlu0 %3681
        %3683 = vrot.lane.b32.xlu0 %v2253, 103
        %v3684 = vpop.permute.xlu0 %3683
        %3685 = vrot.lane.b32.xlu0 %v2259, 103
        %v3686 = vpop.permute.xlu0 %3685
        %3687 = vrot.lane.b32.xlu0 %v2265, 103
        %v3688 = vpop.permute.xlu0 %3687
        %3689 = vrot.lane.b32.xlu0 %v2271, 103
        %v3690 = vpop.permute.xlu0 %3689
        %3691 = vrot.lane.b32.xlu0 %v2277, 103
        %v3692 = vpop.permute.xlu0 %3691
        %3693 = vrot.lane.b32.xlu0 %v2283, 103
        %v3694 = vpop.permute.xlu0 %3693
        %3695 = vrot.lane.b32.xlu0 %v2289, 103
        %v3696 = vpop.permute.xlu0 %3695
        %3697 = vrot.lane.b32.xlu0 %v2295, 103
        %v3698 = vpop.permute.xlu0 %3697
        %3699 = vrot.lane.b32.xlu0 %v2301, 103
        %v3700 = vpop.permute.xlu0 %3699
        %3701 = vrot.lane.b32.xlu0 %v2307, 103
        %v3702 = vpop.permute.xlu0 %3701
        %3703 = vrot.lane.b32.xlu0 %v2313, 103
        %v3704 = vpop.permute.xlu0 %3703
        %3705 = vrot.lane.b32.xlu0 %v2319, 103
        %v3706 = vpop.permute.xlu0 %3705
        %3707 = vrot.lane.b32.xlu0 %v2325, 103
        %v3708 = vpop.permute.xlu0 %3707
        %s3741 = scalar_lea.vmem %s360, 256
        %3742 = vst.msk [vmem:[%s3741] sm:$0xff] %vm3322, %v3646
        %3743 = vst.msk [vmem:[%s3741 + $0x8] sm:$0xff] %vm3322, %v3648
        %3744 = vst.msk [vmem:[%s3741 + $0x10] sm:$0xff] %vm3322, %v3650
        %3745 = vst.msk [vmem:[%s3741 + $0x18] sm:$0xff] %vm3322, %v3652
        %3746 = vst.msk [vmem:[%s3741 + $0x20] sm:$0xff] %vm3322, %v3654
        %3747 = vst.msk [vmem:[%s3741 + $0x28] sm:$0xff] %vm3322, %v3656
        %3748 = vst.msk [vmem:[%s3741 + $0x30] sm:$0xff] %vm3322, %v3658
        %3749 = vst.msk [vmem:[%s3741 + $0x38] sm:$0xff] %vm3322, %v3660
        %3750 = vst.msk [vmem:[%s3741 + $0x40] sm:$0xff] %vm3322, %v3662
        %3751 = vst.msk [vmem:[%s3741 + $0x48] sm:$0xff] %vm3322, %v3664
        %3752 = vst.msk [vmem:[%s3741 + $0x50] sm:$0xff] %vm3322, %v3666
        %3753 = vst.msk [vmem:[%s3741 + $0x58] sm:$0xff] %vm3322, %v3668
        %3754 = vst.msk [vmem:[%s3741 + $0x60] sm:$0xff] %vm3322, %v3670
        %3755 = vst.msk [vmem:[%s3741 + $0x68] sm:$0xff] %vm3322, %v3672
        %3756 = vst.msk [vmem:[%s3741 + $0x70] sm:$0xff] %vm3322, %v3674
        %3757 = vst.msk [vmem:[%s3741 + $0x78] sm:$0xff] %vm3322, %v3676
        %3758 = vst.msk [vmem:[%s3741 + $0x80] sm:$0xff] %vm3322, %v3678
        %3759 = vst.msk [vmem:[%s3741 + $0x88] sm:$0xff] %vm3322, %v3680
        %3760 = vst.msk [vmem:[%s3741 + $0x90] sm:$0xff] %vm3322, %v3682
        %3761 = vst.msk [vmem:[%s3741 + $0x98] sm:$0xff] %vm3322, %v3684
        %3762 = vst.msk [vmem:[%s3741 + $0xa0] sm:$0xff] %vm3322, %v3686
        %3763 = vst.msk [vmem:[%s3741 + $0xa8] sm:$0xff] %vm3322, %v3688
        %3764 = vst.msk [vmem:[%s3741 + $0xb0] sm:$0xff] %vm3322, %v3690
        %3765 = vst.msk [vmem:[%s3741 + $0xb8] sm:$0xff] %vm3322, %v3692
        %3766 = vst.msk [vmem:[%s3741 + $0xc0] sm:$0xff] %vm3322, %v3694
        %3767 = vst.msk [vmem:[%s3741 + $0xc8] sm:$0xff] %vm3322, %v3696
        %3768 = vst.msk [vmem:[%s3741 + $0xd0] sm:$0xff] %vm3322, %v3698
        %3769 = vst.msk [vmem:[%s3741 + $0xd8] sm:$0xff] %vm3322, %v3700
        %3770 = vst.msk [vmem:[%s3741 + $0xe0] sm:$0xff] %vm3322, %v3702
        %3771 = vst.msk [vmem:[%s3741 + $0xe8] sm:$0xff] %vm3322, %v3704
        %3772 = vst.msk [vmem:[%s3741 + $0xf0] sm:$0xff] %vm3322, %v3706
        %3773 = vst.msk [vmem:[%s3741 + $0xf8] sm:$0xff] %vm3322, %v3708
        %3774 = vrot.lane.b32.xlu0 %v2139, 88
        %v3775 = vpop.permute.xlu0 %3774
        %3776 = vrot.lane.b32.xlu0 %v2145, 88
        %v3777 = vpop.permute.xlu0 %3776
        %3778 = vrot.lane.b32.xlu0 %v2151, 88
        %v3779 = vpop.permute.xlu0 %3778
        %3780 = vrot.lane.b32.xlu0 %v2157, 88
        %v3781 = vpop.permute.xlu0 %3780
        %3782 = vrot.lane.b32.xlu0 %v2163, 88
        %v3783 = vpop.permute.xlu0 %3782
        %3784 = vrot.lane.b32.xlu0 %v2169, 88
        %v3785 = vpop.permute.xlu0 %3784
        %3786 = vrot.lane.b32.xlu0 %v2175, 88
        %v3787 = vpop.permute.xlu0 %3786
        %3788 = vrot.lane.b32.xlu0 %v2181, 88
        %v3789 = vpop.permute.xlu0 %3788
        %3790 = vrot.lane.b32.xlu0 %v2187, 88
        %v3791 = vpop.permute.xlu0 %3790
        %3792 = vrot.lane.b32.xlu0 %v2193, 88
        %v3793 = vpop.permute.xlu0 %3792
        %3794 = vrot.lane.b32.xlu0 %v2199, 88
        %v3795 = vpop.permute.xlu0 %3794
        %3796 = vrot.lane.b32.xlu0 %v2205, 88
        %v3797 = vpop.permute.xlu0 %3796
        %3798 = vrot.lane.b32.xlu0 %v2211, 88
        %v3799 = vpop.permute.xlu0 %3798
        %3800 = vrot.lane.b32.xlu0 %v2217, 88
        %v3801 = vpop.permute.xlu0 %3800
        %3802 = vrot.lane.b32.xlu0 %v2223, 88
        %v3803 = vpop.permute.xlu0 %3802
        %3804 = vrot.lane.b32.xlu0 %v2229, 88
        %v3805 = vpop.permute.xlu0 %3804
        %3806 = vrot.lane.b32.xlu0 %v2235, 88
        %v3807 = vpop.permute.xlu0 %3806
        %3808 = vrot.lane.b32.xlu0 %v2241, 88
        %v3809 = vpop.permute.xlu0 %3808
        %3810 = vrot.lane.b32.xlu0 %v2247, 88
        %v3811 = vpop.permute.xlu0 %3810
        %3812 = vrot.lane.b32.xlu0 %v2253, 88
        %v3813 = vpop.permute.xlu0 %3812
        %3814 = vrot.lane.b32.xlu0 %v2259, 88
        %v3815 = vpop.permute.xlu0 %3814
        %3816 = vrot.lane.b32.xlu0 %v2265, 88
        %v3817 = vpop.permute.xlu0 %3816
        %3818 = vrot.lane.b32.xlu0 %v2271, 88
        %v3819 = vpop.permute.xlu0 %3818
        %3820 = vrot.lane.b32.xlu0 %v2277, 88
        %v3821 = vpop.permute.xlu0 %3820
        %3822 = vrot.lane.b32.xlu0 %v2283, 88
        %v3823 = vpop.permute.xlu0 %3822
        %3824 = vrot.lane.b32.xlu0 %v2289, 88
        %v3825 = vpop.permute.xlu0 %3824
        %3826 = vrot.lane.b32.xlu0 %v2295, 88
        %v3827 = vpop.permute.xlu0 %3826
        %3828 = vrot.lane.b32.xlu0 %v2301, 88
        %v3829 = vpop.permute.xlu0 %3828
        %3830 = vrot.lane.b32.xlu0 %v2307, 88
        %v3831 = vpop.permute.xlu0 %3830
        %3832 = vrot.lane.b32.xlu0 %v2313, 88
        %v3833 = vpop.permute.xlu0 %3832
        %3834 = vrot.lane.b32.xlu0 %v2319, 88
        %v3835 = vpop.permute.xlu0 %3834
        %3836 = vrot.lane.b32.xlu0 %v2325, 88
        %v3837 = vpop.permute.xlu0 %3836
        %s3870 = scalar_lea.vmem %s340, 512
        %3871 = vst.msk [vmem:[%s3870] sm:$0xff] %vm3129, %v3775
        %3872 = vst.msk [vmem:[%s3870 + $0x8] sm:$0xff] %vm3129, %v3777
        %3873 = vst.msk [vmem:[%s3870 + $0x10] sm:$0xff] %vm3129, %v3779
        %3874 = vst.msk [vmem:[%s3870 + $0x18] sm:$0xff] %vm3129, %v3781
        %3875 = vst.msk [vmem:[%s3870 + $0x20] sm:$0xff] %vm3129, %v3783
        %3876 = vst.msk [vmem:[%s3870 + $0x28] sm:$0xff] %vm3129, %v3785
        %3877 = vst.msk [vmem:[%s3870 + $0x30] sm:$0xff] %vm3129, %v3787
        %3878 = vst.msk [vmem:[%s3870 + $0x38] sm:$0xff] %vm3129, %v3789
        %3879 = vst.msk [vmem:[%s3870 + $0x40] sm:$0xff] %vm3129, %v3791
        %3880 = vst.msk [vmem:[%s3870 + $0x48] sm:$0xff] %vm3129, %v3793
        %3881 = vst.msk [vmem:[%s3870 + $0x50] sm:$0xff] %vm3129, %v3795
        %3882 = vst.msk [vmem:[%s3870 + $0x58] sm:$0xff] %vm3129, %v3797
        %3883 = vst.msk [vmem:[%s3870 + $0x60] sm:$0xff] %vm3129, %v3799
        %3884 = vst.msk [vmem:[%s3870 + $0x68] sm:$0xff] %vm3129, %v3801
        %3885 = vst.msk [vmem:[%s3870 + $0x70] sm:$0xff] %vm3129, %v3803
        %3886 = vst.msk [vmem:[%s3870 + $0x78] sm:$0xff] %vm3129, %v3805
        %3887 = vst.msk [vmem:[%s3870 + $0x80] sm:$0xff] %vm3129, %v3807
        %3888 = vst.msk [vmem:[%s3870 + $0x88] sm:$0xff] %vm3129, %v3809
        %3889 = vst.msk [vmem:[%s3870 + $0x90] sm:$0xff] %vm3129, %v3811
        %3890 = vst.msk [vmem:[%s3870 + $0x98] sm:$0xff] %vm3129, %v3813
        %3891 = vst.msk [vmem:[%s3870 + $0xa0] sm:$0xff] %vm3129, %v3815
        %3892 = vst.msk [vmem:[%s3870 + $0xa8] sm:$0xff] %vm3129, %v3817
        %3893 = vst.msk [vmem:[%s3870 + $0xb0] sm:$0xff] %vm3129, %v3819
        %3894 = vst.msk [vmem:[%s3870 + $0xb8] sm:$0xff] %vm3129, %v3821
        %3895 = vst.msk [vmem:[%s3870 + $0xc0] sm:$0xff] %vm3129, %v3823
        %3896 = vst.msk [vmem:[%s3870 + $0xc8] sm:$0xff] %vm3129, %v3825
        %3897 = vst.msk [vmem:[%s3870 + $0xd0] sm:$0xff] %vm3129, %v3827
        %3898 = vst.msk [vmem:[%s3870 + $0xd8] sm:$0xff] %vm3129, %v3829
        %3899 = vst.msk [vmem:[%s3870 + $0xe0] sm:$0xff] %vm3129, %v3831
        %3900 = vst.msk [vmem:[%s3870 + $0xe8] sm:$0xff] %vm3129, %v3833
        %3901 = vst.msk [vmem:[%s3870 + $0xf0] sm:$0xff] %vm3129, %v3835
        %3902 = vst.msk [vmem:[%s3870 + $0xf8] sm:$0xff] %vm3129, %v3837
        %3903 = vrot.lane.b32.xlu0 %v3097, 88
        %v3904 = vpop.permute.xlu0 %3903
        %3905 = vrot.lane.b32.xlu0 %v3098, 88
        %v3906 = vpop.permute.xlu0 %3905
        %3907 = vrot.lane.b32.xlu0 %v3099, 88
        %v3908 = vpop.permute.xlu0 %3907
        %3909 = vrot.lane.b32.xlu0 %v3100, 88
        %v3910 = vpop.permute.xlu0 %3909
        %3911 = vrot.lane.b32.xlu0 %v3101, 88
        %v3912 = vpop.permute.xlu0 %3911
        %3913 = vrot.lane.b32.xlu0 %v3102, 88
        %v3914 = vpop.permute.xlu0 %3913
        %3915 = vrot.lane.b32.xlu0 %v3103, 88
        %v3916 = vpop.permute.xlu0 %3915
        %3917 = vrot.lane.b32.xlu0 %v3104, 88
        %v3918 = vpop.permute.xlu0 %3917
        %3919 = vrot.lane.b32.xlu0 %v3105, 88
        %v3920 = vpop.permute.xlu0 %3919
        %3921 = vrot.lane.b32.xlu0 %v3106, 88
        %v3922 = vpop.permute.xlu0 %3921
        %3923 = vrot.lane.b32.xlu0 %v3107, 88
        %v3924 = vpop.permute.xlu0 %3923
        %3925 = vrot.lane.b32.xlu0 %v3108, 88
        %v3926 = vpop.permute.xlu0 %3925
        %3927 = vrot.lane.b32.xlu0 %v3109, 88
        %v3928 = vpop.permute.xlu0 %3927
        %3929 = vrot.lane.b32.xlu0 %v3110, 88
        %v3930 = vpop.permute.xlu0 %3929
        %3931 = vrot.lane.b32.xlu0 %v3111, 88
        %v3932 = vpop.permute.xlu0 %3931
        %3933 = vrot.lane.b32.xlu0 %v3112, 88
        %v3934 = vpop.permute.xlu0 %3933
        %3935 = vrot.lane.b32.xlu0 %v3113, 88
        %v3936 = vpop.permute.xlu0 %3935
        %3937 = vrot.lane.b32.xlu0 %v3114, 88
        %v3938 = vpop.permute.xlu0 %3937
        %3939 = vrot.lane.b32.xlu0 %v3115, 88
        %v3940 = vpop.permute.xlu0 %3939
        %3941 = vrot.lane.b32.xlu0 %v3116, 88
        %v3942 = vpop.permute.xlu0 %3941
        %3943 = vrot.lane.b32.xlu0 %v3117, 88
        %v3944 = vpop.permute.xlu0 %3943
        %3945 = vrot.lane.b32.xlu0 %v3118, 88
        %v3946 = vpop.permute.xlu0 %3945
        %3947 = vrot.lane.b32.xlu0 %v3119, 88
        %v3948 = vpop.permute.xlu0 %3947
        %3949 = vrot.lane.b32.xlu0 %v3120, 88
        %v3950 = vpop.permute.xlu0 %3949
        %3951 = vrot.lane.b32.xlu0 %v3121, 88
        %v3952 = vpop.permute.xlu0 %3951
        %3953 = vrot.lane.b32.xlu0 %v3122, 88
        %v3954 = vpop.permute.xlu0 %3953
        %3955 = vrot.lane.b32.xlu0 %v3123, 88
        %v3956 = vpop.permute.xlu0 %3955
        %3957 = vrot.lane.b32.xlu0 %v3124, 88
        %v3958 = vpop.permute.xlu0 %3957
        %3959 = vrot.lane.b32.xlu0 %v3125, 88
        %v3960 = vpop.permute.xlu0 %3959
        %3961 = vrot.lane.b32.xlu0 %v3126, 88
        %v3962 = vpop.permute.xlu0 %3961
        %3963 = vrot.lane.b32.xlu0 %v3127, 88
        %v3964 = vpop.permute.xlu0 %3963
        %3965 = vrot.lane.b32.xlu0 %v3128, 88
        %v3966 = vpop.permute.xlu0 %3965
        %s3999 = scalar_lea.vmem %s350, 512
        %4000 = vst.msk [vmem:[%s3999] sm:$0xff] %vm3129, %v3904
        %4001 = vst.msk [vmem:[%s3999 + $0x8] sm:$0xff] %vm3129, %v3906
        %4002 = vst.msk [vmem:[%s3999 + $0x10] sm:$0xff] %vm3129, %v3908
        %4003 = vst.msk [vmem:[%s3999 + $0x18] sm:$0xff] %vm3129, %v3910
        %4004 = vst.msk [vmem:[%s3999 + $0x20] sm:$0xff] %vm3129, %v3912
        %4005 = vst.msk [vmem:[%s3999 + $0x28] sm:$0xff] %vm3129, %v3914
        %4006 = vst.msk [vmem:[%s3999 + $0x30] sm:$0xff] %vm3129, %v3916
        %4007 = vst.msk [vmem:[%s3999 + $0x38] sm:$0xff] %vm3129, %v3918
        %4008 = vst.msk [vmem:[%s3999 + $0x40] sm:$0xff] %vm3129, %v3920
        %4009 = vst.msk [vmem:[%s3999 + $0x48] sm:$0xff] %vm3129, %v3922
        %4010 = vst.msk [vmem:[%s3999 + $0x50] sm:$0xff] %vm3129, %v3924
        %4011 = vst.msk [vmem:[%s3999 + $0x58] sm:$0xff] %vm3129, %v3926
        %4012 = vst.msk [vmem:[%s3999 + $0x60] sm:$0xff] %vm3129, %v3928
        %4013 = vst.msk [vmem:[%s3999 + $0x68] sm:$0xff] %vm3129, %v3930
        %4014 = vst.msk [vmem:[%s3999 + $0x70] sm:$0xff] %vm3129, %v3932
        %4015 = vst.msk [vmem:[%s3999 + $0x78] sm:$0xff] %vm3129, %v3934
        %4016 = vst.msk [vmem:[%s3999 + $0x80] sm:$0xff] %vm3129, %v3936
        %4017 = vst.msk [vmem:[%s3999 + $0x88] sm:$0xff] %vm3129, %v3938
        %4018 = vst.msk [vmem:[%s3999 + $0x90] sm:$0xff] %vm3129, %v3940
        %4019 = vst.msk [vmem:[%s3999 + $0x98] sm:$0xff] %vm3129, %v3942
        %4020 = vst.msk [vmem:[%s3999 + $0xa0] sm:$0xff] %vm3129, %v3944
        %4021 = vst.msk [vmem:[%s3999 + $0xa8] sm:$0xff] %vm3129, %v3946
        %4022 = vst.msk [vmem:[%s3999 + $0xb0] sm:$0xff] %vm3129, %v3948
        %4023 = vst.msk [vmem:[%s3999 + $0xb8] sm:$0xff] %vm3129, %v3950
        %4024 = vst.msk [vmem:[%s3999 + $0xc0] sm:$0xff] %vm3129, %v3952
        %4025 = vst.msk [vmem:[%s3999 + $0xc8] sm:$0xff] %vm3129, %v3954
        %4026 = vst.msk [vmem:[%s3999 + $0xd0] sm:$0xff] %vm3129, %v3956
        %4027 = vst.msk [vmem:[%s3999 + $0xd8] sm:$0xff] %vm3129, %v3958
        %4028 = vst.msk [vmem:[%s3999 + $0xe0] sm:$0xff] %vm3129, %v3960
        %4029 = vst.msk [vmem:[%s3999 + $0xe8] sm:$0xff] %vm3129, %v3962
        %4030 = vst.msk [vmem:[%s3999 + $0xf0] sm:$0xff] %vm3129, %v3964
        %4031 = vst.msk [vmem:[%s3999 + $0xf8] sm:$0xff] %vm3129, %v3966
        %4032 = vrot.lane.b32.xlu0 %v2139, 83
        %v4033 = vpop.permute.xlu0 %4032
        %4034 = vrot.lane.b32.xlu0 %v2145, 83
        %v4035 = vpop.permute.xlu0 %4034
        %4036 = vrot.lane.b32.xlu0 %v2151, 83
        %v4037 = vpop.permute.xlu0 %4036
        %4038 = vrot.lane.b32.xlu0 %v2157, 83
        %v4039 = vpop.permute.xlu0 %4038
        %4040 = vrot.lane.b32.xlu0 %v2163, 83
        %v4041 = vpop.permute.xlu0 %4040
        %4042 = vrot.lane.b32.xlu0 %v2169, 83
        %v4043 = vpop.permute.xlu0 %4042
        %4044 = vrot.lane.b32.xlu0 %v2175, 83
        %v4045 = vpop.permute.xlu0 %4044
        %4046 = vrot.lane.b32.xlu0 %v2181, 83
        %v4047 = vpop.permute.xlu0 %4046
        %4048 = vrot.lane.b32.xlu0 %v2187, 83
        %v4049 = vpop.permute.xlu0 %4048
        %4050 = vrot.lane.b32.xlu0 %v2193, 83
        %v4051 = vpop.permute.xlu0 %4050
        %4052 = vrot.lane.b32.xlu0 %v2199, 83
        %v4053 = vpop.permute.xlu0 %4052
        %4054 = vrot.lane.b32.xlu0 %v2205, 83
        %v4055 = vpop.permute.xlu0 %4054
        %4056 = vrot.lane.b32.xlu0 %v2211, 83
        %v4057 = vpop.permute.xlu0 %4056
        %4058 = vrot.lane.b32.xlu0 %v2217, 83
        %v4059 = vpop.permute.xlu0 %4058
        %4060 = vrot.lane.b32.xlu0 %v2223, 83
        %v4061 = vpop.permute.xlu0 %4060
        %4062 = vrot.lane.b32.xlu0 %v2229, 83
        %v4063 = vpop.permute.xlu0 %4062
        %4064 = vrot.lane.b32.xlu0 %v2235, 83
        %v4065 = vpop.permute.xlu0 %4064
        %4066 = vrot.lane.b32.xlu0 %v2241, 83
        %v4067 = vpop.permute.xlu0 %4066
        %4068 = vrot.lane.b32.xlu0 %v2247, 83
        %v4069 = vpop.permute.xlu0 %4068
        %4070 = vrot.lane.b32.xlu0 %v2253, 83
        %v4071 = vpop.permute.xlu0 %4070
        %4072 = vrot.lane.b32.xlu0 %v2259, 83
        %v4073 = vpop.permute.xlu0 %4072
        %4074 = vrot.lane.b32.xlu0 %v2265, 83
        %v4075 = vpop.permute.xlu0 %4074
        %4076 = vrot.lane.b32.xlu0 %v2271, 83
        %v4077 = vpop.permute.xlu0 %4076
        %4078 = vrot.lane.b32.xlu0 %v2277, 83
        %v4079 = vpop.permute.xlu0 %4078
        %4080 = vrot.lane.b32.xlu0 %v2283, 83
        %v4081 = vpop.permute.xlu0 %4080
        %4082 = vrot.lane.b32.xlu0 %v2289, 83
        %v4083 = vpop.permute.xlu0 %4082
        %4084 = vrot.lane.b32.xlu0 %v2295, 83
        %v4085 = vpop.permute.xlu0 %4084
        %4086 = vrot.lane.b32.xlu0 %v2301, 83
        %v4087 = vpop.permute.xlu0 %4086
        %4088 = vrot.lane.b32.xlu0 %v2307, 83
        %v4089 = vpop.permute.xlu0 %4088
        %4090 = vrot.lane.b32.xlu0 %v2313, 83
        %v4091 = vpop.permute.xlu0 %4090
        %4092 = vrot.lane.b32.xlu0 %v2319, 83
        %v4093 = vpop.permute.xlu0 %4092
        %4094 = vrot.lane.b32.xlu0 %v2325, 83
        %v4095 = vpop.permute.xlu0 %4094
        %s4128 = scalar_lea.vmem %s360, 512
        %4129 = vst.msk [vmem:[%s4128] sm:$0xff] %vm3322, %v4033
        %4130 = vst.msk [vmem:[%s4128 + $0x8] sm:$0xff] %vm3322, %v4035
        %4131 = vst.msk [vmem:[%s4128 + $0x10] sm:$0xff] %vm3322, %v4037
        %4132 = vst.msk [vmem:[%s4128 + $0x18] sm:$0xff] %vm3322, %v4039
        %4133 = vst.msk [vmem:[%s4128 + $0x20] sm:$0xff] %vm3322, %v4041
        %4134 = vst.msk [vmem:[%s4128 + $0x28] sm:$0xff] %vm3322, %v4043
        %4135 = vst.msk [vmem:[%s4128 + $0x30] sm:$0xff] %vm3322, %v4045
        %4136 = vst.msk [vmem:[%s4128 + $0x38] sm:$0xff] %vm3322, %v4047
        %4137 = vst.msk [vmem:[%s4128 + $0x40] sm:$0xff] %vm3322, %v4049
        %4138 = vst.msk [vmem:[%s4128 + $0x48] sm:$0xff] %vm3322, %v4051
        %4139 = vst.msk [vmem:[%s4128 + $0x50] sm:$0xff] %vm3322, %v4053
        %4140 = vst.msk [vmem:[%s4128 + $0x58] sm:$0xff] %vm3322, %v4055
        %4141 = vst.msk [vmem:[%s4128 + $0x60] sm:$0xff] %vm3322, %v4057
        %4142 = vst.msk [vmem:[%s4128 + $0x68] sm:$0xff] %vm3322, %v4059
        %4143 = vst.msk [vmem:[%s4128 + $0x70] sm:$0xff] %vm3322, %v4061
        %4144 = vst.msk [vmem:[%s4128 + $0x78] sm:$0xff] %vm3322, %v4063
        %4145 = vst.msk [vmem:[%s4128 + $0x80] sm:$0xff] %vm3322, %v4065
        %4146 = vst.msk [vmem:[%s4128 + $0x88] sm:$0xff] %vm3322, %v4067
        %4147 = vst.msk [vmem:[%s4128 + $0x90] sm:$0xff] %vm3322, %v4069
        %4148 = vst.msk [vmem:[%s4128 + $0x98] sm:$0xff] %vm3322, %v4071
        %4149 = vst.msk [vmem:[%s4128 + $0xa0] sm:$0xff] %vm3322, %v4073
        %4150 = vst.msk [vmem:[%s4128 + $0xa8] sm:$0xff] %vm3322, %v4075
        %4151 = vst.msk [vmem:[%s4128 + $0xb0] sm:$0xff] %vm3322, %v4077
        %4152 = vst.msk [vmem:[%s4128 + $0xb8] sm:$0xff] %vm3322, %v4079
        %4153 = vst.msk [vmem:[%s4128 + $0xc0] sm:$0xff] %vm3322, %v4081
        %4154 = vst.msk [vmem:[%s4128 + $0xc8] sm:$0xff] %vm3322, %v4083
        %4155 = vst.msk [vmem:[%s4128 + $0xd0] sm:$0xff] %vm3322, %v4085
        %4156 = vst.msk [vmem:[%s4128 + $0xd8] sm:$0xff] %vm3322, %v4087
        %4157 = vst.msk [vmem:[%s4128 + $0xe0] sm:$0xff] %vm3322, %v4089
        %4158 = vst.msk [vmem:[%s4128 + $0xe8] sm:$0xff] %vm3322, %v4091
        %4159 = vst.msk [vmem:[%s4128 + $0xf0] sm:$0xff] %vm3322, %v4093
        %4160 = vst.msk [vmem:[%s4128 + $0xf8] sm:$0xff] %vm3322, %v4095
        %s4161 = smul.u32 32, %s27
        %p4162 = scmp.lt.s32.totalorder %s26, 1
        %s4163 = scalar_select %p4162, %s26, 1
        %p4164 = scmp.lt.s32.totalorder %s4161, 31
        %s4165 = scalar_select %p4164, %s4161, 31
        %s4166 = smul.addr %s4163, 96
        %s4167 = sadd.s32 %s4165, %s4166
        %s4168 = smul.addr %s4167, 8
        %s4169 = scalar_lea.vmem %s4, %s4168
        %s4170 = smul.u32 32, %s27
        %p4171 = scmp.lt.s32.totalorder %s26, 1
        %s4172 = scalar_select %p4171, %s26, 1
        %p4173 = scmp.lt.s32.totalorder %s4170, 31
        %s4174 = scalar_select %p4173, %s4170, 31
        %s4175 = smul.addr %s4172, 96
        %s4176 = sadd.s32 %s4174, %s4175
        %s4177 = smul.addr %s4176, 8
        %s4178 = scalar_lea.vmem %s5, %s4177
        %s4179 = smul.u32 32, %s27
        %p4180 = scmp.lt.s32.totalorder %s26, 1
        %s4181 = scalar_select %p4180, %s26, 1
        %p4182 = scmp.lt.s32.totalorder %s4179, 31
        %s4183 = scalar_select %p4182, %s4179, 31
        %s4184 = smul.addr %s4181, 96
        %s4185 = sadd.s32 %s4183, %s4184
        %s4186 = smul.addr %s4185, 8
        %s4187 = scalar_lea.vmem %s6, %s4186
        // Predicated region
        $region45: #{tpu_custom_call.1} parent=35 // pred_check
          %p4188 = pneg %p145
        $region46: #{tpu_custom_call.1} parent=35 // pred_check_branch
          %4190 = sbr.rel (%p4188) target = $region48
        $region47: #{tpu_custom_call.1} parent=35 // pred_region
          %s4191 = smul.u32 32, %s27
        $region48: #{tpu_custom_call.1} parent=35 // pred_fallthru
          _
        // Predicated region
        $region49: #{tpu_custom_call.1} parent=35 // pred_check
          %p4192 = pneg %p173
        $region50: #{tpu_custom_call.1} parent=35 // pred_check_branch
          %4194 = sbr.rel (%p4192) target = $region52
        $region51: #{tpu_custom_call.1} parent=35 // pred_region
          %s4195 = smul.u32 32, %s27
        $region52: #{tpu_custom_call.1} parent=35 // pred_fallthru
          _
        // Predicated region
        $region53: #{tpu_custom_call.1} parent=35 // pred_check
          %p4196 = pneg %p201
        $region54: #{tpu_custom_call.1} parent=35 // pred_check_branch
          %4198 = sbr.rel (%p4196) target = $region56
        $region55: #{tpu_custom_call.1} parent=35 // pred_region
          %s4199 = smul.u32 32, %s27
        $region56: #{tpu_custom_call.1} parent=35 // pred_fallthru
          _
      $region36: #{tpu_custom_call.1} parent=5 // pred_fallthru
        _
      %p4200 = scmp.le.s32.totalorder 2, %s17
      // Predicated region
      $region57: #{tpu_custom_call.1} parent=5 // pred_check
        %p4201 = pneg %p4200
      $region58: #{tpu_custom_call.1} parent=5 // pred_check_branch
        %4203 = sbr.rel (%p4201) target = $region60
      $region59: #{tpu_custom_call.1} parent=5 // pred_region
        %s4204 = ssub.s32 %s17, 2
        // Predicated region
        $region61: #{tpu_custom_call.1} parent=59 // pred_check
          %p4205 = pneg %p151
        $region62: #{tpu_custom_call.1} parent=59 // pred_check_branch
          %4207 = sbr.rel (%p4205) target = $region64
        $region63: #{tpu_custom_call.1} parent=59 // pred_region
          %s4208 = smul.u32 32, %s29
          %p4209 = scmp.lt.s32.totalorder %s28, 1
          %s4210 = scalar_select %p4209, %s28, 1
          %p4211 = scmp.lt.s32.totalorder %s4208, 31
          %s4212 = scalar_select %p4211, %s4208, 31
          %s4213 = smul.addr %s4210, 96
          %s4214 = sadd.s32 %s4212, %s4213
          %s4215 = smul.addr %s4214, 8
          %s4216 = scalar_lea.vmem %s4, %s4215
        $region64: #{tpu_custom_call.1} parent=59 // pred_fallthru
          _
        // Predicated region
        $region65: #{tpu_custom_call.1} parent=59 // pred_check
          %p4217 = pneg %p179
        $region66: #{tpu_custom_call.1} parent=59 // pred_check_branch
          %4219 = sbr.rel (%p4217) target = $region68
        $region67: #{tpu_custom_call.1} parent=59 // pred_region
          %s4220 = smul.u32 32, %s29
          %p4221 = scmp.lt.s32.totalorder %s28, 1
          %s4222 = scalar_select %p4221, %s28, 1
          %p4223 = scmp.lt.s32.totalorder %s4220, 31
          %s4224 = scalar_select %p4223, %s4220, 31
          %s4225 = smul.addr %s4222, 96
          %s4226 = sadd.s32 %s4224, %s4225
          %s4227 = smul.addr %s4226, 8
          %s4228 = scalar_lea.vmem %s5, %s4227
        $region68: #{tpu_custom_call.1} parent=59 // pred_fallthru
          _
        // Predicated region
        $region69: #{tpu_custom_call.1} parent=59 // pred_check
          %p4229 = pneg %p207
        $region70: #{tpu_custom_call.1} parent=59 // pred_check_branch
          %4231 = sbr.rel (%p4229) target = $region72
        $region71: #{tpu_custom_call.1} parent=59 // pred_region
          %s4232 = smul.u32 32, %s29
          %p4233 = scmp.lt.s32.totalorder %s28, 1
          %s4234 = scalar_select %p4233, %s28, 1
          %p4235 = scmp.lt.s32.totalorder %s4232, 31
          %s4236 = scalar_select %p4235, %s4232, 31
          %s4237 = smul.addr %s4234, 96
          %s4238 = sadd.s32 %s4236, %s4237
          %s4239 = smul.addr %s4238, 8
          %s4240 = scalar_lea.vmem %s6, %s4239
        $region72: #{tpu_custom_call.1} parent=59 // pred_fallthru
          _
      $region60: #{tpu_custom_call.1} parent=5 // pred_fallthru
        _
    $region6: #{tpu_custom_call.1} parent=1 // loop_footer
      %s21 = sadd.s32 1, %s17
    $region7: #{tpu_custom_call.1} parent=1 // loop_footer_branch
      %16 = sbr.rel target = $region3
    $region8: #{tpu_custom_call.1} parent=1 // loop_exit
      _
    %4241 = vsyncpa [#allocation3], 1
    %s4242 = scalar_lea.sflag [#allocation3], 1
    %4243 = vsyncpa %s4242, 1
    %4244 = vsyncpa [#allocation5], 1

</llo_original>
